<compile_context>
chip_gen: v6e
topology: v6e:2x2x1
jax: 0.10.0
libtpu: 0.0.40
codegen_flags: <defaults>
</compile_context>

<pallas_src>
import jax
import jax.numpy as jnp
import numpy as np
from jax.experimental import pallas as pl
from jax.experimental.pallas import tpu as pltpu

_VMEM = pl.BlockSpec(memory_space=pltpu.MemorySpace.VMEM)
_BN_EPS = 1e-5

# Static geometry implied by the module (image_size = 14, kernel 4, padding 14 % 4 = 2).
_IMG = 14
_K = 4
_PAD = _IMG % _K                 # 2
_WP1 = _IMG + 2 * _PAD           # 18  padded conv1 input H/W
_H1 = _WP1 - _K + 1              # 15  conv1 output H/W
_P1 = _H1 // 2                   # 7   pool1 output H/W (floor)
_H2 = _P1 + 2 * _PAD - _K + 1    # 8   conv2 output H/W
_P2 = _H2 // 2                   # 4   pool2 output H/W


# ------------------------------ fused kernel ------------------------------- #

def _fused_forward_kernel(x_ref, w1e_ref, w1o_ref, b1t_ref, s1e_ref, s1o_ref,
                          bnfold_ref, gamma_ref, beta_ref,
                          s2_ref, w2e_ref, w2o_ref, b2t_ref,
                          s3e_ref, s3o_ref, wf1_ref, bf1_ref, wf2_ref, bf2_ref,
                          o_ref):
    f32 = jnp.float32
    n = o_ref.shape[0]
    r1 = n * _WP1                                   # conv1 slab rows (stride 18/sample)

    # ---- conv1: 4 kh-shifted whole-slab GEMMs accumulated into even/odd-wo halves
    xv = x_ref[...]                                 # (r1 + pad_rows, 18*Cin)
    acc_e = jnp.zeros((r1, w1e_ref.shape[2]), f32)
    acc_o = jnp.zeros((r1, w1o_ref.shape[2]), f32)
    for kh in range(_K):
        xs = xv[kh:kh + r1, :]                      # static whole-slab row shift
        acc_e = acc_e + jnp.dot(xs, w1e_ref[kh], preferred_element_type=f32)
        acc_o = acc_o + jnp.dot(xs, w1o_ref[kh], preferred_element_type=f32)
    yw = jnp.maximum(acc_e, acc_o) + b1t_ref[...]   # W-pool + bias, (r1, 7*c1)

    # ---- H-pool1 + ReLU via constant 0/1 row-selection matmuls -> (n*7, 7*c1) ----
    yp = jnp.maximum(jnp.dot(s1e_ref[...], yw, preferred_element_type=f32),
                     jnp.dot(s1o_ref[...], yw, preferred_element_type=f32))
    yp = jnp.maximum(yp, 0.0)

    # ---- BatchNorm2d (train-mode batch stats), everything at 7*c1 lanes ----------
    inv_cnt = 1.0 / float(n * _P1 * _P1)
    mean_t = jnp.sum(jnp.dot(yp, bnfold_ref[...], preferred_element_type=f32),
                     axis=0, keepdims=True) * inv_cnt           # E[x]  tiled per W-group
    ex2_t = jnp.sum(jnp.dot(yp * yp, bnfold_ref[...], preferred_element_type=f32),
                    axis=0, keepdims=True) * inv_cnt            # E[x^2] tiled per W-group
    var_t = jnp.maximum(ex2_t - mean_t * mean_t, 0.0)           # biased var, clamped
    inv_t = jax.lax.rsqrt(var_t + _BN_EPS)                      # EUP
    scale_t = gamma_ref[...] * inv_t
    shift_t = beta_ref[...] - mean_t * scale_t
    z = yp * scale_t + shift_t                                  # (n*7, 7*c1)

    # ---- conv2: H padding via 0/1 shift-selectors, W padding inside the weights --
    a2e = jnp.zeros((n * _H2, w2e_ref.shape[2]), f32)
    a2o = jnp.zeros((n * _H2, w2o_ref.shape[2]), f32)
    for kh in range(_K):
        zs = jnp.dot(s2_ref[kh], z, preferred_element_type=f32)  # (n*8, 7*c1), 0 at pad
        a2e = a2e + jnp.dot(zs, w2e_ref[kh], preferred_element_type=f32)
        a2o = a2o + jnp.dot(zs, w2o_ref[kh], preferred_element_type=f32)
    y2w = jnp.maximum(a2e, a2o) + b2t_ref[...]                  # W-pool2 + bias, (n*8, 4*c2)

    # ---- H-pool2 + ReLU, flatten folded into fc1 row blocks, fc1 + ReLU ----------
    h1 = jnp.zeros((n, wf1_ref.shape[2]), f32) + bf1_ref[...]
    for ph in range(_P2):
        rows = jnp.maximum(jnp.dot(s3e_ref[ph], y2w, preferred_element_type=f32),
                           jnp.dot(s3o_ref[ph], y2w, preferred_element_type=f32))
        h1 = h1 + jnp.dot(jnp.maximum(rows, 0.0), wf1_ref[ph],
                          preferred_element_type=f32)
    h1 = jnp.maximum(h1, 0.0)

    # ---- fc2 -> single lane-contiguous logits slab (heads split in the wrapper) --
    o_ref[...] = jnp.dot(h1, wf2_ref[...], preferred_element_type=f32) + bf2_ref[...]


# --------------------- trace-time weight re-layout (exact) ------------------ #

def _toeplitz_kh(w_oihw, in_w, out_pos, pad):
    """Per-kh block-Toeplitz GEMM weights for a conv on a (H, W*Cin) activation slab.

    Returns (K, in_w*Cin, n_out*Cout) with
        out[kh, p*Cin + ci, i*Cout + co] = w[co, ci, kh, p + pad - out_pos[i]]
    when that kw index lies in [0, K), else 0.  Spatial W padding is therefore
    folded into zero weight entries (free on the MXU), and `out_pos` selects the
    even- or odd-parity output columns so the W-direction 2x2 max-pool becomes a
    single elementwise maximum of two GEMM results.
    """
    out_pos = list(out_pos)
    cout, cin, K, _ = w_oihw.shape
    w = jnp.transpose(w_oihw, (2, 3, 1, 0))                           # (kh, kw, ci, co)
    kwidx = np.arange(in_w)[:, None] + pad - np.asarray(out_pos)[None, :]   # (in_w, n_out)
    valid = ((kwidx >= 0) & (kwidx < K)).astype(np.float32)
    g = w[:, np.clip(kwidx, 0, K - 1), :, :]                          # (kh, in_w, n_out, ci, co)
    g = g * valid[None, :, :, None, None]
    g = jnp.transpose(g, (0, 1, 3, 2, 4))                             # (kh, in_w, ci, n_out, co)
    return g.reshape(K, in_w * cin, len(out_pos) * cout)


# --------------------------------- wrapper ---------------------------------- #

def naive_subnet_forward(x_nchw, params):
    """x_nchw: (N, 2, 14, 14) float32 -> ((N, 10), (N, 10)), matching NaiveSubNet."""
    N = x_nchw.shape[0]
    c1 = params["w1"].shape[0]                 # nb_out_1
    c2 = params["w2"].shape[0]                 # nb_out_2
    nh = params["wfc1"].shape[0]               # nb_hidden

    # Input: NHWC, zero-pad H/W by 2, lane-dense (N*18, 18*2) slab, plus a few tail
    # rows so the in-kernel kh row-shifts stay in bounds.
    x = jnp.transpose(x_nchw, (0, 2, 3, 1)).astype(jnp.float32)
    xp = jnp.pad(x, ((0, 0), (_PAD, _PAD), (_PAD, _PAD), (0, 0)))
    xs = xp.reshape(N * _WP1, _WP1 * 2)
    rows = ((N * _WP1 + (_K - 1) + 7) // 8) * 8
    xs = jnp.pad(xs, ((0, rows - N * _WP1), (0, 0)))

    # Even/odd-parity block-Toeplitz conv weights (constant under jit).
    w1e = _toeplitz_kh(params["w1"], _WP1, range(0, 2 * _P1, 2), 0)     # (4, 36, 7*c1)
    w1o = _toeplitz_kh(params["w1"], _WP1, range(1, 2 * _P1, 2), 0)
    w2e = _toeplitz_kh(params["w2"], _P1, range(0, 2 * _P2, 2), _PAD)   # (4, 7*c1, 4*c2)
    w2o = _toeplitz_kh(params["w2"], _P1, range(1, 2 * _P2, 2), _PAD)

    # Bias / gamma / beta tiled to the lane layout at trace time (no in-kernel tiling).
    b1t = jnp.tile(params["b1"].reshape(1, c1), (1, _P1))
    b2t = jnp.tile(params["b2"].reshape(1, c2), (1, _P2))
    gamma_t = jnp.tile(params["bn_gamma"].reshape(1, c1), (1, _P1))
    beta_t = jnp.tile(params["bn_beta"].reshape(1, c1), (1, _P1))

    # pool1 H-selection: output row b*7+j <- conv1 slab rows b*18+2j / b*18+2j+1.
    s1e = np.zeros((N * _P1, N * _WP1), np.float32)
    s1o = np.zeros((N * _P1, N * _WP1), np.float32)
    for b in range(N):
        for j in range(_P1):
            s1e[b * _P1 + j, b * _WP1 + 2 * j] = 1.0
            s1o[b * _P1 + j, b * _WP1 + 2 * j + 1] = 1.0

    # conv2 kh row-shift (+ H zero-padding) selectors on the (N*7)-row BN'd slab.
    s2 = np.zeros((_K, N * _H2, N * _P1), np.float32)
    for kh in range(_K):
        for b in range(N):
            for ho in range(_H2):
                hin = ho + kh - _PAD
                if 0 <= hin < _P1:
                    s2[kh, b * _H2 + ho, b * _P1 + hin] = 1.0

    # pool2 H-selection: one (N, N*8) selector pair per pooled output row.
    s3e = np.zeros((_P2, N, N * _H2), np.float32)
    s3o = np.zeros((_P2, N, N * _H2), np.float32)
    for ph in range(_P2):
        for b in range(N):
            s3e[ph, b, b * _H2 + 2 * ph] = 1.0
            s3o[ph, b, b * _H2 + 2 * ph + 1] = 1.0

    # Per-column -> per-channel totals, re-broadcast to every W group (BN fold).
    bnfold = np.tile(np.eye(c1, dtype=np.float32), (_P1, _P1))          # (7*c1, 7*c1)

    # Fold the torch (C, H, W) flatten order into fc1, split by pooled H row.
    wf1s = jnp.transpose(params["wfc1"].reshape(nh, c2, _P2, _P2),
                         (2, 3, 1, 0)).reshape(_P2, _P2 * c2, nh)       # (4, 4*c2, nh)
    bf1 = params["bfc1"].reshape(1, nh)
    wf2 = params["wfc2"].T                                              # (nh, 20)
    bf2 = params["bfc2"].reshape(1, 20)

    logits = pl.pallas_call(
        _fused_forward_kernel,
        out_shape=jax.ShapeDtypeStruct((N, 20), jnp.float32),
        in_specs=[_VMEM] * 19,
        out_specs=_VMEM,
    )(xs, w1e, w1o, b1t, jnp.asarray(s1e), jnp.asarray(s1o), jnp.asarray(bnfold),
      gamma_t, beta_t, jnp.asarray(s2), w2e, w2o, b2t,
      jnp.asarray(s3e), jnp.asarray(s3o), wf1s, bf1, wf2, bf2)
    return logits[:, :10], logits[:, 10:]


# --------------------- deterministic parameter init ------------------------ #

def init_params(key, nb_hidden=32, nb_out_1=8, nb_out_2=16):
    ks = jax.random.split(key, 8)

    def u(k, shape, fan_in):
        bound = 1.0 / np.sqrt(fan_in)
        return jax.random.uniform(k, shape, jnp.float32, -bound, bound)

    return dict(
        w1=u(ks[0], (nb_out_1, 2, 4, 4), 2 * 16),
        b1=u(ks[1], (nb_out_1,), 2 * 16),
        w2=u(ks[2], (nb_out_2, nb_out_1, 4, 4), nb_out_1 * 16),
        b2=u(ks[3], (nb_out_2,), nb_out_1 * 16),
        wfc1=u(ks[4], (nb_hidden, nb_out_2 * 16), nb_out_2 * 16),
        bfc1=u(ks[5], (nb_hidden,), nb_out_2 * 16),
        wfc2=u(ks[6], (20, nb_hidden), nb_hidden),
        bfc2=u(ks[7], (20,), nb_hidden),
        bn_gamma=jnp.ones((nb_out_1,), jnp.float32),
        bn_beta=jnp.zeros((nb_out_1,), jnp.float32),
    )


# ----------------------- pure-JAX reference (NCHW) -------------------------- #

def reference_forward(x, p):
    def conv(x, w, b, pad):
        y = jax.lax.conv_general_dilated(
            x, w, (1, 1), [(pad, pad), (pad, pad)],
            dimension_numbers=("NCHW", "OIHW", "NCHW"))
        return y + b.reshape(1, -1, 1, 1)

    def maxpool2(x):
        return jax.lax.reduce_window(x, -jnp.inf, jax.lax.max,
                                     (1, 1, 2, 2), (1, 1, 2, 2), "VALID")

    y = jnp.maximum(maxpool2(conv(x, p["w1"], p["b1"], 2)), 0.0)
    mean = y.mean(axis=(0, 2, 3), keepdims=True)
    var = ((y - mean) ** 2).mean(axis=(0, 2, 3), keepdims=True)
    y = (p["bn_gamma"].reshape(1, -1, 1, 1) * (y - mean) / jnp.sqrt(var + _BN_EPS)
         + p["bn_beta"].reshape(1, -1, 1, 1))
    y = jnp.maximum(maxpool2(conv(y, p["w2"], p["b2"], 2)), 0.0)
    y = y.reshape(y.shape[0], -1)                     # NCHW flatten == torch .view
    y = jnp.maximum(y @ p["wfc1"].T + p["bfc1"], 0.0)
    y = y @ p["wfc2"].T + p["bfc2"]
    return y[:, :10], y[:, 10:]


# --------------------------------- main ------------------------------------ #

if __name__ == "__main__":
    key = jax.random.PRNGKey(0)
    kx, kp = jax.random.split(key)

    # (batch=2, two stacked 14x14 images per sample) -> NCHW input like PyTorch
    x = jax.random.normal(kx, (2, 2, 14, 14), jnp.float32)
    params = init_params(kp, nb_hidden=32)

    out1, out2 = jax.jit(naive_subnet_forward)(x, params)
    jax.block_until_ready((out1, out2))

    r1, r2 = reference_forward(x, params)
    np.testing.assert_allclose(np.asarray(out1), np.asarray(r1), rtol=2e-4, atol=2e-4)
    np.testing.assert_allclose(np.asarray(out2), np.asarray(r2), rtol=2e-4, atol=2e-4)

    print("KERNEL_OK")
</pallas_src>

<mosaic_0001>
module attributes {stable_mosaic.version = 11 : i64} {
  func.func @_fused_forward_kernel(%arg0: memref<40x36xf32, #tpu.memory_space<vmem>>, %arg1: memref<4x36x56xf32, #tpu.memory_space<vmem>>, %arg2: memref<4x36x56xf32, #tpu.memory_space<vmem>>, %arg3: memref<1x56xf32, #tpu.memory_space<vmem>>, %arg4: memref<14x36xf32, #tpu.memory_space<vmem>>, %arg5: memref<14x36xf32, #tpu.memory_space<vmem>>, %arg6: memref<56x56xf32, #tpu.memory_space<vmem>>, %arg7: memref<1x56xf32, #tpu.memory_space<vmem>>, %arg8: memref<1x56xf32, #tpu.memory_space<vmem>>, %arg9: memref<4x16x14xf32, #tpu.memory_space<vmem>>, %arg10: memref<4x56x64xf32, #tpu.memory_space<vmem>>, %arg11: memref<4x56x64xf32, #tpu.memory_space<vmem>>, %arg12: memref<1x64xf32, #tpu.memory_space<vmem>>, %arg13: memref<4x2x16xf32, #tpu.memory_space<vmem>>, %arg14: memref<4x2x16xf32, #tpu.memory_space<vmem>>, %arg15: memref<4x64x32xf32, #tpu.memory_space<vmem>>, %arg16: memref<1x32xf32, #tpu.memory_space<vmem>>, %arg17: memref<32x20xf32, #tpu.memory_space<vmem>>, %arg18: memref<1x20xf32, #tpu.memory_space<vmem>>, %arg19: memref<2x20xf32, #tpu.memory_space<vmem>>) attributes {dimension_semantics = [], scalar_prefetch = 0 : i64, scratch_operands = 0 : i64, tpu.core_type = #tpu.core_type<tc>} {
    %c0 = arith.constant 0 : index
    %c0_0 = arith.constant 0 : index
    %0 = vector.load %arg0[%c0, %c0_0] : memref<40x36xf32, #tpu.memory_space<vmem>>, vector<40x36xf32>
    %cst = arith.constant 0.000000e+00 : f32
    %1 = vector.broadcast %cst : f32 to vector<36x56xf32>
    %cst_1 = arith.constant 0.000000e+00 : f32
    %2 = vector.broadcast %cst_1 : f32 to vector<36x56xf32>
    %3 = vector.extract_strided_slice %0 {offsets = [0, 0], sizes = [36, 36], strides = [1, 1]} : vector<40x36xf32> to vector<36x36xf32>
    %c0_2 = arith.constant 0 : index
    %c0_3 = arith.constant 0 : index
    %c0_4 = arith.constant 0 : index
    %4 = vector.load %arg1[%c0_2, %c0_3, %c0_4] : memref<4x36x56xf32, #tpu.memory_space<vmem>>, vector<1x36x56xf32>
    %5 = vector.shape_cast %4 : vector<1x36x56xf32> to vector<36x56xf32>
    %cst_5 = arith.constant dense<0.000000e+00> : vector<36x56xf32>
    %6 = tpu.matmul %3, %5, %cst_5 {dimension_numbers = #tpu.dot_dimension_numbers<[1], [0], [0], [1], [0, 0, 1, 1], [], []>} : vector<36x36xf32>, vector<36x56xf32>, vector<36x56xf32> -> vector<36x56xf32>
    %7 = arith.addf %1, %6 : vector<36x56xf32>
    %c0_6 = arith.constant 0 : index
    %c0_7 = arith.constant 0 : index
    %c0_8 = arith.constant 0 : index
    %8 = vector.load %arg2[%c0_6, %c0_7, %c0_8] : memref<4x36x56xf32, #tpu.memory_space<vmem>>, vector<1x36x56xf32>
    %9 = vector.shape_cast %8 : vector<1x36x56xf32> to vector<36x56xf32>
    %cst_9 = arith.constant dense<0.000000e+00> : vector<36x56xf32>
    %10 = tpu.matmul %3, %9, %cst_9 {dimension_numbers = #tpu.dot_dimension_numbers<[1], [0], [0], [1], [0, 0, 1, 1], [], []>} : vector<36x36xf32>, vector<36x56xf32>, vector<36x56xf32> -> vector<36x56xf32>
    %11 = arith.addf %2, %10 : vector<36x56xf32>
    %12 = vector.extract_strided_slice %0 {offsets = [1, 0], sizes = [36, 36], strides = [1, 1]} : vector<40x36xf32> to vector<36x36xf32>
    %c1 = arith.constant 1 : index
    %c0_10 = arith.constant 0 : index
    %c0_11 = arith.constant 0 : index
    %13 = vector.load %arg1[%c1, %c0_10, %c0_11] : memref<4x36x56xf32, #tpu.memory_space<vmem>>, vector<1x36x56xf32>
    %14 = vector.shape_cast %13 : vector<1x36x56xf32> to vector<36x56xf32>
    %cst_12 = arith.constant dense<0.000000e+00> : vector<36x56xf32>
    %15 = tpu.matmul %12, %14, %cst_12 {dimension_numbers = #tpu.dot_dimension_numbers<[1], [0], [0], [1], [0, 0, 1, 1], [], []>} : vector<36x36xf32>, vector<36x56xf32>, vector<36x56xf32> -> vector<36x56xf32>
    %16 = arith.addf %7, %15 : vector<36x56xf32>
    %c1_13 = arith.constant 1 : index
    %c0_14 = arith.constant 0 : index
    %c0_15 = arith.constant 0 : index
    %17 = vector.load %arg2[%c1_13, %c0_14, %c0_15] : memref<4x36x56xf32, #tpu.memory_space<vmem>>, vector<1x36x56xf32>
    %18 = vector.shape_cast %17 : vector<1x36x56xf32> to vector<36x56xf32>
    %cst_16 = arith.constant dense<0.000000e+00> : vector<36x56xf32>
    %19 = tpu.matmul %12, %18, %cst_16 {dimension_numbers = #tpu.dot_dimension_numbers<[1], [0], [0], [1], [0, 0, 1, 1], [], []>} : vector<36x36xf32>, vector<36x56xf32>, vector<36x56xf32> -> vector<36x56xf32>
    %20 = arith.addf %11, %19 : vector<36x56xf32>
    %21 = vector.extract_strided_slice %0 {offsets = [2, 0], sizes = [36, 36], strides = [1, 1]} : vector<40x36xf32> to vector<36x36xf32>
    %c2 = arith.constant 2 : index
    %c0_17 = arith.constant 0 : index
    %c0_18 = arith.constant 0 : index
    %22 = vector.load %arg1[%c2, %c0_17, %c0_18] : memref<4x36x56xf32, #tpu.memory_space<vmem>>, vector<1x36x56xf32>
    %23 = vector.shape_cast %22 : vector<1x36x56xf32> to vector<36x56xf32>
    %cst_19 = arith.constant dense<0.000000e+00> : vector<36x56xf32>
    %24 = tpu.matmul %21, %23, %cst_19 {dimension_numbers = #tpu.dot_dimension_numbers<[1], [0], [0], [1], [0, 0, 1, 1], [], []>} : vector<36x36xf32>, vector<36x56xf32>, vector<36x56xf32> -> vector<36x56xf32>
    %25 = arith.addf %16, %24 : vector<36x56xf32>
    %c2_20 = arith.constant 2 : index
    %c0_21 = arith.constant 0 : index
    %c0_22 = arith.constant 0 : index
    %26 = vector.load %arg2[%c2_20, %c0_21, %c0_22] : memref<4x36x56xf32, #tpu.memory_space<vmem>>, vector<1x36x56xf32>
    %27 = vector.shape_cast %26 : vector<1x36x56xf32> to vector<36x56xf32>
    %cst_23 = arith.constant dense<0.000000e+00> : vector<36x56xf32>
    %28 = tpu.matmul %21, %27, %cst_23 {dimension_numbers = #tpu.dot_dimension_numbers<[1], [0], [0], [1], [0, 0, 1, 1], [], []>} : vector<36x36xf32>, vector<36x56xf32>, vector<36x56xf32> -> vector<36x56xf32>
    %29 = arith.addf %20, %28 : vector<36x56xf32>
    %30 = vector.extract_strided_slice %0 {offsets = [3, 0], sizes = [36, 36], strides = [1, 1]} : vector<40x36xf32> to vector<36x36xf32>
    %c3 = arith.constant 3 : index
    %c0_24 = arith.constant 0 : index
    %c0_25 = arith.constant 0 : index
    %31 = vector.load %arg1[%c3, %c0_24, %c0_25] : memref<4x36x56xf32, #tpu.memory_space<vmem>>, vector<1x36x56xf32>
    %32 = vector.shape_cast %31 : vector<1x36x56xf32> to vector<36x56xf32>
    %cst_26 = arith.constant dense<0.000000e+00> : vector<36x56xf32>
    %33 = tpu.matmul %30, %32, %cst_26 {dimension_numbers = #tpu.dot_dimension_numbers<[1], [0], [0], [1], [0, 0, 1, 1], [], []>} : vector<36x36xf32>, vector<36x56xf32>, vector<36x56xf32> -> vector<36x56xf32>
    %34 = arith.addf %25, %33 : vector<36x56xf32>
    %c3_27 = arith.constant 3 : index
    %c0_28 = arith.constant 0 : index
    %c0_29 = arith.constant 0 : index
    %35 = vector.load %arg2[%c3_27, %c0_28, %c0_29] : memref<4x36x56xf32, #tpu.memory_space<vmem>>, vector<1x36x56xf32>
    %36 = vector.shape_cast %35 : vector<1x36x56xf32> to vector<36x56xf32>
    %cst_30 = arith.constant dense<0.000000e+00> : vector<36x56xf32>
    %37 = tpu.matmul %30, %36, %cst_30 {dimension_numbers = #tpu.dot_dimension_numbers<[1], [0], [0], [1], [0, 0, 1, 1], [], []>} : vector<36x36xf32>, vector<36x56xf32>, vector<36x56xf32> -> vector<36x56xf32>
    %38 = arith.addf %29, %37 : vector<36x56xf32>
    %39 = arith.maximumf %34, %38 : vector<36x56xf32>
    %c0_31 = arith.constant 0 : index
    %c0_32 = arith.constant 0 : index
    %40 = vector.load %arg3[%c0_31, %c0_32] : memref<1x56xf32, #tpu.memory_space<vmem>>, vector<1x56xf32>
    %41 = vector.broadcast %40 : vector<1x56xf32> to vector<36x56xf32>
    %42 = arith.addf %39, %41 : vector<36x56xf32>
    %c0_33 = arith.constant 0 : index
    %c0_34 = arith.constant 0 : index
    %43 = vector.load %arg4[%c0_33, %c0_34] : memref<14x36xf32, #tpu.memory_space<vmem>>, vector<14x36xf32>
    %cst_35 = arith.constant dense<0.000000e+00> : vector<14x56xf32>
    %44 = tpu.matmul %43, %42, %cst_35 {dimension_numbers = #tpu.dot_dimension_numbers<[1], [0], [0], [1], [0, 0, 1, 1], [], []>} : vector<14x36xf32>, vector<36x56xf32>, vector<14x56xf32> -> vector<14x56xf32>
    %c0_36 = arith.constant 0 : index
    %c0_37 = arith.constant 0 : index
    %45 = vector.load %arg5[%c0_36, %c0_37] : memref<14x36xf32, #tpu.memory_space<vmem>>, vector<14x36xf32>
    %cst_38 = arith.constant dense<0.000000e+00> : vector<14x56xf32>
    %46 = tpu.matmul %45, %42, %cst_38 {dimension_numbers = #tpu.dot_dimension_numbers<[1], [0], [0], [1], [0, 0, 1, 1], [], []>} : vector<14x36xf32>, vector<36x56xf32>, vector<14x56xf32> -> vector<14x56xf32>
    %47 = arith.maximumf %44, %46 : vector<14x56xf32>
    %cst_39 = arith.constant 0.000000e+00 : f32
    %48 = vector.broadcast %cst_39 : f32 to vector<14x56xf32>
    %49 = arith.maximumf %47, %48 : vector<14x56xf32>
    %c0_40 = arith.constant 0 : index
    %c0_41 = arith.constant 0 : index
    %50 = vector.load %arg6[%c0_40, %c0_41] : memref<56x56xf32, #tpu.memory_space<vmem>>, vector<56x56xf32>
    %cst_42 = arith.constant dense<0.000000e+00> : vector<14x56xf32>
    %51 = tpu.matmul %49, %50, %cst_42 {dimension_numbers = #tpu.dot_dimension_numbers<[1], [0], [0], [1], [0, 0, 1, 1], [], []>} : vector<14x56xf32>, vector<56x56xf32>, vector<14x56xf32> -> vector<14x56xf32>
    %cst_43 = arith.constant dense<0.000000e+00> : vector<56xf32>
    %52 = vector.multi_reduction <add>, %51, %cst_43 [0] : vector<14x56xf32> to vector<56xf32>
    %53 = vector.shape_cast %52 : vector<56xf32> to vector<1x56xf32>
    %cst_44 = arith.constant 0.0102040814 : f32
    %54 = vector.broadcast %cst_44 : f32 to vector<1x56xf32>
    %55 = arith.mulf %53, %54 : vector<1x56xf32>
    %56 = arith.mulf %49, %49 : vector<14x56xf32>
    %c0_45 = arith.constant 0 : index
    %c0_46 = arith.constant 0 : index
    %57 = vector.load %arg6[%c0_45, %c0_46] : memref<56x56xf32, #tpu.memory_space<vmem>>, vector<56x56xf32>
    %cst_47 = arith.constant dense<0.000000e+00> : vector<14x56xf32>
    %58 = tpu.matmul %56, %57, %cst_47 {dimension_numbers = #tpu.dot_dimension_numbers<[1], [0], [0], [1], [0, 0, 1, 1], [], []>} : vector<14x56xf32>, vector<56x56xf32>, vector<14x56xf32> -> vector<14x56xf32>
    %cst_48 = arith.constant dense<0.000000e+00> : vector<56xf32>
    %59 = vector.multi_reduction <add>, %58, %cst_48 [0] : vector<14x56xf32> to vector<56xf32>
    %60 = vector.shape_cast %59 : vector<56xf32> to vector<1x56xf32>
    %cst_49 = arith.constant 0.0102040814 : f32
    %61 = vector.broadcast %cst_49 : f32 to vector<1x56xf32>
    %62 = arith.mulf %60, %61 : vector<1x56xf32>
    %63 = arith.mulf %55, %55 : vector<1x56xf32>
    %64 = arith.subf %62, %63 : vector<1x56xf32>
    %cst_50 = arith.constant 0.000000e+00 : f32
    %65 = vector.broadcast %cst_50 : f32 to vector<1x56xf32>
    %66 = arith.maximumf %64, %65 : vector<1x56xf32>
    %cst_51 = arith.constant 9.99999974E-6 : f32
    %67 = vector.broadcast %cst_51 : f32 to vector<1x56xf32>
    %68 = arith.addf %66, %67 : vector<1x56xf32>
    %69 = math.rsqrt %68 : vector<1x56xf32>
    %c0_52 = arith.constant 0 : index
    %c0_53 = arith.constant 0 : index
    %70 = vector.load %arg7[%c0_52, %c0_53] : memref<1x56xf32, #tpu.memory_space<vmem>>, vector<1x56xf32>
    %71 = arith.mulf %70, %69 : vector<1x56xf32>
    %c0_54 = arith.constant 0 : index
    %c0_55 = arith.constant 0 : index
    %72 = vector.load %arg8[%c0_54, %c0_55] : memref<1x56xf32, #tpu.memory_space<vmem>>, vector<1x56xf32>
    %73 = arith.mulf %55, %71 : vector<1x56xf32>
    %74 = arith.subf %72, %73 : vector<1x56xf32>
    %75 = vector.broadcast %71 : vector<1x56xf32> to vector<14x56xf32>
    %76 = arith.mulf %49, %75 : vector<14x56xf32>
    %77 = vector.broadcast %74 : vector<1x56xf32> to vector<14x56xf32>
    %78 = arith.addf %76, %77 : vector<14x56xf32>
    %cst_56 = arith.constant 0.000000e+00 : f32
    %79 = vector.broadcast %cst_56 : f32 to vector<16x64xf32>
    %cst_57 = arith.constant 0.000000e+00 : f32
    %80 = vector.broadcast %cst_57 : f32 to vector<16x64xf32>
    %c0_58 = arith.constant 0 : index
    %c0_59 = arith.constant 0 : index
    %c0_60 = arith.constant 0 : index
    %81 = vector.load %arg9[%c0_58, %c0_59, %c0_60] : memref<4x16x14xf32, #tpu.memory_space<vmem>>, vector<1x16x14xf32>
    %82 = vector.shape_cast %81 : vector<1x16x14xf32> to vector<16x14xf32>
    %cst_61 = arith.constant dense<0.000000e+00> : vector<16x56xf32>
    %83 = tpu.matmul %82, %78, %cst_61 {dimension_numbers = #tpu.dot_dimension_numbers<[1], [0], [0], [1], [0, 0, 1, 1], [], []>} : vector<16x14xf32>, vector<14x56xf32>, vector<16x56xf32> -> vector<16x56xf32>
    %c0_62 = arith.constant 0 : index
    %c0_63 = arith.constant 0 : index
    %c0_64 = arith.constant 0 : index
    %84 = vector.load %arg10[%c0_62, %c0_63, %c0_64] : memref<4x56x64xf32, #tpu.memory_space<vmem>>, vector<1x56x64xf32>
    %85 = vector.shape_cast %84 : vector<1x56x64xf32> to vector<56x64xf32>
    %cst_65 = arith.constant dense<0.000000e+00> : vector<16x64xf32>
    %86 = tpu.matmul %83, %85, %cst_65 {dimension_numbers = #tpu.dot_dimension_numbers<[1], [0], [0], [1], [0, 0, 1, 1], [], []>} : vector<16x56xf32>, vector<56x64xf32>, vector<16x64xf32> -> vector<16x64xf32>
    %87 = arith.addf %79, %86 : vector<16x64xf32>
    %c0_66 = arith.constant 0 : index
    %c0_67 = arith.constant 0 : index
    %c0_68 = arith.constant 0 : index
    %88 = vector.load %arg11[%c0_66, %c0_67, %c0_68] : memref<4x56x64xf32, #tpu.memory_space<vmem>>, vector<1x56x64xf32>
    %89 = vector.shape_cast %88 : vector<1x56x64xf32> to vector<56x64xf32>
    %cst_69 = arith.constant dense<0.000000e+00> : vector<16x64xf32>
    %90 = tpu.matmul %83, %89, %cst_69 {dimension_numbers = #tpu.dot_dimension_numbers<[1], [0], [0], [1], [0, 0, 1, 1], [], []>} : vector<16x56xf32>, vector<56x64xf32>, vector<16x64xf32> -> vector<16x64xf32>
    %91 = arith.addf %80, %90 : vector<16x64xf32>
    %c1_70 = arith.constant 1 : index
    %c0_71 = arith.constant 0 : index
    %c0_72 = arith.constant 0 : index
    %92 = vector.load %arg9[%c1_70, %c0_71, %c0_72] : memref<4x16x14xf32, #tpu.memory_space<vmem>>, vector<1x16x14xf32>
    %93 = vector.shape_cast %92 : vector<1x16x14xf32> to vector<16x14xf32>
    %cst_73 = arith.constant dense<0.000000e+00> : vector<16x56xf32>
    %94 = tpu.matmul %93, %78, %cst_73 {dimension_numbers = #tpu.dot_dimension_numbers<[1], [0], [0], [1], [0, 0, 1, 1], [], []>} : vector<16x14xf32>, vector<14x56xf32>, vector<16x56xf32> -> vector<16x56xf32>
    %c1_74 = arith.constant 1 : index
    %c0_75 = arith.constant 0 : index
    %c0_76 = arith.constant 0 : index
    %95 = vector.load %arg10[%c1_74, %c0_75, %c0_76] : memref<4x56x64xf32, #tpu.memory_space<vmem>>, vector<1x56x64xf32>
    %96 = vector.shape_cast %95 : vector<1x56x64xf32> to vector<56x64xf32>
    %cst_77 = arith.constant dense<0.000000e+00> : vector<16x64xf32>
    %97 = tpu.matmul %94, %96, %cst_77 {dimension_numbers = #tpu.dot_dimension_numbers<[1], [0], [0], [1], [0, 0, 1, 1], [], []>} : vector<16x56xf32>, vector<56x64xf32>, vector<16x64xf32> -> vector<16x64xf32>
    %98 = arith.addf %87, %97 : vector<16x64xf32>
    %c1_78 = arith.constant 1 : index
    %c0_79 = arith.constant 0 : index
    %c0_80 = arith.constant 0 : index
    %99 = vector.load %arg11[%c1_78, %c0_79, %c0_80] : memref<4x56x64xf32, #tpu.memory_space<vmem>>, vector<1x56x64xf32>
    %100 = vector.shape_cast %99 : vector<1x56x64xf32> to vector<56x64xf32>
    %cst_81 = arith.constant dense<0.000000e+00> : vector<16x64xf32>
    %101 = tpu.matmul %94, %100, %cst_81 {dimension_numbers = #tpu.dot_dimension_numbers<[1], [0], [0], [1], [0, 0, 1, 1], [], []>} : vector<16x56xf32>, vector<56x64xf32>, vector<16x64xf32> -> vector<16x64xf32>
    %102 = arith.addf %91, %101 : vector<16x64xf32>
    %c2_82 = arith.constant 2 : index
    %c0_83 = arith.constant 0 : index
    %c0_84 = arith.constant 0 : index
    %103 = vector.load %arg9[%c2_82, %c0_83, %c0_84] : memref<4x16x14xf32, #tpu.memory_space<vmem>>, vector<1x16x14xf32>
    %104 = vector.shape_cast %103 : vector<1x16x14xf32> to vector<16x14xf32>
    %cst_85 = arith.constant dense<0.000000e+00> : vector<16x56xf32>
    %105 = tpu.matmul %104, %78, %cst_85 {dimension_numbers = #tpu.dot_dimension_numbers<[1], [0], [0], [1], [0, 0, 1, 1], [], []>} : vector<16x14xf32>, vector<14x56xf32>, vector<16x56xf32> -> vector<16x56xf32>
    %c2_86 = arith.constant 2 : index
    %c0_87 = arith.constant 0 : index
    %c0_88 = arith.constant 0 : index
    %106 = vector.load %arg10[%c2_86, %c0_87, %c0_88] : memref<4x56x64xf32, #tpu.memory_space<vmem>>, vector<1x56x64xf32>
    %107 = vector.shape_cast %106 : vector<1x56x64xf32> to vector<56x64xf32>
    %cst_89 = arith.constant dense<0.000000e+00> : vector<16x64xf32>
    %108 = tpu.matmul %105, %107, %cst_89 {dimension_numbers = #tpu.dot_dimension_numbers<[1], [0], [0], [1], [0, 0, 1, 1], [], []>} : vector<16x56xf32>, vector<56x64xf32>, vector<16x64xf32> -> vector<16x64xf32>
    %109 = arith.addf %98, %108 : vector<16x64xf32>
    %c2_90 = arith.constant 2 : index
    %c0_91 = arith.constant 0 : index
    %c0_92 = arith.constant 0 : index
    %110 = vector.load %arg11[%c2_90, %c0_91, %c0_92] : memref<4x56x64xf32, #tpu.memory_space<vmem>>, vector<1x56x64xf32>
    %111 = vector.shape_cast %110 : vector<1x56x64xf32> to vector<56x64xf32>
    %cst_93 = arith.constant dense<0.000000e+00> : vector<16x64xf32>
    %112 = tpu.matmul %105, %111, %cst_93 {dimension_numbers = #tpu.dot_dimension_numbers<[1], [0], [0], [1], [0, 0, 1, 1], [], []>} : vector<16x56xf32>, vector<56x64xf32>, vector<16x64xf32> -> vector<16x64xf32>
    %113 = arith.addf %102, %112 : vector<16x64xf32>
    %c3_94 = arith.constant 3 : index
    %c0_95 = arith.constant 0 : index
    %c0_96 = arith.constant 0 : index
    %114 = vector.load %arg9[%c3_94, %c0_95, %c0_96] : memref<4x16x14xf32, #tpu.memory_space<vmem>>, vector<1x16x14xf32>
    %115 = vector.shape_cast %114 : vector<1x16x14xf32> to vector<16x14xf32>
    %cst_97 = arith.constant dense<0.000000e+00> : vector<16x56xf32>
    %116 = tpu.matmul %115, %78, %cst_97 {dimension_numbers = #tpu.dot_dimension_numbers<[1], [0], [0], [1], [0, 0, 1, 1], [], []>} : vector<16x14xf32>, vector<14x56xf32>, vector<16x56xf32> -> vector<16x56xf32>
    %c3_98 = arith.constant 3 : index
    %c0_99 = arith.constant 0 : index
    %c0_100 = arith.constant 0 : index
    %117 = vector.load %arg10[%c3_98, %c0_99, %c0_100] : memref<4x56x64xf32, #tpu.memory_space<vmem>>, vector<1x56x64xf32>
    %118 = vector.shape_cast %117 : vector<1x56x64xf32> to vector<56x64xf32>
    %cst_101 = arith.constant dense<0.000000e+00> : vector<16x64xf32>
    %119 = tpu.matmul %116, %118, %cst_101 {dimension_numbers = #tpu.dot_dimension_numbers<[1], [0], [0], [1], [0, 0, 1, 1], [], []>} : vector<16x56xf32>, vector<56x64xf32>, vector<16x64xf32> -> vector<16x64xf32>
    %120 = arith.addf %109, %119 : vector<16x64xf32>
    %c3_102 = arith.constant 3 : index
    %c0_103 = arith.constant 0 : index
    %c0_104 = arith.constant 0 : index
    %121 = vector.load %arg11[%c3_102, %c0_103, %c0_104] : memref<4x56x64xf32, #tpu.memory_space<vmem>>, vector<1x56x64xf32>
    %122 = vector.shape_cast %121 : vector<1x56x64xf32> to vector<56x64xf32>
    %cst_105 = arith.constant dense<0.000000e+00> : vector<16x64xf32>
    %123 = tpu.matmul %116, %122, %cst_105 {dimension_numbers = #tpu.dot_dimension_numbers<[1], [0], [0], [1], [0, 0, 1, 1], [], []>} : vector<16x56xf32>, vector<56x64xf32>, vector<16x64xf32> -> vector<16x64xf32>
    %124 = arith.addf %113, %123 : vector<16x64xf32>
    %125 = arith.maximumf %120, %124 : vector<16x64xf32>
    %c0_106 = arith.constant 0 : index
    %c0_107 = arith.constant 0 : index
    %126 = vector.load %arg12[%c0_106, %c0_107] : memref<1x64xf32, #tpu.memory_space<vmem>>, vector<1x64xf32>
    %127 = vector.broadcast %126 : vector<1x64xf32> to vector<16x64xf32>
    %128 = arith.addf %125, %127 : vector<16x64xf32>
    %cst_108 = arith.constant 0.000000e+00 : f32
    %129 = vector.broadcast %cst_108 : f32 to vector<2x32xf32>
    %c0_109 = arith.constant 0 : index
    %c0_110 = arith.constant 0 : index
    %130 = vector.load %arg16[%c0_109, %c0_110] : memref<1x32xf32, #tpu.memory_space<vmem>>, vector<1x32xf32>
    %131 = vector.broadcast %130 : vector<1x32xf32> to vector<2x32xf32>
    %132 = arith.addf %129, %131 : vector<2x32xf32>
    %c0_111 = arith.constant 0 : index
    %c0_112 = arith.constant 0 : index
    %c0_113 = arith.constant 0 : index
    %133 = vector.load %arg13[%c0_111, %c0_112, %c0_113] : memref<4x2x16xf32, #tpu.memory_space<vmem>>, vector<1x2x16xf32>
    %134 = vector.shape_cast %133 : vector<1x2x16xf32> to vector<2x16xf32>
    %cst_114 = arith.constant dense<0.000000e+00> : vector<2x64xf32>
    %135 = tpu.matmul %134, %128, %cst_114 {dimension_numbers = #tpu.dot_dimension_numbers<[1], [0], [0], [1], [0, 0, 1, 1], [], []>} : vector<2x16xf32>, vector<16x64xf32>, vector<2x64xf32> -> vector<2x64xf32>
    %c0_115 = arith.constant 0 : index
    %c0_116 = arith.constant 0 : index
    %c0_117 = arith.constant 0 : index
    %136 = vector.load %arg14[%c0_115, %c0_116, %c0_117] : memref<4x2x16xf32, #tpu.memory_space<vmem>>, vector<1x2x16xf32>
    %137 = vector.shape_cast %136 : vector<1x2x16xf32> to vector<2x16xf32>
    %cst_118 = arith.constant dense<0.000000e+00> : vector<2x64xf32>
    %138 = tpu.matmul %137, %128, %cst_118 {dimension_numbers = #tpu.dot_dimension_numbers<[1], [0], [0], [1], [0, 0, 1, 1], [], []>} : vector<2x16xf32>, vector<16x64xf32>, vector<2x64xf32> -> vector<2x64xf32>
    %139 = arith.maximumf %135, %138 : vector<2x64xf32>
    %cst_119 = arith.constant 0.000000e+00 : f32
    %140 = vector.broadcast %cst_119 : f32 to vector<2x64xf32>
    %141 = arith.maximumf %139, %140 : vector<2x64xf32>
    %c0_120 = arith.constant 0 : index
    %c0_121 = arith.constant 0 : index
    %c0_122 = arith.constant 0 : index
    %142 = vector.load %arg15[%c0_120, %c0_121, %c0_122] : memref<4x64x32xf32, #tpu.memory_space<vmem>>, vector<1x64x32xf32>
    %143 = vector.shape_cast %142 : vector<1x64x32xf32> to vector<64x32xf32>
    %cst_123 = arith.constant dense<0.000000e+00> : vector<2x32xf32>
    %144 = tpu.matmul %141, %143, %cst_123 {dimension_numbers = #tpu.dot_dimension_numbers<[1], [0], [0], [1], [0, 0, 1, 1], [], []>} : vector<2x64xf32>, vector<64x32xf32>, vector<2x32xf32> -> vector<2x32xf32>
    %145 = arith.addf %132, %144 : vector<2x32xf32>
    %c1_124 = arith.constant 1 : index
    %c0_125 = arith.constant 0 : index
    %c0_126 = arith.constant 0 : index
    %146 = vector.load %arg13[%c1_124, %c0_125, %c0_126] : memref<4x2x16xf32, #tpu.memory_space<vmem>>, vector<1x2x16xf32>
    %147 = vector.shape_cast %146 : vector<1x2x16xf32> to vector<2x16xf32>
    %cst_127 = arith.constant dense<0.000000e+00> : vector<2x64xf32>
    %148 = tpu.matmul %147, %128, %cst_127 {dimension_numbers = #tpu.dot_dimension_numbers<[1], [0], [0], [1], [0, 0, 1, 1], [], []>} : vector<2x16xf32>, vector<16x64xf32>, vector<2x64xf32> -> vector<2x64xf32>
    %c1_128 = arith.constant 1 : index
    %c0_129 = arith.constant 0 : index
    %c0_130 = arith.constant 0 : index
    %149 = vector.load %arg14[%c1_128, %c0_129, %c0_130] : memref<4x2x16xf32, #tpu.memory_space<vmem>>, vector<1x2x16xf32>
    %150 = vector.shape_cast %149 : vector<1x2x16xf32> to vector<2x16xf32>
    %cst_131 = arith.constant dense<0.000000e+00> : vector<2x64xf32>
    %151 = tpu.matmul %150, %128, %cst_131 {dimension_numbers = #tpu.dot_dimension_numbers<[1], [0], [0], [1], [0, 0, 1, 1], [], []>} : vector<2x16xf32>, vector<16x64xf32>, vector<2x64xf32> -> vector<2x64xf32>
    %152 = arith.maximumf %148, %151 : vector<2x64xf32>
    %cst_132 = arith.constant 0.000000e+00 : f32
    %153 = vector.broadcast %cst_132 : f32 to vector<2x64xf32>
    %154 = arith.maximumf %152, %153 : vector<2x64xf32>
    %c1_133 = arith.constant 1 : index
    %c0_134 = arith.constant 0 : index
    %c0_135 = arith.constant 0 : index
    %155 = vector.load %arg15[%c1_133, %c0_134, %c0_135] : memref<4x64x32xf32, #tpu.memory_space<vmem>>, vector<1x64x32xf32>
    %156 = vector.shape_cast %155 : vector<1x64x32xf32> to vector<64x32xf32>
    %cst_136 = arith.constant dense<0.000000e+00> : vector<2x32xf32>
    %157 = tpu.matmul %154, %156, %cst_136 {dimension_numbers = #tpu.dot_dimension_numbers<[1], [0], [0], [1], [0, 0, 1, 1], [], []>} : vector<2x64xf32>, vector<64x32xf32>, vector<2x32xf32> -> vector<2x32xf32>
    %158 = arith.addf %145, %157 : vector<2x32xf32>
    %c2_137 = arith.constant 2 : index
    %c0_138 = arith.constant 0 : index
    %c0_139 = arith.constant 0 : index
    %159 = vector.load %arg13[%c2_137, %c0_138, %c0_139] : memref<4x2x16xf32, #tpu.memory_space<vmem>>, vector<1x2x16xf32>
    %160 = vector.shape_cast %159 : vector<1x2x16xf32> to vector<2x16xf32>
    %cst_140 = arith.constant dense<0.000000e+00> : vector<2x64xf32>
    %161 = tpu.matmul %160, %128, %cst_140 {dimension_numbers = #tpu.dot_dimension_numbers<[1], [0], [0], [1], [0, 0, 1, 1], [], []>} : vector<2x16xf32>, vector<16x64xf32>, vector<2x64xf32> -> vector<2x64xf32>
    %c2_141 = arith.constant 2 : index
    %c0_142 = arith.constant 0 : index
    %c0_143 = arith.constant 0 : index
    %162 = vector.load %arg14[%c2_141, %c0_142, %c0_143] : memref<4x2x16xf32, #tpu.memory_space<vmem>>, vector<1x2x16xf32>
    %163 = vector.shape_cast %162 : vector<1x2x16xf32> to vector<2x16xf32>
    %cst_144 = arith.constant dense<0.000000e+00> : vector<2x64xf32>
    %164 = tpu.matmul %163, %128, %cst_144 {dimension_numbers = #tpu.dot_dimension_numbers<[1], [0], [0], [1], [0, 0, 1, 1], [], []>} : vector<2x16xf32>, vector<16x64xf32>, vector<2x64xf32> -> vector<2x64xf32>
    %165 = arith.maximumf %161, %164 : vector<2x64xf32>
    %cst_145 = arith.constant 0.000000e+00 : f32
    %166 = vector.broadcast %cst_145 : f32 to vector<2x64xf32>
    %167 = arith.maximumf %165, %166 : vector<2x64xf32>
    %c2_146 = arith.constant 2 : index
    %c0_147 = arith.constant 0 : index
    %c0_148 = arith.constant 0 : index
    %168 = vector.load %arg15[%c2_146, %c0_147, %c0_148] : memref<4x64x32xf32, #tpu.memory_space<vmem>>, vector<1x64x32xf32>
    %169 = vector.shape_cast %168 : vector<1x64x32xf32> to vector<64x32xf32>
    %cst_149 = arith.constant dense<0.000000e+00> : vector<2x32xf32>
    %170 = tpu.matmul %167, %169, %cst_149 {dimension_numbers = #tpu.dot_dimension_numbers<[1], [0], [0], [1], [0, 0, 1, 1], [], []>} : vector<2x64xf32>, vector<64x32xf32>, vector<2x32xf32> -> vector<2x32xf32>
    %171 = arith.addf %158, %170 : vector<2x32xf32>
    %c3_150 = arith.constant 3 : index
    %c0_151 = arith.constant 0 : index
    %c0_152 = arith.constant 0 : index
    %172 = vector.load %arg13[%c3_150, %c0_151, %c0_152] : memref<4x2x16xf32, #tpu.memory_space<vmem>>, vector<1x2x16xf32>
    %173 = vector.shape_cast %172 : vector<1x2x16xf32> to vector<2x16xf32>
    %cst_153 = arith.constant dense<0.000000e+00> : vector<2x64xf32>
    %174 = tpu.matmul %173, %128, %cst_153 {dimension_numbers = #tpu.dot_dimension_numbers<[1], [0], [0], [1], [0, 0, 1, 1], [], []>} : vector<2x16xf32>, vector<16x64xf32>, vector<2x64xf32> -> vector<2x64xf32>
    %c3_154 = arith.constant 3 : index
    %c0_155 = arith.constant 0 : index
    %c0_156 = arith.constant 0 : index
    %175 = vector.load %arg14[%c3_154, %c0_155, %c0_156] : memref<4x2x16xf32, #tpu.memory_space<vmem>>, vector<1x2x16xf32>
    %176 = vector.shape_cast %175 : vector<1x2x16xf32> to vector<2x16xf32>
    %cst_157 = arith.constant dense<0.000000e+00> : vector<2x64xf32>
    %177 = tpu.matmul %176, %128, %cst_157 {dimension_numbers = #tpu.dot_dimension_numbers<[1], [0], [0], [1], [0, 0, 1, 1], [], []>} : vector<2x16xf32>, vector<16x64xf32>, vector<2x64xf32> -> vector<2x64xf32>
    %178 = arith.maximumf %174, %177 : vector<2x64xf32>
    %cst_158 = arith.constant 0.000000e+00 : f32
    %179 = vector.broadcast %cst_158 : f32 to vector<2x64xf32>
    %180 = arith.maximumf %178, %179 : vector<2x64xf32>
    %c3_159 = arith.constant 3 : index
    %c0_160 = arith.constant 0 : index
    %c0_161 = arith.constant 0 : index
    %181 = vector.load %arg15[%c3_159, %c0_160, %c0_161] : memref<4x64x32xf32, #tpu.memory_space<vmem>>, vector<1x64x32xf32>
    %182 = vector.shape_cast %181 : vector<1x64x32xf32> to vector<64x32xf32>
    %cst_162 = arith.constant dense<0.000000e+00> : vector<2x32xf32>
    %183 = tpu.matmul %180, %182, %cst_162 {dimension_numbers = #tpu.dot_dimension_numbers<[1], [0], [0], [1], [0, 0, 1, 1], [], []>} : vector<2x64xf32>, vector<64x32xf32>, vector<2x32xf32> -> vector<2x32xf32>
    %184 = arith.addf %171, %183 : vector<2x32xf32>
    %cst_163 = arith.constant 0.000000e+00 : f32
    %185 = vector.broadcast %cst_163 : f32 to vector<2x32xf32>
    %186 = arith.maximumf %184, %185 : vector<2x32xf32>
    %c0_164 = arith.constant 0 : index
    %c0_165 = arith.constant 0 : index
    %187 = vector.load %arg17[%c0_164, %c0_165] : memref<32x20xf32, #tpu.memory_space<vmem>>, vector<32x20xf32>
    %cst_166 = arith.constant dense<0.000000e+00> : vector<2x20xf32>
    %188 = tpu.matmul %186, %187, %cst_166 {dimension_numbers = #tpu.dot_dimension_numbers<[1], [0], [0], [1], [0, 0, 1, 1], [], []>} : vector<2x32xf32>, vector<32x20xf32>, vector<2x20xf32> -> vector<2x20xf32>
    %c0_167 = arith.constant 0 : index
    %c0_168 = arith.constant 0 : index
    %189 = vector.load %arg18[%c0_167, %c0_168] : memref<1x20xf32, #tpu.memory_space<vmem>>, vector<1x20xf32>
    %190 = vector.broadcast %189 : vector<1x20xf32> to vector<2x20xf32>
    %191 = arith.addf %188, %190 : vector<2x20xf32>
    %c0_169 = arith.constant 0 : index
    %c0_170 = arith.constant 0 : index
    %192 = vector.load %arg19[%c0_169, %c0_170] : memref<2x20xf32, #tpu.memory_space<vmem>>, vector<2x20xf32>
    tpu.vector_store %arg19[%c0_169, %c0_170], %191 {strides = array<i32>} : memref<2x20xf32, #tpu.memory_space<vmem>>, vector<2x20xf32>,
    return
  }
}

</mosaic_0001>

<llo_original>
// kernel: naive_subnet_forward.1
$region0: #{naive_subnet_forward.1}
  #allocation0 [shape = 'u32[]', space=smem, size = 0x4, offset = 0x4, fixed_abs, tag = 'smem constant byte address 0x4 - core index']
  #allocation1 [shape = 'u32[144,128]{1,0:T(1,128)}', space=vmem, size = 0x12000, scoped, tag = 'internal scratch']
  %s0 = inlined_call_operand.vmem [shape: f32[40,36], index: 0, kind: input, shape index: {}]
  %s1 = inlined_call_operand.vmem [shape: f32[4,36,56], index: 1, kind: input, shape index: {}]
  %s2 = inlined_call_operand.vmem [shape: f32[4,36,56], index: 2, kind: input, shape index: {}]
  %s3 = inlined_call_operand.vmem [shape: f32[1,56], index: 3, kind: input, shape index: {}]
  %s4 = inlined_call_operand.vmem [shape: f32[14,36], index: 4, kind: input, shape index: {}]
  %s5 = inlined_call_operand.vmem [shape: f32[14,36], index: 5, kind: input, shape index: {}]
  %s6 = inlined_call_operand.vmem [shape: f32[56,56], index: 6, kind: input, shape index: {}]
  %s7 = inlined_call_operand.vmem [shape: f32[1,56], index: 7, kind: input, shape index: {}]
  %s8 = inlined_call_operand.vmem [shape: f32[1,56], index: 8, kind: input, shape index: {}]
  %s9 = inlined_call_operand.vmem [shape: f32[4,16,14], index: 9, kind: input, shape index: {}]
  %s10 = inlined_call_operand.vmem [shape: f32[4,56,64], index: 10, kind: input, shape index: {}]
  %s11 = inlined_call_operand.vmem [shape: f32[4,56,64], index: 11, kind: input, shape index: {}]
  %s12 = inlined_call_operand.vmem [shape: f32[1,64], index: 12, kind: input, shape index: {}]
  %s13 = inlined_call_operand.vmem [shape: f32[4,2,16], index: 13, kind: input, shape index: {}]
  %s14 = inlined_call_operand.vmem [shape: f32[4,2,16], index: 14, kind: input, shape index: {}]
  %s15 = inlined_call_operand.vmem [shape: f32[4,64,32], index: 15, kind: input, shape index: {}]
  %s16 = inlined_call_operand.vmem [shape: f32[1,32], index: 16, kind: input, shape index: {}]
  %s17 = inlined_call_operand.vmem [shape: f32[32,20], index: 17, kind: input, shape index: {}]
  %s18 = inlined_call_operand.vmem [shape: f32[1,20], index: 18, kind: input, shape index: {}]
  %s19 = inlined_call_operand.vmem [shape: f32[2,20], index: 19, kind: output, shape index: {}]
  %s20 = sld [smem:[#allocation0]]
  $region86: #{naive_subnet_forward.1} parent=0
    _
  %s22 = ssub.s32 1, %s20
  %s23 = scalar_select 0, %s22, %s20
  // Predicated region
  $region2: #{naive_subnet_forward.1} parent=0 // pred_check
    _
  $region3: #{naive_subnet_forward.1} parent=0 // pred_check_branch
    %25 = sbr.rel (0) target = $region5
  $region4: #{naive_subnet_forward.1} parent=0 // pred_region
    _
  $region5: #{naive_subnet_forward.1} parent=0 // pred_fallthru
    _
  // Predicated region
  $region6: #{naive_subnet_forward.1} parent=0 // pred_check
    _
  $region7: #{naive_subnet_forward.1} parent=0 // pred_check_branch
    %27 = sbr.rel (0) target = $region9
  $region8: #{naive_subnet_forward.1} parent=0 // pred_region
    _
  $region9: #{naive_subnet_forward.1} parent=0 // pred_fallthru
    _
  // Predicated region
  $region10: #{naive_subnet_forward.1} parent=0 // pred_check
    _
  $region11: #{naive_subnet_forward.1} parent=0 // pred_check_branch
    %29 = sbr.rel (0) target = $region13
  $region12: #{naive_subnet_forward.1} parent=0 // pred_region
    _
  $region13: #{naive_subnet_forward.1} parent=0 // pred_fallthru
    _
  // Predicated region
  $region14: #{naive_subnet_forward.1} parent=0 // pred_check
    _
  $region15: #{naive_subnet_forward.1} parent=0 // pred_check_branch
    %31 = sbr.rel (0) target = $region17
  $region16: #{naive_subnet_forward.1} parent=0 // pred_region
    _
  $region17: #{naive_subnet_forward.1} parent=0 // pred_fallthru
    _
  // Predicated region
  $region18: #{naive_subnet_forward.1} parent=0 // pred_check
    _
  $region19: #{naive_subnet_forward.1} parent=0 // pred_check_branch
    %33 = sbr.rel (0) target = $region21
  $region20: #{naive_subnet_forward.1} parent=0 // pred_region
    _
  $region21: #{naive_subnet_forward.1} parent=0 // pred_fallthru
    _
  // Predicated region
  $region22: #{naive_subnet_forward.1} parent=0 // pred_check
    _
  $region23: #{naive_subnet_forward.1} parent=0 // pred_check_branch
    %35 = sbr.rel (0) target = $region25
  $region24: #{naive_subnet_forward.1} parent=0 // pred_region
    _
  $region25: #{naive_subnet_forward.1} parent=0 // pred_fallthru
    _
  // Predicated region
  $region26: #{naive_subnet_forward.1} parent=0 // pred_check
    _
  $region27: #{naive_subnet_forward.1} parent=0 // pred_check_branch
    %37 = sbr.rel (0) target = $region29
  $region28: #{naive_subnet_forward.1} parent=0 // pred_region
    _
  $region29: #{naive_subnet_forward.1} parent=0 // pred_fallthru
    _
  // Predicated region
  $region30: #{naive_subnet_forward.1} parent=0 // pred_check
    _
  $region31: #{naive_subnet_forward.1} parent=0 // pred_check_branch
    %39 = sbr.rel (0) target = $region33
  $region32: #{naive_subnet_forward.1} parent=0 // pred_region
    _
  $region33: #{naive_subnet_forward.1} parent=0 // pred_fallthru
    _
  // Predicated region
  $region34: #{naive_subnet_forward.1} parent=0 // pred_check
    _
  $region35: #{naive_subnet_forward.1} parent=0 // pred_check_branch
    %41 = sbr.rel (0) target = $region37
  $region36: #{naive_subnet_forward.1} parent=0 // pred_region
    _
  $region37: #{naive_subnet_forward.1} parent=0 // pred_fallthru
    _
  // Predicated region
  $region38: #{naive_subnet_forward.1} parent=0 // pred_check
    _
  $region39: #{naive_subnet_forward.1} parent=0 // pred_check_branch
    %43 = sbr.rel (0) target = $region41
  $region40: #{naive_subnet_forward.1} parent=0 // pred_region
    _
  $region41: #{naive_subnet_forward.1} parent=0 // pred_fallthru
    _
  // Predicated region
  $region42: #{naive_subnet_forward.1} parent=0 // pred_check
    _
  $region43: #{naive_subnet_forward.1} parent=0 // pred_check_branch
    %45 = sbr.rel (0) target = $region45
  $region44: #{naive_subnet_forward.1} parent=0 // pred_region
    _
  $region45: #{naive_subnet_forward.1} parent=0 // pred_fallthru
    _
  // Predicated region
  $region46: #{naive_subnet_forward.1} parent=0 // pred_check
    _
  $region47: #{naive_subnet_forward.1} parent=0 // pred_check_branch
    %47 = sbr.rel (0) target = $region49
  $region48: #{naive_subnet_forward.1} parent=0 // pred_region
    _
  $region49: #{naive_subnet_forward.1} parent=0 // pred_fallthru
    _
  // Predicated region
  $region50: #{naive_subnet_forward.1} parent=0 // pred_check
    _
  $region51: #{naive_subnet_forward.1} parent=0 // pred_check_branch
    %49 = sbr.rel (0) target = $region53
  $region52: #{naive_subnet_forward.1} parent=0 // pred_region
    _
  $region53: #{naive_subnet_forward.1} parent=0 // pred_fallthru
    _
  // Predicated region
  $region54: #{naive_subnet_forward.1} parent=0 // pred_check
    _
  $region55: #{naive_subnet_forward.1} parent=0 // pred_check_branch
    %51 = sbr.rel (0) target = $region57
  $region56: #{naive_subnet_forward.1} parent=0 // pred_region
    _
  $region57: #{naive_subnet_forward.1} parent=0 // pred_fallthru
    _
  // Predicated region
  $region58: #{naive_subnet_forward.1} parent=0 // pred_check
    _
  $region59: #{naive_subnet_forward.1} parent=0 // pred_check_branch
    %53 = sbr.rel (0) target = $region61
  $region60: #{naive_subnet_forward.1} parent=0 // pred_region
    _
  $region61: #{naive_subnet_forward.1} parent=0 // pred_fallthru
    _
  // Predicated region
  $region62: #{naive_subnet_forward.1} parent=0 // pred_check
    _
  $region63: #{naive_subnet_forward.1} parent=0 // pred_check_branch
    %55 = sbr.rel (0) target = $region65
  $region64: #{naive_subnet_forward.1} parent=0 // pred_region
    _
  $region65: #{naive_subnet_forward.1} parent=0 // pred_fallthru
    _
  // Predicated region
  $region66: #{naive_subnet_forward.1} parent=0 // pred_check
    _
  $region67: #{naive_subnet_forward.1} parent=0 // pred_check_branch
    %57 = sbr.rel (0) target = $region69
  $region68: #{naive_subnet_forward.1} parent=0 // pred_region
    _
  $region69: #{naive_subnet_forward.1} parent=0 // pred_fallthru
    _
  // Predicated region
  $region70: #{naive_subnet_forward.1} parent=0 // pred_check
    _
  $region71: #{naive_subnet_forward.1} parent=0 // pred_check_branch
    %59 = sbr.rel (0) target = $region73
  $region72: #{naive_subnet_forward.1} parent=0 // pred_region
    _
  $region73: #{naive_subnet_forward.1} parent=0 // pred_fallthru
    _
  // Predicated region
  $region74: #{naive_subnet_forward.1} parent=0 // pred_check
    _
  $region75: #{naive_subnet_forward.1} parent=0 // pred_check_branch
    %61 = sbr.rel (0) target = $region77
  $region76: #{naive_subnet_forward.1} parent=0 // pred_region
    _
  $region77: #{naive_subnet_forward.1} parent=0 // pred_fallthru
    _
  %v62 = vld [vmem:[%s0] sm:$0xff]
  %v63 = vld [vmem:[%s0 + $0x8] sm:$0xff]
  %v64 = vld [vmem:[%s0 + $0x10] sm:$0xff]
  %v65 = vld [vmem:[%s0 + $0x18] sm:$0xff]
  %v66 = vld [vmem:[%s0 + $0x20] sm:$0xff]
  %v67 = vld [vmem:[%s1] sm:$0xff]
  %v68 = vld [vmem:[%s1 + $0x8] sm:$0xff]
  %v69 = vld [vmem:[%s1 + $0x10] sm:$0xff]
  %v70 = vld [vmem:[%s1 + $0x18] sm:$0xff]
  %v71 = vld [vmem:[%s1 + $0x20] sm:$0xf]
  %v72 = vld [vmem:[%s2] sm:$0xff]
  %v73 = vld [vmem:[%s2 + $0x8] sm:$0xff]
  %v74 = vld [vmem:[%s2 + $0x10] sm:$0xff]
  %v75 = vld [vmem:[%s2 + $0x18] sm:$0xff]
  %v76 = vld [vmem:[%s2 + $0x20] sm:$0xf]
  %s77 = scalar_lea.vmem %s1, 40
  %v78 = vld [vmem:[%s77] sm:$0xff]
  %v79 = vld [vmem:[%s77 + $0x8] sm:$0xff]
  %v80 = vld [vmem:[%s77 + $0x10] sm:$0xff]
  %v81 = vld [vmem:[%s77 + $0x18] sm:$0xff]
  %v82 = vld [vmem:[%s77 + $0x20] sm:$0xf]
  %vm88 = vcmask 1046528
  %v89 = vrot.slane %v62, 1
  %v90 = vrot.slane %v63, 1
  %v91 = vsel %vm88, %v89, %v90
  %v92 = vrot.slane %v64, 1
  %v93 = vsel %vm88, %v90, %v92
  %v94 = vrot.slane %v65, 1
  %v95 = vsel %vm88, %v92, %v94
  %v96 = vrot.slane %v66, 1
  %v97 = vsel %vm88, %v94, %v96
  %vm98 = vcmask 293888
  %v99 = vsel %vm98, %v91, 0
  %v101 = vsel %vm98, %v93, 0
  %v103 = vsel %vm98, %v95, 0
  %v105 = vsel %vm98, %v97, 0
  %v107 = vsel %vm98, %v96, 0
  %vm109 = vcmask 1043456
  %v111 = vsel %vm109, %v82, 0
  %113 = vmatprep.subr.mxu0 0.0
  %114 = vmatpush1.msra.mxu0 0.0
  %115 = vmatprep.subr.mxu0 0.0
  %116 = vmatpush1.msra.mxu0 0.0
  %117 = vmatprep.subr.mxu0 0.0
  %118 = vmatpush1.msra.mxu0 0.0
  %119 = vmatprep.subr.mxu0 0.0
  %120 = vmatpush1.msra.mxu0 0.0
  %121 = vmatprep.subr.mxu0 0.0
  %122 = vmatpush1.msra.mxu0 0.0
  %123 = vmatprep.subr.mxu0 0.0
  %124 = vmatpush1.msra.mxu0 0.0
  %125 = vmatprep.subr.mxu0 0.0
  %126 = vmatpush1.msra.mxu0 0.0
  %127 = vmatprep.subr.mxu0 0.0
  %128 = vmatpush1.msra.mxu0 0.0
  %129 = vmatprep.subr.mxu0 0.0
  %130 = vmatpush1.msra.mxu0 0.0
  %131 = vmatprep.subr.mxu0 0.0
  %132 = vmatpush1.msra.mxu0 0.0
  %133 = vmatprep.subr.mxu0 0.0
  %134 = vmatpush1.msra.mxu0 0.0
  %135 = vmatprep.subr.mxu0 0.0
  %136 = vmatpush1.msra.mxu0 %v111
  %137 = vmatprep.subr.mxu0 0.0
  %138 = vmatpush1.msra.mxu0 %v81
  %139 = vmatprep.subr.mxu0 0.0
  %140 = vmatpush1.msra.mxu0 %v80
  %141 = vmatprep.subr.mxu0 0.0
  %142 = vmatpush1.msra.mxu0 %v79
  %143 = vmatprep.subr.mxu0 0.0
  %144 = vmatpush1.msra.mxu0 %v78
  %145 = vmatprep.subr.mxu0 0.0
  %146 = vmatpush2.msra.mxu0 0.0
  %147 = vmatprep.subr.mxu0 0.0
  %148 = vmatpush2.msra.mxu0 0.0
  %149 = vmatprep.subr.mxu0 0.0
  %150 = vmatpush2.msra.mxu0 0.0
  %151 = vmatprep.subr.mxu0 0.0
  %152 = vmatpush2.msra.mxu0 0.0
  %153 = vmatprep.subr.mxu0 0.0
  %154 = vmatpush2.msra.mxu0 0.0
  %155 = vmatprep.subr.mxu0 0.0
  %156 = vmatpush2.msra.mxu0 0.0
  %157 = vmatprep.subr.mxu0 0.0
  %158 = vmatpush2.msra.mxu0 0.0
  %159 = vmatprep.subr.mxu0 0.0
  %160 = vmatpush2.msra.mxu0 0.0
  %161 = vmatprep.subr.mxu0 0.0
  %162 = vmatpush2.msra.mxu0 0.0
  %163 = vmatprep.subr.mxu0 0.0
  %164 = vmatpush2.msra.mxu0 0.0
  %165 = vmatprep.subr.mxu0 0.0
  %166 = vmatpush2.msra.mxu0 0.0
  %167 = vmatprep.subr.mxu0 0.0
  %168 = vmatpush2.msra.mxu0 0.0
  %169 = vmatprep.subr.mxu0 0.0
  %170 = vmatpush2.msra.mxu0 0.0
  %171 = vmatprep.subr.mxu0 0.0
  %172 = vmatpush2.msra.mxu0 0.0
  %173 = vmatprep.subr.mxu0 0.0
  %174 = vmatpush2.msra.mxu0 0.0
  %175 = vmatprep.subr.mxu0 0.0
  %176 = vmatpush2.msra.mxu0 0.0
  %177 = vmatprep.mubr.f32.mxu0 0.0
  %178 = vmatmul.mubr.f32.gmra.mxu0 %v99
  %v179 = vpop.f32.mrf.mxu0
  %v180 = vadd.f32 0.0, %v179
  %v181 = vpop.f32.mrf.mxu0
  %182 = vmatprep.mubr.f32.mxu0 0.0
  %183 = vmatmul.mubr.f32.gmra.mxu0 %v101
  %v184 = vpop.f32.mrf.mxu0
  %v185 = vadd.f32 0.0, %v184
  %v186 = vpop.f32.mrf.mxu0
  %187 = vmatprep.mubr.f32.mxu0 0.0
  %188 = vmatmul.mubr.f32.gmra.mxu0 %v103
  %v189 = vpop.f32.mrf.mxu0
  %v190 = vadd.f32 0.0, %v189
  %v191 = vpop.f32.mrf.mxu0
  %192 = vmatprep.mubr.f32.mxu0 0.0
  %193 = vmatmul.mubr.f32.gmra.mxu0 %v105
  %v194 = vpop.f32.mrf.mxu0
  %v195 = vadd.f32 0.0, %v194
  %v196 = vpop.f32.mrf.mxu0
  %197 = vmatprep.mubr.f32.mxu0 0.0
  %198 = vmatmul.mubr.f32.gmra.mxu0 %v107
  %v199 = vpop.f32.mrf.mxu0
  %v200 = vadd.f32 0.0, %v199
  %v201 = vpop.f32.mrf.mxu0
  %202 = vdwg.mxu0
  %v203 = vsel %vm98, %v62, 0
  %v205 = vsel %vm98, %v63, 0
  %v207 = vsel %vm98, %v64, 0
  %v209 = vsel %vm98, %v65, 0
  %v211 = vsel %vm98, %v66, 0
  %v214 = vsel %vm109, %v71, 0
  %216 = vmatprep.subr.mxu0 0.0
  %217 = vmatpush1.msra.mxu0 0.0
  %218 = vmatprep.subr.mxu0 0.0
  %219 = vmatpush1.msra.mxu0 0.0
  %220 = vmatprep.subr.mxu0 0.0
  %221 = vmatpush1.msra.mxu0 0.0
  %222 = vmatprep.subr.mxu0 0.0
  %223 = vmatpush1.msra.mxu0 0.0
  %224 = vmatprep.subr.mxu0 0.0
  %225 = vmatpush1.msra.mxu0 0.0
  %226 = vmatprep.subr.mxu0 0.0
  %227 = vmatpush1.msra.mxu0 0.0
  %228 = vmatprep.subr.mxu0 0.0
  %229 = vmatpush1.msra.mxu0 0.0
  %230 = vmatprep.subr.mxu0 0.0
  %231 = vmatpush1.msra.mxu0 0.0
  %232 = vmatprep.subr.mxu0 0.0
  %233 = vmatpush1.msra.mxu0 0.0
  %234 = vmatprep.subr.mxu0 0.0
  %235 = vmatpush1.msra.mxu0 0.0
  %236 = vmatprep.subr.mxu0 0.0
  %237 = vmatpush1.msra.mxu0 0.0
  %238 = vmatprep.subr.mxu0 0.0
  %239 = vmatpush1.msra.mxu0 %v214
  %240 = vmatprep.subr.mxu0 0.0
  %241 = vmatpush1.msra.mxu0 %v70
  %242 = vmatprep.subr.mxu0 0.0
  %243 = vmatpush1.msra.mxu0 %v69
  %244 = vmatprep.subr.mxu0 0.0
  %245 = vmatpush1.msra.mxu0 %v68
  %246 = vmatprep.subr.mxu0 0.0
  %247 = vmatpush1.msra.mxu0 %v67
  %248 = vmatprep.subr.mxu0 0.0
  %249 = vmatpush2.msra.mxu0 0.0
  %250 = vmatprep.subr.mxu0 0.0
  %251 = vmatpush2.msra.mxu0 0.0
  %252 = vmatprep.subr.mxu0 0.0
  %253 = vmatpush2.msra.mxu0 0.0
  %254 = vmatprep.subr.mxu0 0.0
  %255 = vmatpush2.msra.mxu0 0.0
  %256 = vmatprep.subr.mxu0 0.0
  %257 = vmatpush2.msra.mxu0 0.0
  %258 = vmatprep.subr.mxu0 0.0
  %259 = vmatpush2.msra.mxu0 0.0
  %260 = vmatprep.subr.mxu0 0.0
  %261 = vmatpush2.msra.mxu0 0.0
  %262 = vmatprep.subr.mxu0 0.0
  %263 = vmatpush2.msra.mxu0 0.0
  %264 = vmatprep.subr.mxu0 0.0
  %265 = vmatpush2.msra.mxu0 0.0
  %266 = vmatprep.subr.mxu0 0.0
  %267 = vmatpush2.msra.mxu0 0.0
  %268 = vmatprep.subr.mxu0 0.0
  %269 = vmatpush2.msra.mxu0 0.0
  %270 = vmatprep.subr.mxu0 0.0
  %271 = vmatpush2.msra.mxu0 0.0
  %272 = vmatprep.subr.mxu0 0.0
  %273 = vmatpush2.msra.mxu0 0.0
  %274 = vmatprep.subr.mxu0 0.0
  %275 = vmatpush2.msra.mxu0 0.0
  %276 = vmatprep.subr.mxu0 0.0
  %277 = vmatpush2.msra.mxu0 0.0
  %278 = vmatprep.subr.mxu0 0.0
  %279 = vmatpush2.msra.mxu0 0.0
  %280 = vmatprep.mubr.f32.mxu0 0.0
  %281 = vmatmul.mubr.f32.gmra.mxu0 %v203
  %v282 = vpop.f32.mrf.mxu0
  %v283 = vadd.f32 %v180, %v282
  %v284 = vpop.f32.mrf.mxu0
  %285 = vmatprep.mubr.f32.mxu0 0.0
  %286 = vmatmul.mubr.f32.gmra.mxu0 %v205
  %v287 = vpop.f32.mrf.mxu0
  %v288 = vadd.f32 %v185, %v287
  %v289 = vpop.f32.mrf.mxu0
  %290 = vmatprep.mubr.f32.mxu0 0.0
  %291 = vmatmul.mubr.f32.gmra.mxu0 %v207
  %v292 = vpop.f32.mrf.mxu0
  %v293 = vadd.f32 %v190, %v292
  %v294 = vpop.f32.mrf.mxu0
  %295 = vmatprep.mubr.f32.mxu0 0.0
  %296 = vmatmul.mubr.f32.gmra.mxu0 %v209
  %v297 = vpop.f32.mrf.mxu0
  %v298 = vadd.f32 %v195, %v297
  %v299 = vpop.f32.mrf.mxu0
  %300 = vmatprep.mubr.f32.mxu0 0.0
  %301 = vmatmul.mubr.f32.gmra.mxu0 %v211
  %v302 = vpop.f32.mrf.mxu0
  %v303 = vadd.f32 %v200, %v302
  %v304 = vpop.f32.mrf.mxu0
  %305 = vdwg.mxu0
  %s306 = scalar_lea.vmem %s2, 40
  %v307 = vld [vmem:[%s306] sm:$0xff]
  %v308 = vld [vmem:[%s306 + $0x8] sm:$0xff]
  %v309 = vld [vmem:[%s306 + $0x10] sm:$0xff]
  %v310 = vld [vmem:[%s306 + $0x18] sm:$0xff]
  %v311 = vld [vmem:[%s306 + $0x20] sm:$0xf]
  %v313 = vsel %vm109, %v311, 0
  %315 = vmatprep.subr.mxu0 0.0
  %316 = vmatpush1.msra.mxu0 0.0
  %317 = vmatprep.subr.mxu0 0.0
  %318 = vmatpush1.msra.mxu0 0.0
  %319 = vmatprep.subr.mxu0 0.0
  %320 = vmatpush1.msra.mxu0 0.0
  %321 = vmatprep.subr.mxu0 0.0
  %322 = vmatpush1.msra.mxu0 0.0
  %323 = vmatprep.subr.mxu0 0.0
  %324 = vmatpush1.msra.mxu0 0.0
  %325 = vmatprep.subr.mxu0 0.0
  %326 = vmatpush1.msra.mxu0 0.0
  %327 = vmatprep.subr.mxu0 0.0
  %328 = vmatpush1.msra.mxu0 0.0
  %329 = vmatprep.subr.mxu0 0.0
  %330 = vmatpush1.msra.mxu0 0.0
  %331 = vmatprep.subr.mxu0 0.0
  %332 = vmatpush1.msra.mxu0 0.0
  %333 = vmatprep.subr.mxu0 0.0
  %334 = vmatpush1.msra.mxu0 0.0
  %335 = vmatprep.subr.mxu0 0.0
  %336 = vmatpush1.msra.mxu0 0.0
  %337 = vmatprep.subr.mxu0 0.0
  %338 = vmatpush1.msra.mxu0 %v313
  %339 = vmatprep.subr.mxu0 0.0
  %340 = vmatpush1.msra.mxu0 %v310
  %341 = vmatprep.subr.mxu0 0.0
  %342 = vmatpush1.msra.mxu0 %v309
  %343 = vmatprep.subr.mxu0 0.0
  %344 = vmatpush1.msra.mxu0 %v308
  %345 = vmatprep.subr.mxu0 0.0
  %346 = vmatpush1.msra.mxu0 %v307
  %347 = vmatprep.subr.mxu0 0.0
  %348 = vmatpush2.msra.mxu0 0.0
  %349 = vmatprep.subr.mxu0 0.0
  %350 = vmatpush2.msra.mxu0 0.0
  %351 = vmatprep.subr.mxu0 0.0
  %352 = vmatpush2.msra.mxu0 0.0
  %353 = vmatprep.subr.mxu0 0.0
  %354 = vmatpush2.msra.mxu0 0.0
  %355 = vmatprep.subr.mxu0 0.0
  %356 = vmatpush2.msra.mxu0 0.0
  %357 = vmatprep.subr.mxu0 0.0
  %358 = vmatpush2.msra.mxu0 0.0
  %359 = vmatprep.subr.mxu0 0.0
  %360 = vmatpush2.msra.mxu0 0.0
  %361 = vmatprep.subr.mxu0 0.0
  %362 = vmatpush2.msra.mxu0 0.0
  %363 = vmatprep.subr.mxu0 0.0
  %364 = vmatpush2.msra.mxu0 0.0
  %365 = vmatprep.subr.mxu0 0.0
  %366 = vmatpush2.msra.mxu0 0.0
  %367 = vmatprep.subr.mxu0 0.0
  %368 = vmatpush2.msra.mxu0 0.0
  %369 = vmatprep.subr.mxu0 0.0
  %370 = vmatpush2.msra.mxu0 0.0
  %371 = vmatprep.subr.mxu0 0.0
  %372 = vmatpush2.msra.mxu0 0.0
  %373 = vmatprep.subr.mxu0 0.0
  %374 = vmatpush2.msra.mxu0 0.0
  %375 = vmatprep.subr.mxu0 0.0
  %376 = vmatpush2.msra.mxu0 0.0
  %377 = vmatprep.subr.mxu0 0.0
  %378 = vmatpush2.msra.mxu0 0.0
  %379 = vmatprep.mubr.f32.mxu0 0.0
  %380 = vmatmul.mubr.f32.gmra.mxu0 %v99
  %v381 = vpop.f32.mrf.mxu0
  %v382 = vadd.f32 0.0, %v381
  %v383 = vpop.f32.mrf.mxu0
  %384 = vmatprep.mubr.f32.mxu0 0.0
  %385 = vmatmul.mubr.f32.gmra.mxu0 %v101
  %v386 = vpop.f32.mrf.mxu0
  %v387 = vadd.f32 0.0, %v386
  %v388 = vpop.f32.mrf.mxu0
  %389 = vmatprep.mubr.f32.mxu0 0.0
  %390 = vmatmul.mubr.f32.gmra.mxu0 %v103
  %v391 = vpop.f32.mrf.mxu0
  %v392 = vadd.f32 0.0, %v391
  %v393 = vpop.f32.mrf.mxu0
  %394 = vmatprep.mubr.f32.mxu0 0.0
  %395 = vmatmul.mubr.f32.gmra.mxu0 %v105
  %v396 = vpop.f32.mrf.mxu0
  %v397 = vadd.f32 0.0, %v396
  %v398 = vpop.f32.mrf.mxu0
  %399 = vmatprep.mubr.f32.mxu0 0.0
  %400 = vmatmul.mubr.f32.gmra.mxu0 %v107
  %v401 = vpop.f32.mrf.mxu0
  %v402 = vadd.f32 0.0, %v401
  %v403 = vpop.f32.mrf.mxu0
  %404 = vdwg.mxu0
  %v406 = vsel %vm109, %v76, 0
  %408 = vmatprep.subr.mxu0 0.0
  %409 = vmatpush1.msra.mxu0 0.0
  %410 = vmatprep.subr.mxu0 0.0
  %411 = vmatpush1.msra.mxu0 0.0
  %412 = vmatprep.subr.mxu0 0.0
  %413 = vmatpush1.msra.mxu0 0.0
  %414 = vmatprep.subr.mxu0 0.0
  %415 = vmatpush1.msra.mxu0 0.0
  %416 = vmatprep.subr.mxu0 0.0
  %417 = vmatpush1.msra.mxu0 0.0
  %418 = vmatprep.subr.mxu0 0.0
  %419 = vmatpush1.msra.mxu0 0.0
  %420 = vmatprep.subr.mxu0 0.0
  %421 = vmatpush1.msra.mxu0 0.0
  %422 = vmatprep.subr.mxu0 0.0
  %423 = vmatpush1.msra.mxu0 0.0
  %424 = vmatprep.subr.mxu0 0.0
  %425 = vmatpush1.msra.mxu0 0.0
  %426 = vmatprep.subr.mxu0 0.0
  %427 = vmatpush1.msra.mxu0 0.0
  %428 = vmatprep.subr.mxu0 0.0
  %429 = vmatpush1.msra.mxu0 0.0
  %430 = vmatprep.subr.mxu0 0.0
  %431 = vmatpush1.msra.mxu0 %v406
  %432 = vmatprep.subr.mxu0 0.0
  %433 = vmatpush1.msra.mxu0 %v75
  %434 = vmatprep.subr.mxu0 0.0
  %435 = vmatpush1.msra.mxu0 %v74
  %436 = vmatprep.subr.mxu0 0.0
  %437 = vmatpush1.msra.mxu0 %v73
  %438 = vmatprep.subr.mxu0 0.0
  %439 = vmatpush1.msra.mxu0 %v72
  %440 = vmatprep.subr.mxu0 0.0
  %441 = vmatpush2.msra.mxu0 0.0
  %442 = vmatprep.subr.mxu0 0.0
  %443 = vmatpush2.msra.mxu0 0.0
  %444 = vmatprep.subr.mxu0 0.0
  %445 = vmatpush2.msra.mxu0 0.0
  %446 = vmatprep.subr.mxu0 0.0
  %447 = vmatpush2.msra.mxu0 0.0
  %448 = vmatprep.subr.mxu0 0.0
  %449 = vmatpush2.msra.mxu0 0.0
  %450 = vmatprep.subr.mxu0 0.0
  %451 = vmatpush2.msra.mxu0 0.0
  %452 = vmatprep.subr.mxu0 0.0
  %453 = vmatpush2.msra.mxu0 0.0
  %454 = vmatprep.subr.mxu0 0.0
  %455 = vmatpush2.msra.mxu0 0.0
  %456 = vmatprep.subr.mxu0 0.0
  %457 = vmatpush2.msra.mxu0 0.0
  %458 = vmatprep.subr.mxu0 0.0
  %459 = vmatpush2.msra.mxu0 0.0
  %460 = vmatprep.subr.mxu0 0.0
  %461 = vmatpush2.msra.mxu0 0.0
  %462 = vmatprep.subr.mxu0 0.0
  %463 = vmatpush2.msra.mxu0 0.0
  %464 = vmatprep.subr.mxu0 0.0
  %465 = vmatpush2.msra.mxu0 0.0
  %466 = vmatprep.subr.mxu0 0.0
  %467 = vmatpush2.msra.mxu0 0.0
  %468 = vmatprep.subr.mxu0 0.0
  %469 = vmatpush2.msra.mxu0 0.0
  %470 = vmatprep.subr.mxu0 0.0
  %471 = vmatpush2.msra.mxu0 0.0
  %472 = vmatprep.mubr.f32.mxu0 0.0
  %473 = vmatmul.mubr.f32.gmra.mxu0 %v203
  %v474 = vpop.f32.mrf.mxu0
  %v475 = vadd.f32 %v382, %v474
  %v476 = vpop.f32.mrf.mxu0
  %477 = vmatprep.mubr.f32.mxu0 0.0
  %478 = vmatmul.mubr.f32.gmra.mxu0 %v205
  %v479 = vpop.f32.mrf.mxu0
  %v480 = vadd.f32 %v387, %v479
  %v481 = vpop.f32.mrf.mxu0
  %482 = vmatprep.mubr.f32.mxu0 0.0
  %483 = vmatmul.mubr.f32.gmra.mxu0 %v207
  %v484 = vpop.f32.mrf.mxu0
  %v485 = vadd.f32 %v392, %v484
  %v486 = vpop.f32.mrf.mxu0
  %487 = vmatprep.mubr.f32.mxu0 0.0
  %488 = vmatmul.mubr.f32.gmra.mxu0 %v209
  %v489 = vpop.f32.mrf.mxu0
  %v490 = vadd.f32 %v397, %v489
  %v491 = vpop.f32.mrf.mxu0
  %492 = vmatprep.mubr.f32.mxu0 0.0
  %493 = vmatmul.mubr.f32.gmra.mxu0 %v211
  %v494 = vpop.f32.mrf.mxu0
  %v495 = vadd.f32 %v402, %v494
  %v496 = vpop.f32.mrf.mxu0
  %497 = vdwg.mxu0
  %s498 = scalar_lea.vmem %s1, 80
  %v499 = vld [vmem:[%s498] sm:$0xff]
  %v500 = vld [vmem:[%s498 + $0x8] sm:$0xff]
  %v501 = vld [vmem:[%s498 + $0x10] sm:$0xff]
  %v502 = vld [vmem:[%s498 + $0x18] sm:$0xff]
  %v503 = vld [vmem:[%s498 + $0x20] sm:$0xf]
  %vm504 = vcmask 1045504
  %v505 = vrot.slane %v62, 2
  %v506 = vrot.slane %v63, 2
  %v507 = vsel %vm504, %v505, %v506
  %v508 = vrot.slane %v64, 2
  %v509 = vsel %vm504, %v506, %v508
  %v510 = vrot.slane %v65, 2
  %v511 = vsel %vm504, %v508, %v510
  %v512 = vrot.slane %v66, 2
  %v513 = vsel %vm504, %v510, %v512
  %v514 = vsel %vm98, %v507, 0
  %v516 = vsel %vm98, %v509, 0
  %v518 = vsel %vm98, %v511, 0
  %v520 = vsel %vm98, %v513, 0
  %v522 = vsel %vm98, %v512, 0
  %v525 = vsel %vm109, %v503, 0
  %527 = vmatprep.subr.mxu0 0.0
  %528 = vmatpush1.msra.mxu0 0.0
  %529 = vmatprep.subr.mxu0 0.0
  %530 = vmatpush1.msra.mxu0 0.0
  %531 = vmatprep.subr.mxu0 0.0
  %532 = vmatpush1.msra.mxu0 0.0
  %533 = vmatprep.subr.mxu0 0.0
  %534 = vmatpush1.msra.mxu0 0.0
  %535 = vmatprep.subr.mxu0 0.0
  %536 = vmatpush1.msra.mxu0 0.0
  %537 = vmatprep.subr.mxu0 0.0
  %538 = vmatpush1.msra.mxu0 0.0
  %539 = vmatprep.subr.mxu0 0.0
  %540 = vmatpush1.msra.mxu0 0.0
  %541 = vmatprep.subr.mxu0 0.0
  %542 = vmatpush1.msra.mxu0 0.0
  %543 = vmatprep.subr.mxu0 0.0
  %544 = vmatpush1.msra.mxu0 0.0
  %545 = vmatprep.subr.mxu0 0.0
  %546 = vmatpush1.msra.mxu0 0.0
  %547 = vmatprep.subr.mxu0 0.0
  %548 = vmatpush1.msra.mxu0 0.0
  %549 = vmatprep.subr.mxu0 0.0
  %550 = vmatpush1.msra.mxu0 %v525
  %551 = vmatprep.subr.mxu0 0.0
  %552 = vmatpush1.msra.mxu0 %v502
  %553 = vmatprep.subr.mxu0 0.0
  %554 = vmatpush1.msra.mxu0 %v501
  %555 = vmatprep.subr.mxu0 0.0
  %556 = vmatpush1.msra.mxu0 %v500
  %557 = vmatprep.subr.mxu0 0.0
  %558 = vmatpush1.msra.mxu0 %v499
  %559 = vmatprep.subr.mxu0 0.0
  %560 = vmatpush2.msra.mxu0 0.0
  %561 = vmatprep.subr.mxu0 0.0
  %562 = vmatpush2.msra.mxu0 0.0
  %563 = vmatprep.subr.mxu0 0.0
  %564 = vmatpush2.msra.mxu0 0.0
  %565 = vmatprep.subr.mxu0 0.0
  %566 = vmatpush2.msra.mxu0 0.0
  %567 = vmatprep.subr.mxu0 0.0
  %568 = vmatpush2.msra.mxu0 0.0
  %569 = vmatprep.subr.mxu0 0.0
  %570 = vmatpush2.msra.mxu0 0.0
  %571 = vmatprep.subr.mxu0 0.0
  %572 = vmatpush2.msra.mxu0 0.0
  %573 = vmatprep.subr.mxu0 0.0
  %574 = vmatpush2.msra.mxu0 0.0
  %575 = vmatprep.subr.mxu0 0.0
  %576 = vmatpush2.msra.mxu0 0.0
  %577 = vmatprep.subr.mxu0 0.0
  %578 = vmatpush2.msra.mxu0 0.0
  %579 = vmatprep.subr.mxu0 0.0
  %580 = vmatpush2.msra.mxu0 0.0
  %581 = vmatprep.subr.mxu0 0.0
  %582 = vmatpush2.msra.mxu0 0.0
  %583 = vmatprep.subr.mxu0 0.0
  %584 = vmatpush2.msra.mxu0 0.0
  %585 = vmatprep.subr.mxu0 0.0
  %586 = vmatpush2.msra.mxu0 0.0
  %587 = vmatprep.subr.mxu0 0.0
  %588 = vmatpush2.msra.mxu0 0.0
  %589 = vmatprep.subr.mxu0 0.0
  %590 = vmatpush2.msra.mxu0 0.0
  %591 = vmatprep.mubr.f32.mxu0 0.0
  %592 = vmatmul.mubr.f32.gmra.mxu0 %v514
  %v593 = vpop.f32.mrf.mxu0
  %v594 = vadd.f32 0.0, %v593
  %v595 = vpop.f32.mrf.mxu0
  %596 = vmatprep.mubr.f32.mxu0 0.0
  %597 = vmatmul.mubr.f32.gmra.mxu0 %v516
  %v598 = vpop.f32.mrf.mxu0
  %v599 = vadd.f32 0.0, %v598
  %v600 = vpop.f32.mrf.mxu0
  %601 = vmatprep.mubr.f32.mxu0 0.0
  %602 = vmatmul.mubr.f32.gmra.mxu0 %v518
  %v603 = vpop.f32.mrf.mxu0
  %v604 = vadd.f32 0.0, %v603
  %v605 = vpop.f32.mrf.mxu0
  %606 = vmatprep.mubr.f32.mxu0 0.0
  %607 = vmatmul.mubr.f32.gmra.mxu0 %v520
  %v608 = vpop.f32.mrf.mxu0
  %v609 = vadd.f32 0.0, %v608
  %v610 = vpop.f32.mrf.mxu0
  %611 = vmatprep.mubr.f32.mxu0 0.0
  %612 = vmatmul.mubr.f32.gmra.mxu0 %v522
  %v613 = vpop.f32.mrf.mxu0
  %v614 = vadd.f32 0.0, %v613
  %v615 = vpop.f32.mrf.mxu0
  %616 = vdwg.mxu0
  %v617 = vadd.f32 %v283, %v594
  %v618 = vadd.f32 %v288, %v599
  %v619 = vadd.f32 %v293, %v604
  %v620 = vadd.f32 %v298, %v609
  %v621 = vadd.f32 %v303, %v614
  %s622 = scalar_lea.vmem %s2, 80
  %v623 = vld [vmem:[%s622] sm:$0xff]
  %v624 = vld [vmem:[%s622 + $0x8] sm:$0xff]
  %v625 = vld [vmem:[%s622 + $0x10] sm:$0xff]
  %v626 = vld [vmem:[%s622 + $0x18] sm:$0xff]
  %v627 = vld [vmem:[%s622 + $0x20] sm:$0xf]
  %v629 = vsel %vm109, %v627, 0
  %631 = vmatprep.subr.mxu0 0.0
  %632 = vmatpush1.msra.mxu0 0.0
  %633 = vmatprep.subr.mxu0 0.0
  %634 = vmatpush1.msra.mxu0 0.0
  %635 = vmatprep.subr.mxu0 0.0
  %636 = vmatpush1.msra.mxu0 0.0
  %637 = vmatprep.subr.mxu0 0.0
  %638 = vmatpush1.msra.mxu0 0.0
  %639 = vmatprep.subr.mxu0 0.0
  %640 = vmatpush1.msra.mxu0 0.0
  %641 = vmatprep.subr.mxu0 0.0
  %642 = vmatpush1.msra.mxu0 0.0
  %643 = vmatprep.subr.mxu0 0.0
  %644 = vmatpush1.msra.mxu0 0.0
  %645 = vmatprep.subr.mxu0 0.0
  %646 = vmatpush1.msra.mxu0 0.0
  %647 = vmatprep.subr.mxu0 0.0
  %648 = vmatpush1.msra.mxu0 0.0
  %649 = vmatprep.subr.mxu0 0.0
  %650 = vmatpush1.msra.mxu0 0.0
  %651 = vmatprep.subr.mxu0 0.0
  %652 = vmatpush1.msra.mxu0 0.0
  %653 = vmatprep.subr.mxu0 0.0
  %654 = vmatpush1.msra.mxu0 %v629
  %655 = vmatprep.subr.mxu0 0.0
  %656 = vmatpush1.msra.mxu0 %v626
  %657 = vmatprep.subr.mxu0 0.0
  %658 = vmatpush1.msra.mxu0 %v625
  %659 = vmatprep.subr.mxu0 0.0
  %660 = vmatpush1.msra.mxu0 %v624
  %661 = vmatprep.subr.mxu0 0.0
  %662 = vmatpush1.msra.mxu0 %v623
  %663 = vmatprep.subr.mxu0 0.0
  %664 = vmatpush2.msra.mxu0 0.0
  %665 = vmatprep.subr.mxu0 0.0
  %666 = vmatpush2.msra.mxu0 0.0
  %667 = vmatprep.subr.mxu0 0.0
  %668 = vmatpush2.msra.mxu0 0.0
  %669 = vmatprep.subr.mxu0 0.0
  %670 = vmatpush2.msra.mxu0 0.0
  %671 = vmatprep.subr.mxu0 0.0
  %672 = vmatpush2.msra.mxu0 0.0
  %673 = vmatprep.subr.mxu0 0.0
  %674 = vmatpush2.msra.mxu0 0.0
  %675 = vmatprep.subr.mxu0 0.0
  %676 = vmatpush2.msra.mxu0 0.0
  %677 = vmatprep.subr.mxu0 0.0
  %678 = vmatpush2.msra.mxu0 0.0
  %679 = vmatprep.subr.mxu0 0.0
  %680 = vmatpush2.msra.mxu0 0.0
  %681 = vmatprep.subr.mxu0 0.0
  %682 = vmatpush2.msra.mxu0 0.0
  %683 = vmatprep.subr.mxu0 0.0
  %684 = vmatpush2.msra.mxu0 0.0
  %685 = vmatprep.subr.mxu0 0.0
  %686 = vmatpush2.msra.mxu0 0.0
  %687 = vmatprep.subr.mxu0 0.0
  %688 = vmatpush2.msra.mxu0 0.0
  %689 = vmatprep.subr.mxu0 0.0
  %690 = vmatpush2.msra.mxu0 0.0
  %691 = vmatprep.subr.mxu0 0.0
  %692 = vmatpush2.msra.mxu0 0.0
  %693 = vmatprep.subr.mxu0 0.0
  %694 = vmatpush2.msra.mxu0 0.0
  %695 = vmatprep.mubr.f32.mxu0 0.0
  %696 = vmatmul.mubr.f32.gmra.mxu0 %v514
  %v697 = vpop.f32.mrf.mxu0
  %v698 = vadd.f32 0.0, %v697
  %v699 = vpop.f32.mrf.mxu0
  %700 = vmatprep.mubr.f32.mxu0 0.0
  %701 = vmatmul.mubr.f32.gmra.mxu0 %v516
  %v702 = vpop.f32.mrf.mxu0
  %v703 = vadd.f32 0.0, %v702
  %v704 = vpop.f32.mrf.mxu0
  %705 = vmatprep.mubr.f32.mxu0 0.0
  %706 = vmatmul.mubr.f32.gmra.mxu0 %v518
  %v707 = vpop.f32.mrf.mxu0
  %v708 = vadd.f32 0.0, %v707
  %v709 = vpop.f32.mrf.mxu0
  %710 = vmatprep.mubr.f32.mxu0 0.0
  %711 = vmatmul.mubr.f32.gmra.mxu0 %v520
  %v712 = vpop.f32.mrf.mxu0
  %v713 = vadd.f32 0.0, %v712
  %v714 = vpop.f32.mrf.mxu0
  %715 = vmatprep.mubr.f32.mxu0 0.0
  %716 = vmatmul.mubr.f32.gmra.mxu0 %v522
  %v717 = vpop.f32.mrf.mxu0
  %v718 = vadd.f32 0.0, %v717
  %v719 = vpop.f32.mrf.mxu0
  %720 = vdwg.mxu0
  %v721 = vadd.f32 %v475, %v698
  %v722 = vadd.f32 %v480, %v703
  %v723 = vadd.f32 %v485, %v708
  %v724 = vadd.f32 %v490, %v713
  %v725 = vadd.f32 %v495, %v718
  %s726 = scalar_lea.vmem %s1, 120
  %v727 = vld [vmem:[%s726] sm:$0xff]
  %v728 = vld [vmem:[%s726 + $0x8] sm:$0xff]
  %v729 = vld [vmem:[%s726 + $0x10] sm:$0xff]
  %v730 = vld [vmem:[%s726 + $0x18] sm:$0xff]
  %v731 = vld [vmem:[%s726 + $0x20] sm:$0xf]
  %vm732 = vcmask 1044480
  %v733 = vrot.slane %v62, 3
  %v734 = vrot.slane %v63, 3
  %v735 = vsel %vm732, %v733, %v734
  %v736 = vrot.slane %v64, 3
  %v737 = vsel %vm732, %v734, %v736
  %v738 = vrot.slane %v65, 3
  %v739 = vsel %vm732, %v736, %v738
  %v740 = vrot.slane %v66, 3
  %v741 = vsel %vm732, %v738, %v740
  %v742 = vsel %vm98, %v735, 0
  %v744 = vsel %vm98, %v737, 0
  %v746 = vsel %vm98, %v739, 0
  %v748 = vsel %vm98, %v741, 0
  %v750 = vsel %vm98, %v740, 0
  %v753 = vsel %vm109, %v731, 0
  %755 = vmatprep.subr.mxu0 0.0
  %756 = vmatpush1.msra.mxu0 0.0
  %757 = vmatprep.subr.mxu0 0.0
  %758 = vmatpush1.msra.mxu0 0.0
  %759 = vmatprep.subr.mxu0 0.0
  %760 = vmatpush1.msra.mxu0 0.0
  %761 = vmatprep.subr.mxu0 0.0
  %762 = vmatpush1.msra.mxu0 0.0
  %763 = vmatprep.subr.mxu0 0.0
  %764 = vmatpush1.msra.mxu0 0.0
  %765 = vmatprep.subr.mxu0 0.0
  %766 = vmatpush1.msra.mxu0 0.0
  %767 = vmatprep.subr.mxu0 0.0
  %768 = vmatpush1.msra.mxu0 0.0
  %769 = vmatprep.subr.mxu0 0.0
  %770 = vmatpush1.msra.mxu0 0.0
  %771 = vmatprep.subr.mxu0 0.0
  %772 = vmatpush1.msra.mxu0 0.0
  %773 = vmatprep.subr.mxu0 0.0
  %774 = vmatpush1.msra.mxu0 0.0
  %775 = vmatprep.subr.mxu0 0.0
  %776 = vmatpush1.msra.mxu0 0.0
  %777 = vmatprep.subr.mxu0 0.0
  %778 = vmatpush1.msra.mxu0 %v753
  %779 = vmatprep.subr.mxu0 0.0
  %780 = vmatpush1.msra.mxu0 %v730
  %781 = vmatprep.subr.mxu0 0.0
  %782 = vmatpush1.msra.mxu0 %v729
  %783 = vmatprep.subr.mxu0 0.0
  %784 = vmatpush1.msra.mxu0 %v728
  %785 = vmatprep.subr.mxu0 0.0
  %786 = vmatpush1.msra.mxu0 %v727
  %787 = vmatprep.subr.mxu0 0.0
  %788 = vmatpush2.msra.mxu0 0.0
  %789 = vmatprep.subr.mxu0 0.0
  %790 = vmatpush2.msra.mxu0 0.0
  %791 = vmatprep.subr.mxu0 0.0
  %792 = vmatpush2.msra.mxu0 0.0
  %793 = vmatprep.subr.mxu0 0.0
  %794 = vmatpush2.msra.mxu0 0.0
  %795 = vmatprep.subr.mxu0 0.0
  %796 = vmatpush2.msra.mxu0 0.0
  %797 = vmatprep.subr.mxu0 0.0
  %798 = vmatpush2.msra.mxu0 0.0
  %799 = vmatprep.subr.mxu0 0.0
  %800 = vmatpush2.msra.mxu0 0.0
  %801 = vmatprep.subr.mxu0 0.0
  %802 = vmatpush2.msra.mxu0 0.0
  %803 = vmatprep.subr.mxu0 0.0
  %804 = vmatpush2.msra.mxu0 0.0
  %805 = vmatprep.subr.mxu0 0.0
  %806 = vmatpush2.msra.mxu0 0.0
  %807 = vmatprep.subr.mxu0 0.0
  %808 = vmatpush2.msra.mxu0 0.0
  %809 = vmatprep.subr.mxu0 0.0
  %810 = vmatpush2.msra.mxu0 0.0
  %811 = vmatprep.subr.mxu0 0.0
  %812 = vmatpush2.msra.mxu0 0.0
  %813 = vmatprep.subr.mxu0 0.0
  %814 = vmatpush2.msra.mxu0 0.0
  %815 = vmatprep.subr.mxu0 0.0
  %816 = vmatpush2.msra.mxu0 0.0
  %817 = vmatprep.subr.mxu0 0.0
  %818 = vmatpush2.msra.mxu0 0.0
  %819 = vmatprep.mubr.f32.mxu0 0.0
  %820 = vmatmul.mubr.f32.gmra.mxu0 %v742
  %v821 = vpop.f32.mrf.mxu0
  %v822 = vadd.f32 0.0, %v821
  %v823 = vpop.f32.mrf.mxu0
  %824 = vmatprep.mubr.f32.mxu0 0.0
  %825 = vmatmul.mubr.f32.gmra.mxu0 %v744
  %v826 = vpop.f32.mrf.mxu0
  %v827 = vadd.f32 0.0, %v826
  %v828 = vpop.f32.mrf.mxu0
  %829 = vmatprep.mubr.f32.mxu0 0.0
  %830 = vmatmul.mubr.f32.gmra.mxu0 %v746
  %v831 = vpop.f32.mrf.mxu0
  %v832 = vadd.f32 0.0, %v831
  %v833 = vpop.f32.mrf.mxu0
  %834 = vmatprep.mubr.f32.mxu0 0.0
  %835 = vmatmul.mubr.f32.gmra.mxu0 %v748
  %v836 = vpop.f32.mrf.mxu0
  %v837 = vadd.f32 0.0, %v836
  %v838 = vpop.f32.mrf.mxu0
  %839 = vmatprep.mubr.f32.mxu0 0.0
  %840 = vmatmul.mubr.f32.gmra.mxu0 %v750
  %v841 = vpop.f32.mrf.mxu0
  %v842 = vadd.f32 0.0, %v841
  %v843 = vpop.f32.mrf.mxu0
  %844 = vdwg.mxu0
  %v845 = vadd.f32 %v617, %v822
  %v846 = vadd.f32 %v618, %v827
  %v847 = vadd.f32 %v619, %v832
  %v848 = vadd.f32 %v620, %v837
  %v849 = vadd.f32 %v621, %v842
  %s850 = scalar_lea.vmem %s2, 120
  %v851 = vld [vmem:[%s850] sm:$0xff]
  %v852 = vld [vmem:[%s850 + $0x8] sm:$0xff]
  %v853 = vld [vmem:[%s850 + $0x10] sm:$0xff]
  %v854 = vld [vmem:[%s850 + $0x18] sm:$0xff]
  %v855 = vld [vmem:[%s850 + $0x20] sm:$0xf]
  %v857 = vsel %vm109, %v855, 0
  %859 = vmatprep.subr.mxu0 0.0
  %860 = vmatpush1.msra.mxu0 0.0
  %861 = vmatprep.subr.mxu0 0.0
  %862 = vmatpush1.msra.mxu0 0.0
  %863 = vmatprep.subr.mxu0 0.0
  %864 = vmatpush1.msra.mxu0 0.0
  %865 = vmatprep.subr.mxu0 0.0
  %866 = vmatpush1.msra.mxu0 0.0
  %867 = vmatprep.subr.mxu0 0.0
  %868 = vmatpush1.msra.mxu0 0.0
  %869 = vmatprep.subr.mxu0 0.0
  %870 = vmatpush1.msra.mxu0 0.0
  %871 = vmatprep.subr.mxu0 0.0
  %872 = vmatpush1.msra.mxu0 0.0
  %873 = vmatprep.subr.mxu0 0.0
  %874 = vmatpush1.msra.mxu0 0.0
  %875 = vmatprep.subr.mxu0 0.0
  %876 = vmatpush1.msra.mxu0 0.0
  %877 = vmatprep.subr.mxu0 0.0
  %878 = vmatpush1.msra.mxu0 0.0
  %879 = vmatprep.subr.mxu0 0.0
  %880 = vmatpush1.msra.mxu0 0.0
  %881 = vmatprep.subr.mxu0 0.0
  %882 = vmatpush1.msra.mxu0 %v857
  %883 = vmatprep.subr.mxu0 0.0
  %884 = vmatpush1.msra.mxu0 %v854
  %885 = vmatprep.subr.mxu0 0.0
  %886 = vmatpush1.msra.mxu0 %v853
  %887 = vmatprep.subr.mxu0 0.0
  %888 = vmatpush1.msra.mxu0 %v852
  %889 = vmatprep.subr.mxu0 0.0
  %890 = vmatpush1.msra.mxu0 %v851
  %891 = vmatprep.subr.mxu0 0.0
  %892 = vmatpush2.msra.mxu0 0.0
  %893 = vmatprep.subr.mxu0 0.0
  %894 = vmatpush2.msra.mxu0 0.0
  %895 = vmatprep.subr.mxu0 0.0
  %896 = vmatpush2.msra.mxu0 0.0
  %897 = vmatprep.subr.mxu0 0.0
  %898 = vmatpush2.msra.mxu0 0.0
  %899 = vmatprep.subr.mxu0 0.0
  %900 = vmatpush2.msra.mxu0 0.0
  %901 = vmatprep.subr.mxu0 0.0
  %902 = vmatpush2.msra.mxu0 0.0
  %903 = vmatprep.subr.mxu0 0.0
  %904 = vmatpush2.msra.mxu0 0.0
  %905 = vmatprep.subr.mxu0 0.0
  %906 = vmatpush2.msra.mxu0 0.0
  %907 = vmatprep.subr.mxu0 0.0
  %908 = vmatpush2.msra.mxu0 0.0
  %909 = vmatprep.subr.mxu0 0.0
  %910 = vmatpush2.msra.mxu0 0.0
  %911 = vmatprep.subr.mxu0 0.0
  %912 = vmatpush2.msra.mxu0 0.0
  %913 = vmatprep.subr.mxu0 0.0
  %914 = vmatpush2.msra.mxu0 0.0
  %915 = vmatprep.subr.mxu0 0.0
  %916 = vmatpush2.msra.mxu0 0.0
  %917 = vmatprep.subr.mxu0 0.0
  %918 = vmatpush2.msra.mxu0 0.0
  %919 = vmatprep.subr.mxu0 0.0
  %920 = vmatpush2.msra.mxu0 0.0
  %921 = vmatprep.subr.mxu0 0.0
  %922 = vmatpush2.msra.mxu0 0.0
  %923 = vmatprep.mubr.f32.mxu0 0.0
  %924 = vmatmul.mubr.f32.gmra.mxu0 %v742
  %v925 = vpop.f32.mrf.mxu0
  %v926 = vadd.f32 0.0, %v925
  %v927 = vpop.f32.mrf.mxu0
  %928 = vmatprep.mubr.f32.mxu0 0.0
  %929 = vmatmul.mubr.f32.gmra.mxu0 %v744
  %v930 = vpop.f32.mrf.mxu0
  %v931 = vadd.f32 0.0, %v930
  %v932 = vpop.f32.mrf.mxu0
  %933 = vmatprep.mubr.f32.mxu0 0.0
  %934 = vmatmul.mubr.f32.gmra.mxu0 %v746
  %v935 = vpop.f32.mrf.mxu0
  %v936 = vadd.f32 0.0, %v935
  %v937 = vpop.f32.mrf.mxu0
  %938 = vmatprep.mubr.f32.mxu0 0.0
  %939 = vmatmul.mubr.f32.gmra.mxu0 %v748
  %v940 = vpop.f32.mrf.mxu0
  %v941 = vadd.f32 0.0, %v940
  %v942 = vpop.f32.mrf.mxu0
  %943 = vmatprep.mubr.f32.mxu0 0.0
  %944 = vmatmul.mubr.f32.gmra.mxu0 %v750
  %v945 = vpop.f32.mrf.mxu0
  %v946 = vadd.f32 0.0, %v945
  %v947 = vpop.f32.mrf.mxu0
  %948 = vdwg.mxu0
  %v949 = vadd.f32 %v721, %v926
  %v950 = vadd.f32 %v722, %v931
  %v951 = vadd.f32 %v723, %v936
  %v952 = vadd.f32 %v724, %v941
  %v953 = vadd.f32 %v725, %v946
  %v954 = vmax.f32 %v845, %v949
  %v955 = vmax.f32 %v846, %v950
  %v956 = vmax.f32 %v847, %v951
  %v957 = vmax.f32 %v848, %v952
  %v958 = vmax.f32 %v849, %v953
  %v959 = vld [vmem:[%s3] sm:$0x1]
  %v961 = vlaneseq
  %v962 = vshrl.u32 %v961, 7
  %v963 = vsub.s32 0, %v962
  %v964 = vrot.slane %v959, %v963
  %v966 = vadd.f32 %v954, %v964
  %v967 = vadd.f32 %v955, %v964
  %v968 = vadd.f32 %v956, %v964
  %v969 = vadd.f32 %v957, %v964
  %v970 = vadd.f32 %v958, %v964
  %v971 = vld [vmem:[%s4] sm:$0xff]
  %v972 = vld [vmem:[%s4 + $0x8] sm:$0x3f]
  %v974 = vsel %vm98, %v971, 0
  %v977 = vsel %vm98, %v972, 0
  %v980 = vsel %vm109, %v970, 0
  %982 = vmatprep.subr.mxu0 0.0
  %983 = vmatpush1.msra.mxu0 0.0
  %984 = vmatprep.subr.mxu0 0.0
  %985 = vmatpush1.msra.mxu0 0.0
  %986 = vmatprep.subr.mxu0 0.0
  %987 = vmatpush1.msra.mxu0 0.0
  %988 = vmatprep.subr.mxu0 0.0
  %989 = vmatpush1.msra.mxu0 0.0
  %990 = vmatprep.subr.mxu0 0.0
  %991 = vmatpush1.msra.mxu0 0.0
  %992 = vmatprep.subr.mxu0 0.0
  %993 = vmatpush1.msra.mxu0 0.0
  %994 = vmatprep.subr.mxu0 0.0
  %995 = vmatpush1.msra.mxu0 0.0
  %996 = vmatprep.subr.mxu0 0.0
  %997 = vmatpush1.msra.mxu0 0.0
  %998 = vmatprep.subr.mxu0 0.0
  %999 = vmatpush1.msra.mxu0 0.0
  %1000 = vmatprep.subr.mxu0 0.0
  %1001 = vmatpush1.msra.mxu0 0.0
  %1002 = vmatprep.subr.mxu0 0.0
  %1003 = vmatpush1.msra.mxu0 0.0
  %1004 = vmatprep.subr.mxu0 0.0
  %1005 = vmatpush1.msra.mxu0 %v980
  %1006 = vmatprep.subr.mxu0 0.0
  %1007 = vmatpush1.msra.mxu0 %v969
  %1008 = vmatprep.subr.mxu0 0.0
  %1009 = vmatpush1.msra.mxu0 %v968
  %1010 = vmatprep.subr.mxu0 0.0
  %1011 = vmatpush1.msra.mxu0 %v967
  %1012 = vmatprep.subr.mxu0 0.0
  %1013 = vmatpush1.msra.mxu0 %v966
  %1014 = vmatprep.subr.mxu0 0.0
  %1015 = vmatpush2.msra.mxu0 0.0
  %1016 = vmatprep.subr.mxu0 0.0
  %1017 = vmatpush2.msra.mxu0 0.0
  %1018 = vmatprep.subr.mxu0 0.0
  %1019 = vmatpush2.msra.mxu0 0.0
  %1020 = vmatprep.subr.mxu0 0.0
  %1021 = vmatpush2.msra.mxu0 0.0
  %1022 = vmatprep.subr.mxu0 0.0
  %1023 = vmatpush2.msra.mxu0 0.0
  %1024 = vmatprep.subr.mxu0 0.0
  %1025 = vmatpush2.msra.mxu0 0.0
  %1026 = vmatprep.subr.mxu0 0.0
  %1027 = vmatpush2.msra.mxu0 0.0
  %1028 = vmatprep.subr.mxu0 0.0
  %1029 = vmatpush2.msra.mxu0 0.0
  %1030 = vmatprep.subr.mxu0 0.0
  %1031 = vmatpush2.msra.mxu0 0.0
  %1032 = vmatprep.subr.mxu0 0.0
  %1033 = vmatpush2.msra.mxu0 0.0
  %1034 = vmatprep.subr.mxu0 0.0
  %1035 = vmatpush2.msra.mxu0 0.0
  %1036 = vmatprep.subr.mxu0 0.0
  %1037 = vmatpush2.msra.mxu0 0.0
  %1038 = vmatprep.subr.mxu0 0.0
  %1039 = vmatpush2.msra.mxu0 0.0
  %1040 = vmatprep.subr.mxu0 0.0
  %1041 = vmatpush2.msra.mxu0 0.0
  %1042 = vmatprep.subr.mxu0 0.0
  %1043 = vmatpush2.msra.mxu0 0.0
  %1044 = vmatprep.subr.mxu0 0.0
  %1045 = vmatpush2.msra.mxu0 0.0
  %1046 = vmatprep.mubr.f32.mxu0 0.0
  %1047 = vmatmul.mubr.f32.gmra.mxu0 %v974
  %v1048 = vpop.f32.mrf.mxu0
  %v1049 = vadd.f32 0.0, %v1048
  %v1050 = vpop.f32.mrf.mxu0
  %1051 = vmatprep.mubr.f32.mxu0 0.0
  %1052 = vmatmul.mubr.f32.gmra.mxu0 %v977
  %v1053 = vpop.f32.mrf.mxu0
  %v1054 = vadd.f32 0.0, %v1053
  %v1055 = vpop.f32.mrf.mxu0
  %1056 = vdwg.mxu0
  %v1057 = vld [vmem:[%s5] sm:$0xff]
  %v1058 = vld [vmem:[%s5 + $0x8] sm:$0x3f]
  %v1060 = vsel %vm98, %v1057, 0
  %v1063 = vsel %vm98, %v1058, 0
  %1065 = vmatprep.subr.mxu0 0.0
  %1066 = vmatpush1.msra.mxu0 0.0
  %1067 = vmatprep.subr.mxu0 0.0
  %1068 = vmatpush1.msra.mxu0 0.0
  %1069 = vmatprep.subr.mxu0 0.0
  %1070 = vmatpush1.msra.mxu0 0.0
  %1071 = vmatprep.subr.mxu0 0.0
  %1072 = vmatpush1.msra.mxu0 0.0
  %1073 = vmatprep.subr.mxu0 0.0
  %1074 = vmatpush1.msra.mxu0 0.0
  %1075 = vmatprep.subr.mxu0 0.0
  %1076 = vmatpush1.msra.mxu0 0.0
  %1077 = vmatprep.subr.mxu0 0.0
  %1078 = vmatpush1.msra.mxu0 0.0
  %1079 = vmatprep.subr.mxu0 0.0
  %1080 = vmatpush1.msra.mxu0 0.0
  %1081 = vmatprep.subr.mxu0 0.0
  %1082 = vmatpush1.msra.mxu0 0.0
  %1083 = vmatprep.subr.mxu0 0.0
  %1084 = vmatpush1.msra.mxu0 0.0
  %1085 = vmatprep.subr.mxu0 0.0
  %1086 = vmatpush1.msra.mxu0 0.0
  %1087 = vmatprep.subr.mxu0 0.0
  %1088 = vmatpush1.msra.mxu0 %v980
  %1089 = vmatprep.subr.mxu0 0.0
  %1090 = vmatpush1.msra.mxu0 %v969
  %1091 = vmatprep.subr.mxu0 0.0
  %1092 = vmatpush1.msra.mxu0 %v968
  %1093 = vmatprep.subr.mxu0 0.0
  %1094 = vmatpush1.msra.mxu0 %v967
  %1095 = vmatprep.subr.mxu0 0.0
  %1096 = vmatpush1.msra.mxu0 %v966
  %1097 = vmatprep.subr.mxu0 0.0
  %1098 = vmatpush2.msra.mxu0 0.0
  %1099 = vmatprep.subr.mxu0 0.0
  %1100 = vmatpush2.msra.mxu0 0.0
  %1101 = vmatprep.subr.mxu0 0.0
  %1102 = vmatpush2.msra.mxu0 0.0
  %1103 = vmatprep.subr.mxu0 0.0
  %1104 = vmatpush2.msra.mxu0 0.0
  %1105 = vmatprep.subr.mxu0 0.0
  %1106 = vmatpush2.msra.mxu0 0.0
  %1107 = vmatprep.subr.mxu0 0.0
  %1108 = vmatpush2.msra.mxu0 0.0
  %1109 = vmatprep.subr.mxu0 0.0
  %1110 = vmatpush2.msra.mxu0 0.0
  %1111 = vmatprep.subr.mxu0 0.0
  %1112 = vmatpush2.msra.mxu0 0.0
  %1113 = vmatprep.subr.mxu0 0.0
  %1114 = vmatpush2.msra.mxu0 0.0
  %1115 = vmatprep.subr.mxu0 0.0
  %1116 = vmatpush2.msra.mxu0 0.0
  %1117 = vmatprep.subr.mxu0 0.0
  %1118 = vmatpush2.msra.mxu0 0.0
  %1119 = vmatprep.subr.mxu0 0.0
  %1120 = vmatpush2.msra.mxu0 0.0
  %1121 = vmatprep.subr.mxu0 0.0
  %1122 = vmatpush2.msra.mxu0 0.0
  %1123 = vmatprep.subr.mxu0 0.0
  %1124 = vmatpush2.msra.mxu0 0.0
  %1125 = vmatprep.subr.mxu0 0.0
  %1126 = vmatpush2.msra.mxu0 0.0
  %1127 = vmatprep.subr.mxu0 0.0
  %1128 = vmatpush2.msra.mxu0 0.0
  %1129 = vmatprep.mubr.f32.mxu0 0.0
  %1130 = vmatmul.mubr.f32.gmra.mxu0 %v1060
  %v1131 = vpop.f32.mrf.mxu0
  %v1132 = vadd.f32 0.0, %v1131
  %v1133 = vpop.f32.mrf.mxu0
  %1134 = vmatprep.mubr.f32.mxu0 0.0
  %1135 = vmatmul.mubr.f32.gmra.mxu0 %v1063
  %v1136 = vpop.f32.mrf.mxu0
  %v1137 = vadd.f32 0.0, %v1136
  %v1138 = vpop.f32.mrf.mxu0
  %1139 = vdwg.mxu0
  %v1140 = vmax.f32 %v1049, %v1132
  %v1141 = vmax.f32 %v1054, %v1137
  %v1142 = vmax.f32 %v1140, 0.0
  %v1143 = vmax.f32 %v1141, 0.0
  %v1144 = vld [vmem:[%s6] sm:$0xff]
  %v1145 = vld [vmem:[%s6 + $0x8] sm:$0xff]
  %v1146 = vld [vmem:[%s6 + $0x10] sm:$0xff]
  %v1147 = vld [vmem:[%s6 + $0x18] sm:$0xff]
  %v1148 = vld [vmem:[%s6 + $0x20] sm:$0xff]
  %v1149 = vld [vmem:[%s6 + $0x28] sm:$0xff]
  %v1150 = vld [vmem:[%s6 + $0x30] sm:$0xff]
  %vm1151 = vcmask 457728
  %v1153 = vsel %vm1151, %v1142, 0
  %v1156 = vsel %vm1151, %v1143, 0
  %1158 = vmatprep.subr.mxu0 0.0
  %1159 = vmatpush1.msra.mxu0 0.0
  %1160 = vmatprep.subr.mxu0 0.0
  %1161 = vmatpush1.msra.mxu0 0.0
  %1162 = vmatprep.subr.mxu0 0.0
  %1163 = vmatpush1.msra.mxu0 0.0
  %1164 = vmatprep.subr.mxu0 0.0
  %1165 = vmatpush1.msra.mxu0 0.0
  %1166 = vmatprep.subr.mxu0 0.0
  %1167 = vmatpush1.msra.mxu0 0.0
  %1168 = vmatprep.subr.mxu0 0.0
  %1169 = vmatpush1.msra.mxu0 0.0
  %1170 = vmatprep.subr.mxu0 0.0
  %1171 = vmatpush1.msra.mxu0 0.0
  %1172 = vmatprep.subr.mxu0 0.0
  %1173 = vmatpush1.msra.mxu0 0.0
  %1174 = vmatprep.subr.mxu0 0.0
  %1175 = vmatpush1.msra.mxu0 0.0
  %1176 = vmatprep.subr.mxu0 0.0
  %1177 = vmatpush1.msra.mxu0 %v1150
  %1178 = vmatprep.subr.mxu0 0.0
  %1179 = vmatpush1.msra.mxu0 %v1149
  %1180 = vmatprep.subr.mxu0 0.0
  %1181 = vmatpush1.msra.mxu0 %v1148
  %1182 = vmatprep.subr.mxu0 0.0
  %1183 = vmatpush1.msra.mxu0 %v1147
  %1184 = vmatprep.subr.mxu0 0.0
  %1185 = vmatpush1.msra.mxu0 %v1146
  %1186 = vmatprep.subr.mxu0 0.0
  %1187 = vmatpush1.msra.mxu0 %v1145
  %1188 = vmatprep.subr.mxu0 0.0
  %1189 = vmatpush1.msra.mxu0 %v1144
  %1190 = vmatprep.subr.mxu0 0.0
  %1191 = vmatpush2.msra.mxu0 0.0
  %1192 = vmatprep.subr.mxu0 0.0
  %1193 = vmatpush2.msra.mxu0 0.0
  %1194 = vmatprep.subr.mxu0 0.0
  %1195 = vmatpush2.msra.mxu0 0.0
  %1196 = vmatprep.subr.mxu0 0.0
  %1197 = vmatpush2.msra.mxu0 0.0
  %1198 = vmatprep.subr.mxu0 0.0
  %1199 = vmatpush2.msra.mxu0 0.0
  %1200 = vmatprep.subr.mxu0 0.0
  %1201 = vmatpush2.msra.mxu0 0.0
  %1202 = vmatprep.subr.mxu0 0.0
  %1203 = vmatpush2.msra.mxu0 0.0
  %1204 = vmatprep.subr.mxu0 0.0
  %1205 = vmatpush2.msra.mxu0 0.0
  %1206 = vmatprep.subr.mxu0 0.0
  %1207 = vmatpush2.msra.mxu0 0.0
  %1208 = vmatprep.subr.mxu0 0.0
  %1209 = vmatpush2.msra.mxu0 0.0
  %1210 = vmatprep.subr.mxu0 0.0
  %1211 = vmatpush2.msra.mxu0 0.0
  %1212 = vmatprep.subr.mxu0 0.0
  %1213 = vmatpush2.msra.mxu0 0.0
  %1214 = vmatprep.subr.mxu0 0.0
  %1215 = vmatpush2.msra.mxu0 0.0
  %1216 = vmatprep.subr.mxu0 0.0
  %1217 = vmatpush2.msra.mxu0 0.0
  %1218 = vmatprep.subr.mxu0 0.0
  %1219 = vmatpush2.msra.mxu0 0.0
  %1220 = vmatprep.subr.mxu0 0.0
  %1221 = vmatpush2.msra.mxu0 0.0
  %1222 = vmatprep.mubr.f32.mxu0 0.0
  %1223 = vmatmul.mubr.f32.gmra.mxu0 %v1153
  %v1224 = vpop.f32.mrf.mxu0
  %v1225 = vadd.f32 0.0, %v1224
  %v1226 = vpop.f32.mrf.mxu0
  %1227 = vmatprep.mubr.f32.mxu0 0.0
  %1228 = vmatmul.mubr.f32.gmra.mxu0 %v1156
  %v1229 = vpop.f32.mrf.mxu0
  %v1230 = vadd.f32 0.0, %v1229
  %v1231 = vpop.f32.mrf.mxu0
  %1232 = vdwg.mxu0
  %v1233 = vsel %vm1151, %v1225, 0.0
  %vm1234 = vcmask 455680
  %v1235 = vsel %vm1234, %v1230, 0.0
  %v1236 = vadd.f32 %v1233, %v1235
  %v1237 = vrot.slane %v1236, 4
  %v1238 = vadd.f32 %v1236, %v1237
  %v1239 = vrot.slane %v1238, 2
  %v1240 = vadd.f32 %v1238, %v1239
  %v1241 = vrot.slane %v1240, 1
  %v1242 = vadd.f32 %v1240, %v1241
  %v1243 = vmul.f32 %v1242, 0.010204081
  %v1244 = vmul.f32 %v1142, %v1142
  %v1245 = vmul.f32 %v1143, %v1143
  %v1247 = vsel %vm1151, %v1244, 0
  %v1250 = vsel %vm1151, %v1245, 0
  %1252 = vmatprep.subr.mxu0 0.0
  %1253 = vmatpush1.msra.mxu0 0.0
  %1254 = vmatprep.subr.mxu0 0.0
  %1255 = vmatpush1.msra.mxu0 0.0
  %1256 = vmatprep.subr.mxu0 0.0
  %1257 = vmatpush1.msra.mxu0 0.0
  %1258 = vmatprep.subr.mxu0 0.0
  %1259 = vmatpush1.msra.mxu0 0.0
  %1260 = vmatprep.subr.mxu0 0.0
  %1261 = vmatpush1.msra.mxu0 0.0
  %1262 = vmatprep.subr.mxu0 0.0
  %1263 = vmatpush1.msra.mxu0 0.0
  %1264 = vmatprep.subr.mxu0 0.0
  %1265 = vmatpush1.msra.mxu0 0.0
  %1266 = vmatprep.subr.mxu0 0.0
  %1267 = vmatpush1.msra.mxu0 0.0
  %1268 = vmatprep.subr.mxu0 0.0
  %1269 = vmatpush1.msra.mxu0 0.0
  %1270 = vmatprep.subr.mxu0 0.0
  %1271 = vmatpush1.msra.mxu0 %v1150
  %1272 = vmatprep.subr.mxu0 0.0
  %1273 = vmatpush1.msra.mxu0 %v1149
  %1274 = vmatprep.subr.mxu0 0.0
  %1275 = vmatpush1.msra.mxu0 %v1148
  %1276 = vmatprep.subr.mxu0 0.0
  %1277 = vmatpush1.msra.mxu0 %v1147
  %1278 = vmatprep.subr.mxu0 0.0
  %1279 = vmatpush1.msra.mxu0 %v1146
  %1280 = vmatprep.subr.mxu0 0.0
  %1281 = vmatpush1.msra.mxu0 %v1145
  %1282 = vmatprep.subr.mxu0 0.0
  %1283 = vmatpush1.msra.mxu0 %v1144
  %1284 = vmatprep.subr.mxu0 0.0
  %1285 = vmatpush2.msra.mxu0 0.0
  %1286 = vmatprep.subr.mxu0 0.0
  %1287 = vmatpush2.msra.mxu0 0.0
  %1288 = vmatprep.subr.mxu0 0.0
  %1289 = vmatpush2.msra.mxu0 0.0
  %1290 = vmatprep.subr.mxu0 0.0
  %1291 = vmatpush2.msra.mxu0 0.0
  %1292 = vmatprep.subr.mxu0 0.0
  %1293 = vmatpush2.msra.mxu0 0.0
  %1294 = vmatprep.subr.mxu0 0.0
  %1295 = vmatpush2.msra.mxu0 0.0
  %1296 = vmatprep.subr.mxu0 0.0
  %1297 = vmatpush2.msra.mxu0 0.0
  %1298 = vmatprep.subr.mxu0 0.0
  %1299 = vmatpush2.msra.mxu0 0.0
  %1300 = vmatprep.subr.mxu0 0.0
  %1301 = vmatpush2.msra.mxu0 0.0
  %1302 = vmatprep.subr.mxu0 0.0
  %1303 = vmatpush2.msra.mxu0 0.0
  %1304 = vmatprep.subr.mxu0 0.0
  %1305 = vmatpush2.msra.mxu0 0.0
  %1306 = vmatprep.subr.mxu0 0.0
  %1307 = vmatpush2.msra.mxu0 0.0
  %1308 = vmatprep.subr.mxu0 0.0
  %1309 = vmatpush2.msra.mxu0 0.0
  %1310 = vmatprep.subr.mxu0 0.0
  %1311 = vmatpush2.msra.mxu0 0.0
  %1312 = vmatprep.subr.mxu0 0.0
  %1313 = vmatpush2.msra.mxu0 0.0
  %1314 = vmatprep.subr.mxu0 0.0
  %1315 = vmatpush2.msra.mxu0 0.0
  %1316 = vmatprep.mubr.f32.mxu0 0.0
  %1317 = vmatmul.mubr.f32.gmra.mxu0 %v1247
  %v1318 = vpop.f32.mrf.mxu0
  %v1319 = vadd.f32 0.0, %v1318
  %v1320 = vpop.f32.mrf.mxu0
  %1321 = vmatprep.mubr.f32.mxu0 0.0
  %1322 = vmatmul.mubr.f32.gmra.mxu0 %v1250
  %v1323 = vpop.f32.mrf.mxu0
  %v1324 = vadd.f32 0.0, %v1323
  %v1325 = vpop.f32.mrf.mxu0
  %1326 = vdwg.mxu0
  %v1327 = vsel %vm1151, %v1319, 0.0
  %v1328 = vsel %vm1234, %v1324, 0.0
  %v1329 = vadd.f32 %v1327, %v1328
  %v1330 = vrot.slane %v1329, 4
  %v1331 = vadd.f32 %v1329, %v1330
  %v1332 = vrot.slane %v1331, 2
  %v1333 = vadd.f32 %v1331, %v1332
  %v1334 = vrot.slane %v1333, 1
  %v1335 = vadd.f32 %v1333, %v1334
  %v1336 = vmul.f32 %v1335, 0.010204081
  %v1337 = vmul.f32 %v1243, %v1243
  %v1338 = vsub.f32 %v1336, %v1337
  %v1339 = vmax.f32 %v1338, 0.0
  %v1340 = vadd.f32 %v1339, 1e-05
  %v1341 = vrsqrt.pop %v1340
  %v1342 = vld [vmem:[%s7] sm:$0x1]
  %v1343 = vmul.f32 %v1342, %v1341
  %v1344 = vld [vmem:[%s8] sm:$0x1]
  %v1345 = vmul.f32 %v1243, %v1343
  %v1346 = vsub.f32 %v1344, %v1345
  %v1348 = vlaneseq
  %v1349 = vshrl.u32 %v1348, 7
  %v1350 = vsub.s32 0, %v1349
  %v1351 = vrot.slane %v1343, %v1350
  %v1353 = vmul.f32 %v1142, %v1351
  %v1354 = vmul.f32 %v1143, %v1351
  %v1356 = vlaneseq
  %v1357 = vshrl.u32 %v1356, 7
  %v1358 = vsub.s32 0, %v1357
  %v1359 = vrot.slane %v1346, %v1358
  %v1361 = vadd.f32 %v1353, %v1359
  %v1362 = vadd.f32 %v1354, %v1359
  %v1363 = vld [vmem:[%s9] sm:$0xff]
  %v1364 = vld [vmem:[%s9 + $0x8] sm:$0xff]
  %vm1365 = vcmask 113664
  %v1367 = vsel %vm1365, %v1363, 0
  %v1370 = vsel %vm1365, %v1364, 0
  %v1373 = vsel %vm504, %v1362, 0
  %1375 = vmatprep.subr.mxu0 0.0
  %1376 = vmatpush1.msra.mxu0 0.0
  %1377 = vmatprep.subr.mxu0 0.0
  %1378 = vmatpush1.msra.mxu0 0.0
  %1379 = vmatprep.subr.mxu0 0.0
  %1380 = vmatpush1.msra.mxu0 0.0
  %1381 = vmatprep.subr.mxu0 0.0
  %1382 = vmatpush1.msra.mxu0 0.0
  %1383 = vmatprep.subr.mxu0 0.0
  %1384 = vmatpush1.msra.mxu0 0.0
  %1385 = vmatprep.subr.mxu0 0.0
  %1386 = vmatpush1.msra.mxu0 0.0
  %1387 = vmatprep.subr.mxu0 0.0
  %1388 = vmatpush1.msra.mxu0 0.0
  %1389 = vmatprep.subr.mxu0 0.0
  %1390 = vmatpush1.msra.mxu0 0.0
  %1391 = vmatprep.subr.mxu0 0.0
  %1392 = vmatpush1.msra.mxu0 0.0
  %1393 = vmatprep.subr.mxu0 0.0
  %1394 = vmatpush1.msra.mxu0 0.0
  %1395 = vmatprep.subr.mxu0 0.0
  %1396 = vmatpush1.msra.mxu0 0.0
  %1397 = vmatprep.subr.mxu0 0.0
  %1398 = vmatpush1.msra.mxu0 0.0
  %1399 = vmatprep.subr.mxu0 0.0
  %1400 = vmatpush1.msra.mxu0 0.0
  %1401 = vmatprep.subr.mxu0 0.0
  %1402 = vmatpush1.msra.mxu0 0.0
  %1403 = vmatprep.subr.mxu0 0.0
  %1404 = vmatpush1.msra.mxu0 %v1373
  %1405 = vmatprep.subr.mxu0 0.0
  %1406 = vmatpush1.msra.mxu0 %v1361
  %1407 = vmatprep.subr.mxu0 0.0
  %1408 = vmatpush2.msra.mxu0 0.0
  %1409 = vmatprep.subr.mxu0 0.0
  %1410 = vmatpush2.msra.mxu0 0.0
  %1411 = vmatprep.subr.mxu0 0.0
  %1412 = vmatpush2.msra.mxu0 0.0
  %1413 = vmatprep.subr.mxu0 0.0
  %1414 = vmatpush2.msra.mxu0 0.0
  %1415 = vmatprep.subr.mxu0 0.0
  %1416 = vmatpush2.msra.mxu0 0.0
  %1417 = vmatprep.subr.mxu0 0.0
  %1418 = vmatpush2.msra.mxu0 0.0
  %1419 = vmatprep.subr.mxu0 0.0
  %1420 = vmatpush2.msra.mxu0 0.0
  %1421 = vmatprep.subr.mxu0 0.0
  %1422 = vmatpush2.msra.mxu0 0.0
  %1423 = vmatprep.subr.mxu0 0.0
  %1424 = vmatpush2.msra.mxu0 0.0
  %1425 = vmatprep.subr.mxu0 0.0
  %1426 = vmatpush2.msra.mxu0 0.0
  %1427 = vmatprep.subr.mxu0 0.0
  %1428 = vmatpush2.msra.mxu0 0.0
  %1429 = vmatprep.subr.mxu0 0.0
  %1430 = vmatpush2.msra.mxu0 0.0
  %1431 = vmatprep.subr.mxu0 0.0
  %1432 = vmatpush2.msra.mxu0 0.0
  %1433 = vmatprep.subr.mxu0 0.0
  %1434 = vmatpush2.msra.mxu0 0.0
  %1435 = vmatprep.subr.mxu0 0.0
  %1436 = vmatpush2.msra.mxu0 0.0
  %1437 = vmatprep.subr.mxu0 0.0
  %1438 = vmatpush2.msra.mxu0 0.0
  %1439 = vmatprep.mubr.f32.mxu0 0.0
  %1440 = vmatmul.mubr.f32.gmra.mxu0 %v1367
  %v1441 = vpop.f32.mrf.mxu0
  %v1442 = vadd.f32 0.0, %v1441
  %v1443 = vpop.f32.mrf.mxu0
  %1444 = vmatprep.mubr.f32.mxu0 0.0
  %1445 = vmatmul.mubr.f32.gmra.mxu0 %v1370
  %v1446 = vpop.f32.mrf.mxu0
  %v1447 = vadd.f32 0.0, %v1446
  %v1448 = vpop.f32.mrf.mxu0
  %1449 = vdwg.mxu0
  %v1450 = vld [vmem:[%s10] sm:$0xff]
  %v1451 = vld [vmem:[%s10 + $0x8] sm:$0xff]
  %v1452 = vld [vmem:[%s10 + $0x10] sm:$0xff]
  %v1453 = vld [vmem:[%s10 + $0x18] sm:$0xff]
  %v1454 = vld [vmem:[%s10 + $0x20] sm:$0xff]
  %v1455 = vld [vmem:[%s10 + $0x28] sm:$0xff]
  %v1456 = vld [vmem:[%s10 + $0x30] sm:$0xff]
  %v1457 = vld [vmem:[%s11] sm:$0xff]
  %v1458 = vld [vmem:[%s11 + $0x8] sm:$0xff]
  %v1459 = vld [vmem:[%s11 + $0x10] sm:$0xff]
  %v1460 = vld [vmem:[%s11 + $0x18] sm:$0xff]
  %v1461 = vld [vmem:[%s11 + $0x20] sm:$0xff]
  %v1462 = vld [vmem:[%s11 + $0x28] sm:$0xff]
  %v1463 = vld [vmem:[%s11 + $0x30] sm:$0xff]
  %s1464 = scalar_lea.vmem %s9, 16
  %v1465 = vld [vmem:[%s1464] sm:$0xff]
  %v1466 = vld [vmem:[%s1464 + $0x8] sm:$0xff]
  %v1468 = vsel %vm1365, %v1465, 0
  %v1471 = vsel %vm1365, %v1466, 0
  %1473 = vmatprep.subr.mxu0 0.0
  %1474 = vmatpush1.msra.mxu0 0.0
  %1475 = vmatprep.subr.mxu0 0.0
  %1476 = vmatpush1.msra.mxu0 0.0
  %1477 = vmatprep.subr.mxu0 0.0
  %1478 = vmatpush1.msra.mxu0 0.0
  %1479 = vmatprep.subr.mxu0 0.0
  %1480 = vmatpush1.msra.mxu0 0.0
  %1481 = vmatprep.subr.mxu0 0.0
  %1482 = vmatpush1.msra.mxu0 0.0
  %1483 = vmatprep.subr.mxu0 0.0
  %1484 = vmatpush1.msra.mxu0 0.0
  %1485 = vmatprep.subr.mxu0 0.0
  %1486 = vmatpush1.msra.mxu0 0.0
  %1487 = vmatprep.subr.mxu0 0.0
  %1488 = vmatpush1.msra.mxu0 0.0
  %1489 = vmatprep.subr.mxu0 0.0
  %1490 = vmatpush1.msra.mxu0 0.0
  %1491 = vmatprep.subr.mxu0 0.0
  %1492 = vmatpush1.msra.mxu0 0.0
  %1493 = vmatprep.subr.mxu0 0.0
  %1494 = vmatpush1.msra.mxu0 0.0
  %1495 = vmatprep.subr.mxu0 0.0
  %1496 = vmatpush1.msra.mxu0 0.0
  %1497 = vmatprep.subr.mxu0 0.0
  %1498 = vmatpush1.msra.mxu0 0.0
  %1499 = vmatprep.subr.mxu0 0.0
  %1500 = vmatpush1.msra.mxu0 0.0
  %1501 = vmatprep.subr.mxu0 0.0
  %1502 = vmatpush1.msra.mxu0 %v1373
  %1503 = vmatprep.subr.mxu0 0.0
  %1504 = vmatpush1.msra.mxu0 %v1361
  %1505 = vmatprep.subr.mxu0 0.0
  %1506 = vmatpush2.msra.mxu0 0.0
  %1507 = vmatprep.subr.mxu0 0.0
  %1508 = vmatpush2.msra.mxu0 0.0
  %1509 = vmatprep.subr.mxu0 0.0
  %1510 = vmatpush2.msra.mxu0 0.0
  %1511 = vmatprep.subr.mxu0 0.0
  %1512 = vmatpush2.msra.mxu0 0.0
  %1513 = vmatprep.subr.mxu0 0.0
  %1514 = vmatpush2.msra.mxu0 0.0
  %1515 = vmatprep.subr.mxu0 0.0
  %1516 = vmatpush2.msra.mxu0 0.0
  %1517 = vmatprep.subr.mxu0 0.0
  %1518 = vmatpush2.msra.mxu0 0.0
  %1519 = vmatprep.subr.mxu0 0.0
  %1520 = vmatpush2.msra.mxu0 0.0
  %1521 = vmatprep.subr.mxu0 0.0
  %1522 = vmatpush2.msra.mxu0 0.0
  %1523 = vmatprep.subr.mxu0 0.0
  %1524 = vmatpush2.msra.mxu0 0.0
  %1525 = vmatprep.subr.mxu0 0.0
  %1526 = vmatpush2.msra.mxu0 0.0
  %1527 = vmatprep.subr.mxu0 0.0
  %1528 = vmatpush2.msra.mxu0 0.0
  %1529 = vmatprep.subr.mxu0 0.0
  %1530 = vmatpush2.msra.mxu0 0.0
  %1531 = vmatprep.subr.mxu0 0.0
  %1532 = vmatpush2.msra.mxu0 0.0
  %1533 = vmatprep.subr.mxu0 0.0
  %1534 = vmatpush2.msra.mxu0 0.0
  %1535 = vmatprep.subr.mxu0 0.0
  %1536 = vmatpush2.msra.mxu0 0.0
  %1537 = vmatprep.mubr.f32.mxu0 0.0
  %1538 = vmatmul.mubr.f32.gmra.mxu0 %v1468
  %v1539 = vpop.f32.mrf.mxu0
  %v1540 = vadd.f32 0.0, %v1539
  %v1541 = vpop.f32.mrf.mxu0
  %1542 = vmatprep.mubr.f32.mxu0 0.0
  %1543 = vmatmul.mubr.f32.gmra.mxu0 %v1471
  %v1544 = vpop.f32.mrf.mxu0
  %v1545 = vadd.f32 0.0, %v1544
  %v1546 = vpop.f32.mrf.mxu0
  %1547 = vdwg.mxu0
  %s1548 = scalar_lea.vmem %s10, 56
  %v1549 = vld [vmem:[%s1548] sm:$0xff]
  %v1550 = vld [vmem:[%s1548 + $0x8] sm:$0xff]
  %v1551 = vld [vmem:[%s1548 + $0x10] sm:$0xff]
  %v1552 = vld [vmem:[%s1548 + $0x18] sm:$0xff]
  %v1553 = vld [vmem:[%s1548 + $0x20] sm:$0xff]
  %v1554 = vld [vmem:[%s1548 + $0x28] sm:$0xff]
  %v1555 = vld [vmem:[%s1548 + $0x30] sm:$0xff]
  %v1557 = vsel %vm1151, %v1540, 0
  %v1560 = vsel %vm1151, %v1545, 0
  %1562 = vmatprep.subr.mxu0 0.0
  %1563 = vmatpush1.msra.mxu0 0.0
  %1564 = vmatprep.subr.mxu0 0.0
  %1565 = vmatpush1.msra.mxu0 0.0
  %1566 = vmatprep.subr.mxu0 0.0
  %1567 = vmatpush1.msra.mxu0 0.0
  %1568 = vmatprep.subr.mxu0 0.0
  %1569 = vmatpush1.msra.mxu0 0.0
  %1570 = vmatprep.subr.mxu0 0.0
  %1571 = vmatpush1.msra.mxu0 0.0
  %1572 = vmatprep.subr.mxu0 0.0
  %1573 = vmatpush1.msra.mxu0 0.0
  %1574 = vmatprep.subr.mxu0 0.0
  %1575 = vmatpush1.msra.mxu0 0.0
  %1576 = vmatprep.subr.mxu0 0.0
  %1577 = vmatpush1.msra.mxu0 0.0
  %1578 = vmatprep.subr.mxu0 0.0
  %1579 = vmatpush1.msra.mxu0 0.0
  %1580 = vmatprep.subr.mxu0 0.0
  %1581 = vmatpush1.msra.mxu0 %v1555
  %1582 = vmatprep.subr.mxu0 0.0
  %1583 = vmatpush1.msra.mxu0 %v1554
  %1584 = vmatprep.subr.mxu0 0.0
  %1585 = vmatpush1.msra.mxu0 %v1553
  %1586 = vmatprep.subr.mxu0 0.0
  %1587 = vmatpush1.msra.mxu0 %v1552
  %1588 = vmatprep.subr.mxu0 0.0
  %1589 = vmatpush1.msra.mxu0 %v1551
  %1590 = vmatprep.subr.mxu0 0.0
  %1591 = vmatpush1.msra.mxu0 %v1550
  %1592 = vmatprep.subr.mxu0 0.0
  %1593 = vmatpush1.msra.mxu0 %v1549
  %1594 = vmatprep.subr.mxu0 0.0
  %1595 = vmatpush2.msra.mxu0 0.0
  %1596 = vmatprep.subr.mxu0 0.0
  %1597 = vmatpush2.msra.mxu0 0.0
  %1598 = vmatprep.subr.mxu0 0.0
  %1599 = vmatpush2.msra.mxu0 0.0
  %1600 = vmatprep.subr.mxu0 0.0
  %1601 = vmatpush2.msra.mxu0 0.0
  %1602 = vmatprep.subr.mxu0 0.0
  %1603 = vmatpush2.msra.mxu0 0.0
  %1604 = vmatprep.subr.mxu0 0.0
  %1605 = vmatpush2.msra.mxu0 0.0
  %1606 = vmatprep.subr.mxu0 0.0
  %1607 = vmatpush2.msra.mxu0 0.0
  %1608 = vmatprep.subr.mxu0 0.0
  %1609 = vmatpush2.msra.mxu0 0.0
  %1610 = vmatprep.subr.mxu0 0.0
  %1611 = vmatpush2.msra.mxu0 0.0
  %1612 = vmatprep.subr.mxu0 0.0
  %1613 = vmatpush2.msra.mxu0 0.0
  %1614 = vmatprep.subr.mxu0 0.0
  %1615 = vmatpush2.msra.mxu0 0.0
  %1616 = vmatprep.subr.mxu0 0.0
  %1617 = vmatpush2.msra.mxu0 0.0
  %1618 = vmatprep.subr.mxu0 0.0
  %1619 = vmatpush2.msra.mxu0 0.0
  %1620 = vmatprep.subr.mxu0 0.0
  %1621 = vmatpush2.msra.mxu0 0.0
  %1622 = vmatprep.subr.mxu0 0.0
  %1623 = vmatpush2.msra.mxu0 0.0
  %1624 = vmatprep.subr.mxu0 0.0
  %1625 = vmatpush2.msra.mxu0 0.0
  %1626 = vmatprep.mubr.f32.mxu0 0.0
  %1627 = vmatmul.mubr.f32.gmra.mxu0 %v1557
  %v1628 = vpop.f32.mrf.mxu0
  %v1629 = vadd.f32 0.0, %v1628
  %v1630 = vpop.f32.mrf.mxu0
  %1631 = vmatprep.mubr.f32.mxu0 0.0
  %1632 = vmatmul.mubr.f32.gmra.mxu0 %v1560
  %v1633 = vpop.f32.mrf.mxu0
  %v1634 = vadd.f32 0.0, %v1633
  %v1635 = vpop.f32.mrf.mxu0
  %1636 = vdwg.mxu0
  %v1638 = vsel %vm1151, %v1442, 0
  %v1641 = vsel %vm1151, %v1447, 0
  %1643 = vmatprep.subr.mxu0 0.0
  %1644 = vmatpush1.msra.mxu0 0.0
  %1645 = vmatprep.subr.mxu0 0.0
  %1646 = vmatpush1.msra.mxu0 0.0
  %1647 = vmatprep.subr.mxu0 0.0
  %1648 = vmatpush1.msra.mxu0 0.0
  %1649 = vmatprep.subr.mxu0 0.0
  %1650 = vmatpush1.msra.mxu0 0.0
  %1651 = vmatprep.subr.mxu0 0.0
  %1652 = vmatpush1.msra.mxu0 0.0
  %1653 = vmatprep.subr.mxu0 0.0
  %1654 = vmatpush1.msra.mxu0 0.0
  %1655 = vmatprep.subr.mxu0 0.0
  %1656 = vmatpush1.msra.mxu0 0.0
  %1657 = vmatprep.subr.mxu0 0.0
  %1658 = vmatpush1.msra.mxu0 0.0
  %1659 = vmatprep.subr.mxu0 0.0
  %1660 = vmatpush1.msra.mxu0 0.0
  %1661 = vmatprep.subr.mxu0 0.0
  %1662 = vmatpush1.msra.mxu0 %v1456
  %1663 = vmatprep.subr.mxu0 0.0
  %1664 = vmatpush1.msra.mxu0 %v1455
  %1665 = vmatprep.subr.mxu0 0.0
  %1666 = vmatpush1.msra.mxu0 %v1454
  %1667 = vmatprep.subr.mxu0 0.0
  %1668 = vmatpush1.msra.mxu0 %v1453
  %1669 = vmatprep.subr.mxu0 0.0
  %1670 = vmatpush1.msra.mxu0 %v1452
  %1671 = vmatprep.subr.mxu0 0.0
  %1672 = vmatpush1.msra.mxu0 %v1451
  %1673 = vmatprep.subr.mxu0 0.0
  %1674 = vmatpush1.msra.mxu0 %v1450
  %1675 = vmatprep.subr.mxu0 0.0
  %1676 = vmatpush2.msra.mxu0 0.0
  %1677 = vmatprep.subr.mxu0 0.0
  %1678 = vmatpush2.msra.mxu0 0.0
  %1679 = vmatprep.subr.mxu0 0.0
  %1680 = vmatpush2.msra.mxu0 0.0
  %1681 = vmatprep.subr.mxu0 0.0
  %1682 = vmatpush2.msra.mxu0 0.0
  %1683 = vmatprep.subr.mxu0 0.0
  %1684 = vmatpush2.msra.mxu0 0.0
  %1685 = vmatprep.subr.mxu0 0.0
  %1686 = vmatpush2.msra.mxu0 0.0
  %1687 = vmatprep.subr.mxu0 0.0
  %1688 = vmatpush2.msra.mxu0 0.0
  %1689 = vmatprep.subr.mxu0 0.0
  %1690 = vmatpush2.msra.mxu0 0.0
  %1691 = vmatprep.subr.mxu0 0.0
  %1692 = vmatpush2.msra.mxu0 0.0
  %1693 = vmatprep.subr.mxu0 0.0
  %1694 = vmatpush2.msra.mxu0 0.0
  %1695 = vmatprep.subr.mxu0 0.0
  %1696 = vmatpush2.msra.mxu0 0.0
  %1697 = vmatprep.subr.mxu0 0.0
  %1698 = vmatpush2.msra.mxu0 0.0
  %1699 = vmatprep.subr.mxu0 0.0
  %1700 = vmatpush2.msra.mxu0 0.0
  %1701 = vmatprep.subr.mxu0 0.0
  %1702 = vmatpush2.msra.mxu0 0.0
  %1703 = vmatprep.subr.mxu0 0.0
  %1704 = vmatpush2.msra.mxu0 0.0
  %1705 = vmatprep.subr.mxu0 0.0
  %1706 = vmatpush2.msra.mxu0 0.0
  %1707 = vmatprep.mubr.f32.mxu0 0.0
  %1708 = vmatmul.mubr.f32.gmra.mxu0 %v1638
  %v1709 = vpop.f32.mrf.mxu0
  %v1710 = vadd.f32 %v1629, %v1709
  %v1711 = vpop.f32.mrf.mxu0
  %1712 = vmatprep.mubr.f32.mxu0 0.0
  %1713 = vmatmul.mubr.f32.gmra.mxu0 %v1641
  %v1714 = vpop.f32.mrf.mxu0
  %v1715 = vadd.f32 %v1634, %v1714
  %v1716 = vpop.f32.mrf.mxu0
  %1717 = vdwg.mxu0
  %s1718 = scalar_lea.vmem %s11, 56
  %v1719 = vld [vmem:[%s1718] sm:$0xff]
  %v1720 = vld [vmem:[%s1718 + $0x8] sm:$0xff]
  %v1721 = vld [vmem:[%s1718 + $0x10] sm:$0xff]
  %v1722 = vld [vmem:[%s1718 + $0x18] sm:$0xff]
  %v1723 = vld [vmem:[%s1718 + $0x20] sm:$0xff]
  %v1724 = vld [vmem:[%s1718 + $0x28] sm:$0xff]
  %v1725 = vld [vmem:[%s1718 + $0x30] sm:$0xff]
  %1726 = vmatprep.subr.mxu0 0.0
  %1727 = vmatpush1.msra.mxu0 0.0
  %1728 = vmatprep.subr.mxu0 0.0
  %1729 = vmatpush1.msra.mxu0 0.0
  %1730 = vmatprep.subr.mxu0 0.0
  %1731 = vmatpush1.msra.mxu0 0.0
  %1732 = vmatprep.subr.mxu0 0.0
  %1733 = vmatpush1.msra.mxu0 0.0
  %1734 = vmatprep.subr.mxu0 0.0
  %1735 = vmatpush1.msra.mxu0 0.0
  %1736 = vmatprep.subr.mxu0 0.0
  %1737 = vmatpush1.msra.mxu0 0.0
  %1738 = vmatprep.subr.mxu0 0.0
  %1739 = vmatpush1.msra.mxu0 0.0
  %1740 = vmatprep.subr.mxu0 0.0
  %1741 = vmatpush1.msra.mxu0 0.0
  %1742 = vmatprep.subr.mxu0 0.0
  %1743 = vmatpush1.msra.mxu0 0.0
  %1744 = vmatprep.subr.mxu0 0.0
  %1745 = vmatpush1.msra.mxu0 %v1725
  %1746 = vmatprep.subr.mxu0 0.0
  %1747 = vmatpush1.msra.mxu0 %v1724
  %1748 = vmatprep.subr.mxu0 0.0
  %1749 = vmatpush1.msra.mxu0 %v1723
  %1750 = vmatprep.subr.mxu0 0.0
  %1751 = vmatpush1.msra.mxu0 %v1722
  %1752 = vmatprep.subr.mxu0 0.0
  %1753 = vmatpush1.msra.mxu0 %v1721
  %1754 = vmatprep.subr.mxu0 0.0
  %1755 = vmatpush1.msra.mxu0 %v1720
  %1756 = vmatprep.subr.mxu0 0.0
  %1757 = vmatpush1.msra.mxu0 %v1719
  %1758 = vmatprep.subr.mxu0 0.0
  %1759 = vmatpush2.msra.mxu0 0.0
  %1760 = vmatprep.subr.mxu0 0.0
  %1761 = vmatpush2.msra.mxu0 0.0
  %1762 = vmatprep.subr.mxu0 0.0
  %1763 = vmatpush2.msra.mxu0 0.0
  %1764 = vmatprep.subr.mxu0 0.0
  %1765 = vmatpush2.msra.mxu0 0.0
  %1766 = vmatprep.subr.mxu0 0.0
  %1767 = vmatpush2.msra.mxu0 0.0
  %1768 = vmatprep.subr.mxu0 0.0
  %1769 = vmatpush2.msra.mxu0 0.0
  %1770 = vmatprep.subr.mxu0 0.0
  %1771 = vmatpush2.msra.mxu0 0.0
  %1772 = vmatprep.subr.mxu0 0.0
  %1773 = vmatpush2.msra.mxu0 0.0
  %1774 = vmatprep.subr.mxu0 0.0
  %1775 = vmatpush2.msra.mxu0 0.0
  %1776 = vmatprep.subr.mxu0 0.0
  %1777 = vmatpush2.msra.mxu0 0.0
  %1778 = vmatprep.subr.mxu0 0.0
  %1779 = vmatpush2.msra.mxu0 0.0
  %1780 = vmatprep.subr.mxu0 0.0
  %1781 = vmatpush2.msra.mxu0 0.0
  %1782 = vmatprep.subr.mxu0 0.0
  %1783 = vmatpush2.msra.mxu0 0.0
  %1784 = vmatprep.subr.mxu0 0.0
  %1785 = vmatpush2.msra.mxu0 0.0
  %1786 = vmatprep.subr.mxu0 0.0
  %1787 = vmatpush2.msra.mxu0 0.0
  %1788 = vmatprep.subr.mxu0 0.0
  %1789 = vmatpush2.msra.mxu0 0.0
  %1790 = vmatprep.mubr.f32.mxu0 0.0
  %1791 = vmatmul.mubr.f32.gmra.mxu0 %v1557
  %v1792 = vpop.f32.mrf.mxu0
  %v1793 = vadd.f32 0.0, %v1792
  %v1794 = vpop.f32.mrf.mxu0
  %1795 = vmatprep.mubr.f32.mxu0 0.0
  %1796 = vmatmul.mubr.f32.gmra.mxu0 %v1560
  %v1797 = vpop.f32.mrf.mxu0
  %v1798 = vadd.f32 0.0, %v1797
  %v1799 = vpop.f32.mrf.mxu0
  %1800 = vdwg.mxu0
  %1801 = vmatprep.subr.mxu0 0.0
  %1802 = vmatpush1.msra.mxu0 0.0
  %1803 = vmatprep.subr.mxu0 0.0
  %1804 = vmatpush1.msra.mxu0 0.0
  %1805 = vmatprep.subr.mxu0 0.0
  %1806 = vmatpush1.msra.mxu0 0.0
  %1807 = vmatprep.subr.mxu0 0.0
  %1808 = vmatpush1.msra.mxu0 0.0
  %1809 = vmatprep.subr.mxu0 0.0
  %1810 = vmatpush1.msra.mxu0 0.0
  %1811 = vmatprep.subr.mxu0 0.0
  %1812 = vmatpush1.msra.mxu0 0.0
  %1813 = vmatprep.subr.mxu0 0.0
  %1814 = vmatpush1.msra.mxu0 0.0
  %1815 = vmatprep.subr.mxu0 0.0
  %1816 = vmatpush1.msra.mxu0 0.0
  %1817 = vmatprep.subr.mxu0 0.0
  %1818 = vmatpush1.msra.mxu0 0.0
  %1819 = vmatprep.subr.mxu0 0.0
  %1820 = vmatpush1.msra.mxu0 %v1463
  %1821 = vmatprep.subr.mxu0 0.0
  %1822 = vmatpush1.msra.mxu0 %v1462
  %1823 = vmatprep.subr.mxu0 0.0
  %1824 = vmatpush1.msra.mxu0 %v1461
  %1825 = vmatprep.subr.mxu0 0.0
  %1826 = vmatpush1.msra.mxu0 %v1460
  %1827 = vmatprep.subr.mxu0 0.0
  %1828 = vmatpush1.msra.mxu0 %v1459
  %1829 = vmatprep.subr.mxu0 0.0
  %1830 = vmatpush1.msra.mxu0 %v1458
  %1831 = vmatprep.subr.mxu0 0.0
  %1832 = vmatpush1.msra.mxu0 %v1457
  %1833 = vmatprep.subr.mxu0 0.0
  %1834 = vmatpush2.msra.mxu0 0.0
  %1835 = vmatprep.subr.mxu0 0.0
  %1836 = vmatpush2.msra.mxu0 0.0
  %1837 = vmatprep.subr.mxu0 0.0
  %1838 = vmatpush2.msra.mxu0 0.0
  %1839 = vmatprep.subr.mxu0 0.0
  %1840 = vmatpush2.msra.mxu0 0.0
  %1841 = vmatprep.subr.mxu0 0.0
  %1842 = vmatpush2.msra.mxu0 0.0
  %1843 = vmatprep.subr.mxu0 0.0
  %1844 = vmatpush2.msra.mxu0 0.0
  %1845 = vmatprep.subr.mxu0 0.0
  %1846 = vmatpush2.msra.mxu0 0.0
  %1847 = vmatprep.subr.mxu0 0.0
  %1848 = vmatpush2.msra.mxu0 0.0
  %1849 = vmatprep.subr.mxu0 0.0
  %1850 = vmatpush2.msra.mxu0 0.0
  %1851 = vmatprep.subr.mxu0 0.0
  %1852 = vmatpush2.msra.mxu0 0.0
  %1853 = vmatprep.subr.mxu0 0.0
  %1854 = vmatpush2.msra.mxu0 0.0
  %1855 = vmatprep.subr.mxu0 0.0
  %1856 = vmatpush2.msra.mxu0 0.0
  %1857 = vmatprep.subr.mxu0 0.0
  %1858 = vmatpush2.msra.mxu0 0.0
  %1859 = vmatprep.subr.mxu0 0.0
  %1860 = vmatpush2.msra.mxu0 0.0
  %1861 = vmatprep.subr.mxu0 0.0
  %1862 = vmatpush2.msra.mxu0 0.0
  %1863 = vmatprep.subr.mxu0 0.0
  %1864 = vmatpush2.msra.mxu0 0.0
  %1865 = vmatprep.mubr.f32.mxu0 0.0
  %1866 = vmatmul.mubr.f32.gmra.mxu0 %v1638
  %v1867 = vpop.f32.mrf.mxu0
  %v1868 = vadd.f32 %v1793, %v1867
  %v1869 = vpop.f32.mrf.mxu0
  %1870 = vmatprep.mubr.f32.mxu0 0.0
  %1871 = vmatmul.mubr.f32.gmra.mxu0 %v1641
  %v1872 = vpop.f32.mrf.mxu0
  %v1873 = vadd.f32 %v1798, %v1872
  %v1874 = vpop.f32.mrf.mxu0
  %1875 = vdwg.mxu0
  %s1876 = scalar_lea.vmem %s9, 32
  %v1877 = vld [vmem:[%s1876] sm:$0xff]
  %v1878 = vld [vmem:[%s1876 + $0x8] sm:$0xff]
  %v1880 = vsel %vm1365, %v1877, 0
  %v1883 = vsel %vm1365, %v1878, 0
  %1885 = vmatprep.subr.mxu0 0.0
  %1886 = vmatpush1.msra.mxu0 0.0
  %1887 = vmatprep.subr.mxu0 0.0
  %1888 = vmatpush1.msra.mxu0 0.0
  %1889 = vmatprep.subr.mxu0 0.0
  %1890 = vmatpush1.msra.mxu0 0.0
  %1891 = vmatprep.subr.mxu0 0.0
  %1892 = vmatpush1.msra.mxu0 0.0
  %1893 = vmatprep.subr.mxu0 0.0
  %1894 = vmatpush1.msra.mxu0 0.0
  %1895 = vmatprep.subr.mxu0 0.0
  %1896 = vmatpush1.msra.mxu0 0.0
  %1897 = vmatprep.subr.mxu0 0.0
  %1898 = vmatpush1.msra.mxu0 0.0
  %1899 = vmatprep.subr.mxu0 0.0
  %1900 = vmatpush1.msra.mxu0 0.0
  %1901 = vmatprep.subr.mxu0 0.0
  %1902 = vmatpush1.msra.mxu0 0.0
  %1903 = vmatprep.subr.mxu0 0.0
  %1904 = vmatpush1.msra.mxu0 0.0
  %1905 = vmatprep.subr.mxu0 0.0
  %1906 = vmatpush1.msra.mxu0 0.0
  %1907 = vmatprep.subr.mxu0 0.0
  %1908 = vmatpush1.msra.mxu0 0.0
  %1909 = vmatprep.subr.mxu0 0.0
  %1910 = vmatpush1.msra.mxu0 0.0
  %1911 = vmatprep.subr.mxu0 0.0
  %1912 = vmatpush1.msra.mxu0 0.0
  %1913 = vmatprep.subr.mxu0 0.0
  %1914 = vmatpush1.msra.mxu0 %v1373
  %1915 = vmatprep.subr.mxu0 0.0
  %1916 = vmatpush1.msra.mxu0 %v1361
  %1917 = vmatprep.subr.mxu0 0.0
  %1918 = vmatpush2.msra.mxu0 0.0
  %1919 = vmatprep.subr.mxu0 0.0
  %1920 = vmatpush2.msra.mxu0 0.0
  %1921 = vmatprep.subr.mxu0 0.0
  %1922 = vmatpush2.msra.mxu0 0.0
  %1923 = vmatprep.subr.mxu0 0.0
  %1924 = vmatpush2.msra.mxu0 0.0
  %1925 = vmatprep.subr.mxu0 0.0
  %1926 = vmatpush2.msra.mxu0 0.0
  %1927 = vmatprep.subr.mxu0 0.0
  %1928 = vmatpush2.msra.mxu0 0.0
  %1929 = vmatprep.subr.mxu0 0.0
  %1930 = vmatpush2.msra.mxu0 0.0
  %1931 = vmatprep.subr.mxu0 0.0
  %1932 = vmatpush2.msra.mxu0 0.0
  %1933 = vmatprep.subr.mxu0 0.0
  %1934 = vmatpush2.msra.mxu0 0.0
  %1935 = vmatprep.subr.mxu0 0.0
  %1936 = vmatpush2.msra.mxu0 0.0
  %1937 = vmatprep.subr.mxu0 0.0
  %1938 = vmatpush2.msra.mxu0 0.0
  %1939 = vmatprep.subr.mxu0 0.0
  %1940 = vmatpush2.msra.mxu0 0.0
  %1941 = vmatprep.subr.mxu0 0.0
  %1942 = vmatpush2.msra.mxu0 0.0
  %1943 = vmatprep.subr.mxu0 0.0
  %1944 = vmatpush2.msra.mxu0 0.0
  %1945 = vmatprep.subr.mxu0 0.0
  %1946 = vmatpush2.msra.mxu0 0.0
  %1947 = vmatprep.subr.mxu0 0.0
  %1948 = vmatpush2.msra.mxu0 0.0
  %1949 = vmatprep.mubr.f32.mxu0 0.0
  %1950 = vmatmul.mubr.f32.gmra.mxu0 %v1880
  %v1951 = vpop.f32.mrf.mxu0
  %v1952 = vadd.f32 0.0, %v1951
  %v1953 = vpop.f32.mrf.mxu0
  %1954 = vmatprep.mubr.f32.mxu0 0.0
  %1955 = vmatmul.mubr.f32.gmra.mxu0 %v1883
  %v1956 = vpop.f32.mrf.mxu0
  %v1957 = vadd.f32 0.0, %v1956
  %v1958 = vpop.f32.mrf.mxu0
  %1959 = vdwg.mxu0
  %s1960 = scalar_lea.vmem %s10, 112
  %v1961 = vld [vmem:[%s1960] sm:$0xff]
  %v1962 = vld [vmem:[%s1960 + $0x8] sm:$0xff]
  %v1963 = vld [vmem:[%s1960 + $0x10] sm:$0xff]
  %v1964 = vld [vmem:[%s1960 + $0x18] sm:$0xff]
  %v1965 = vld [vmem:[%s1960 + $0x20] sm:$0xff]
  %v1966 = vld [vmem:[%s1960 + $0x28] sm:$0xff]
  %v1967 = vld [vmem:[%s1960 + $0x30] sm:$0xff]
  %v1969 = vsel %vm1151, %v1952, 0
  %v1972 = vsel %vm1151, %v1957, 0
  %1974 = vmatprep.subr.mxu0 0.0
  %1975 = vmatpush1.msra.mxu0 0.0
  %1976 = vmatprep.subr.mxu0 0.0
  %1977 = vmatpush1.msra.mxu0 0.0
  %1978 = vmatprep.subr.mxu0 0.0
  %1979 = vmatpush1.msra.mxu0 0.0
  %1980 = vmatprep.subr.mxu0 0.0
  %1981 = vmatpush1.msra.mxu0 0.0
  %1982 = vmatprep.subr.mxu0 0.0
  %1983 = vmatpush1.msra.mxu0 0.0
  %1984 = vmatprep.subr.mxu0 0.0
  %1985 = vmatpush1.msra.mxu0 0.0
  %1986 = vmatprep.subr.mxu0 0.0
  %1987 = vmatpush1.msra.mxu0 0.0
  %1988 = vmatprep.subr.mxu0 0.0
  %1989 = vmatpush1.msra.mxu0 0.0
  %1990 = vmatprep.subr.mxu0 0.0
  %1991 = vmatpush1.msra.mxu0 0.0
  %1992 = vmatprep.subr.mxu0 0.0
  %1993 = vmatpush1.msra.mxu0 %v1967
  %1994 = vmatprep.subr.mxu0 0.0
  %1995 = vmatpush1.msra.mxu0 %v1966
  %1996 = vmatprep.subr.mxu0 0.0
  %1997 = vmatpush1.msra.mxu0 %v1965
  %1998 = vmatprep.subr.mxu0 0.0
  %1999 = vmatpush1.msra.mxu0 %v1964
  %2000 = vmatprep.subr.mxu0 0.0
  %2001 = vmatpush1.msra.mxu0 %v1963
  %2002 = vmatprep.subr.mxu0 0.0
  %2003 = vmatpush1.msra.mxu0 %v1962
  %2004 = vmatprep.subr.mxu0 0.0
  %2005 = vmatpush1.msra.mxu0 %v1961
  %2006 = vmatprep.subr.mxu0 0.0
  %2007 = vmatpush2.msra.mxu0 0.0
  %2008 = vmatprep.subr.mxu0 0.0
  %2009 = vmatpush2.msra.mxu0 0.0
  %2010 = vmatprep.subr.mxu0 0.0
  %2011 = vmatpush2.msra.mxu0 0.0
  %2012 = vmatprep.subr.mxu0 0.0
  %2013 = vmatpush2.msra.mxu0 0.0
  %2014 = vmatprep.subr.mxu0 0.0
  %2015 = vmatpush2.msra.mxu0 0.0
  %2016 = vmatprep.subr.mxu0 0.0
  %2017 = vmatpush2.msra.mxu0 0.0
  %2018 = vmatprep.subr.mxu0 0.0
  %2019 = vmatpush2.msra.mxu0 0.0
  %2020 = vmatprep.subr.mxu0 0.0
  %2021 = vmatpush2.msra.mxu0 0.0
  %2022 = vmatprep.subr.mxu0 0.0
  %2023 = vmatpush2.msra.mxu0 0.0
  %2024 = vmatprep.subr.mxu0 0.0
  %2025 = vmatpush2.msra.mxu0 0.0
  %2026 = vmatprep.subr.mxu0 0.0
  %2027 = vmatpush2.msra.mxu0 0.0
  %2028 = vmatprep.subr.mxu0 0.0
  %2029 = vmatpush2.msra.mxu0 0.0
  %2030 = vmatprep.subr.mxu0 0.0
  %2031 = vmatpush2.msra.mxu0 0.0
  %2032 = vmatprep.subr.mxu0 0.0
  %2033 = vmatpush2.msra.mxu0 0.0
  %2034 = vmatprep.subr.mxu0 0.0
  %2035 = vmatpush2.msra.mxu0 0.0
  %2036 = vmatprep.subr.mxu0 0.0
  %2037 = vmatpush2.msra.mxu0 0.0
  %2038 = vmatprep.mubr.f32.mxu0 0.0
  %2039 = vmatmul.mubr.f32.gmra.mxu0 %v1969
  %v2040 = vpop.f32.mrf.mxu0
  %v2041 = vadd.f32 0.0, %v2040
  %v2042 = vpop.f32.mrf.mxu0
  %2043 = vmatprep.mubr.f32.mxu0 0.0
  %2044 = vmatmul.mubr.f32.gmra.mxu0 %v1972
  %v2045 = vpop.f32.mrf.mxu0
  %v2046 = vadd.f32 0.0, %v2045
  %v2047 = vpop.f32.mrf.mxu0
  %2048 = vdwg.mxu0
  %v2049 = vadd.f32 %v1710, %v2041
  %v2050 = vadd.f32 %v1715, %v2046
  %s2051 = scalar_lea.vmem %s11, 112
  %v2052 = vld [vmem:[%s2051] sm:$0xff]
  %v2053 = vld [vmem:[%s2051 + $0x8] sm:$0xff]
  %v2054 = vld [vmem:[%s2051 + $0x10] sm:$0xff]
  %v2055 = vld [vmem:[%s2051 + $0x18] sm:$0xff]
  %v2056 = vld [vmem:[%s2051 + $0x20] sm:$0xff]
  %v2057 = vld [vmem:[%s2051 + $0x28] sm:$0xff]
  %v2058 = vld [vmem:[%s2051 + $0x30] sm:$0xff]
  %2059 = vmatprep.subr.mxu0 0.0
  %2060 = vmatpush1.msra.mxu0 0.0
  %2061 = vmatprep.subr.mxu0 0.0
  %2062 = vmatpush1.msra.mxu0 0.0
  %2063 = vmatprep.subr.mxu0 0.0
  %2064 = vmatpush1.msra.mxu0 0.0
  %2065 = vmatprep.subr.mxu0 0.0
  %2066 = vmatpush1.msra.mxu0 0.0
  %2067 = vmatprep.subr.mxu0 0.0
  %2068 = vmatpush1.msra.mxu0 0.0
  %2069 = vmatprep.subr.mxu0 0.0
  %2070 = vmatpush1.msra.mxu0 0.0
  %2071 = vmatprep.subr.mxu0 0.0
  %2072 = vmatpush1.msra.mxu0 0.0
  %2073 = vmatprep.subr.mxu0 0.0
  %2074 = vmatpush1.msra.mxu0 0.0
  %2075 = vmatprep.subr.mxu0 0.0
  %2076 = vmatpush1.msra.mxu0 0.0
  %2077 = vmatprep.subr.mxu0 0.0
  %2078 = vmatpush1.msra.mxu0 %v2058
  %2079 = vmatprep.subr.mxu0 0.0
  %2080 = vmatpush1.msra.mxu0 %v2057
  %2081 = vmatprep.subr.mxu0 0.0
  %2082 = vmatpush1.msra.mxu0 %v2056
  %2083 = vmatprep.subr.mxu0 0.0
  %2084 = vmatpush1.msra.mxu0 %v2055
  %2085 = vmatprep.subr.mxu0 0.0
  %2086 = vmatpush1.msra.mxu0 %v2054
  %2087 = vmatprep.subr.mxu0 0.0
  %2088 = vmatpush1.msra.mxu0 %v2053
  %2089 = vmatprep.subr.mxu0 0.0
  %2090 = vmatpush1.msra.mxu0 %v2052
  %2091 = vmatprep.subr.mxu0 0.0
  %2092 = vmatpush2.msra.mxu0 0.0
  %2093 = vmatprep.subr.mxu0 0.0
  %2094 = vmatpush2.msra.mxu0 0.0
  %2095 = vmatprep.subr.mxu0 0.0
  %2096 = vmatpush2.msra.mxu0 0.0
  %2097 = vmatprep.subr.mxu0 0.0
  %2098 = vmatpush2.msra.mxu0 0.0
  %2099 = vmatprep.subr.mxu0 0.0
  %2100 = vmatpush2.msra.mxu0 0.0
  %2101 = vmatprep.subr.mxu0 0.0
  %2102 = vmatpush2.msra.mxu0 0.0
  %2103 = vmatprep.subr.mxu0 0.0
  %2104 = vmatpush2.msra.mxu0 0.0
  %2105 = vmatprep.subr.mxu0 0.0
  %2106 = vmatpush2.msra.mxu0 0.0
  %2107 = vmatprep.subr.mxu0 0.0
  %2108 = vmatpush2.msra.mxu0 0.0
  %2109 = vmatprep.subr.mxu0 0.0
  %2110 = vmatpush2.msra.mxu0 0.0
  %2111 = vmatprep.subr.mxu0 0.0
  %2112 = vmatpush2.msra.mxu0 0.0
  %2113 = vmatprep.subr.mxu0 0.0
  %2114 = vmatpush2.msra.mxu0 0.0
  %2115 = vmatprep.subr.mxu0 0.0
  %2116 = vmatpush2.msra.mxu0 0.0
  %2117 = vmatprep.subr.mxu0 0.0
  %2118 = vmatpush2.msra.mxu0 0.0
  %2119 = vmatprep.subr.mxu0 0.0
  %2120 = vmatpush2.msra.mxu0 0.0
  %2121 = vmatprep.subr.mxu0 0.0
  %2122 = vmatpush2.msra.mxu0 0.0
  %2123 = vmatprep.mubr.f32.mxu0 0.0
  %2124 = vmatmul.mubr.f32.gmra.mxu0 %v1969
  %v2125 = vpop.f32.mrf.mxu0
  %v2126 = vadd.f32 0.0, %v2125
  %v2127 = vpop.f32.mrf.mxu0
  %2128 = vmatprep.mubr.f32.mxu0 0.0
  %2129 = vmatmul.mubr.f32.gmra.mxu0 %v1972
  %v2130 = vpop.f32.mrf.mxu0
  %v2131 = vadd.f32 0.0, %v2130
  %v2132 = vpop.f32.mrf.mxu0
  %2133 = vdwg.mxu0
  %v2134 = vadd.f32 %v1868, %v2126
  %v2135 = vadd.f32 %v1873, %v2131
  %s2136 = scalar_lea.vmem %s9, 48
  %v2137 = vld [vmem:[%s2136] sm:$0xff]
  %v2138 = vld [vmem:[%s2136 + $0x8] sm:$0xff]
  %v2140 = vsel %vm1365, %v2137, 0
  %v2143 = vsel %vm1365, %v2138, 0
  %2145 = vmatprep.subr.mxu0 0.0
  %2146 = vmatpush1.msra.mxu0 0.0
  %2147 = vmatprep.subr.mxu0 0.0
  %2148 = vmatpush1.msra.mxu0 0.0
  %2149 = vmatprep.subr.mxu0 0.0
  %2150 = vmatpush1.msra.mxu0 0.0
  %2151 = vmatprep.subr.mxu0 0.0
  %2152 = vmatpush1.msra.mxu0 0.0
  %2153 = vmatprep.subr.mxu0 0.0
  %2154 = vmatpush1.msra.mxu0 0.0
  %2155 = vmatprep.subr.mxu0 0.0
  %2156 = vmatpush1.msra.mxu0 0.0
  %2157 = vmatprep.subr.mxu0 0.0
  %2158 = vmatpush1.msra.mxu0 0.0
  %2159 = vmatprep.subr.mxu0 0.0
  %2160 = vmatpush1.msra.mxu0 0.0
  %2161 = vmatprep.subr.mxu0 0.0
  %2162 = vmatpush1.msra.mxu0 0.0
  %2163 = vmatprep.subr.mxu0 0.0
  %2164 = vmatpush1.msra.mxu0 0.0
  %2165 = vmatprep.subr.mxu0 0.0
  %2166 = vmatpush1.msra.mxu0 0.0
  %2167 = vmatprep.subr.mxu0 0.0
  %2168 = vmatpush1.msra.mxu0 0.0
  %2169 = vmatprep.subr.mxu0 0.0
  %2170 = vmatpush1.msra.mxu0 0.0
  %2171 = vmatprep.subr.mxu0 0.0
  %2172 = vmatpush1.msra.mxu0 0.0
  %2173 = vmatprep.subr.mxu0 0.0
  %2174 = vmatpush1.msra.mxu0 %v1373
  %2175 = vmatprep.subr.mxu0 0.0
  %2176 = vmatpush1.msra.mxu0 %v1361
  %2177 = vmatprep.subr.mxu0 0.0
  %2178 = vmatpush2.msra.mxu0 0.0
  %2179 = vmatprep.subr.mxu0 0.0
  %2180 = vmatpush2.msra.mxu0 0.0
  %2181 = vmatprep.subr.mxu0 0.0
  %2182 = vmatpush2.msra.mxu0 0.0
  %2183 = vmatprep.subr.mxu0 0.0
  %2184 = vmatpush2.msra.mxu0 0.0
  %2185 = vmatprep.subr.mxu0 0.0
  %2186 = vmatpush2.msra.mxu0 0.0
  %2187 = vmatprep.subr.mxu0 0.0
  %2188 = vmatpush2.msra.mxu0 0.0
  %2189 = vmatprep.subr.mxu0 0.0
  %2190 = vmatpush2.msra.mxu0 0.0
  %2191 = vmatprep.subr.mxu0 0.0
  %2192 = vmatpush2.msra.mxu0 0.0
  %2193 = vmatprep.subr.mxu0 0.0
  %2194 = vmatpush2.msra.mxu0 0.0
  %2195 = vmatprep.subr.mxu0 0.0
  %2196 = vmatpush2.msra.mxu0 0.0
  %2197 = vmatprep.subr.mxu0 0.0
  %2198 = vmatpush2.msra.mxu0 0.0
  %2199 = vmatprep.subr.mxu0 0.0
  %2200 = vmatpush2.msra.mxu0 0.0
  %2201 = vmatprep.subr.mxu0 0.0
  %2202 = vmatpush2.msra.mxu0 0.0
  %2203 = vmatprep.subr.mxu0 0.0
  %2204 = vmatpush2.msra.mxu0 0.0
  %2205 = vmatprep.subr.mxu0 0.0
  %2206 = vmatpush2.msra.mxu0 0.0
  %2207 = vmatprep.subr.mxu0 0.0
  %2208 = vmatpush2.msra.mxu0 0.0
  %2209 = vmatprep.mubr.f32.mxu0 0.0
  %2210 = vmatmul.mubr.f32.gmra.mxu0 %v2140
  %v2211 = vpop.f32.mrf.mxu0
  %v2212 = vadd.f32 0.0, %v2211
  %v2213 = vpop.f32.mrf.mxu0
  %2214 = vmatprep.mubr.f32.mxu0 0.0
  %2215 = vmatmul.mubr.f32.gmra.mxu0 %v2143
  %v2216 = vpop.f32.mrf.mxu0
  %v2217 = vadd.f32 0.0, %v2216
  %v2218 = vpop.f32.mrf.mxu0
  %2219 = vdwg.mxu0
  %s2220 = scalar_lea.vmem %s10, 168
  %v2221 = vld [vmem:[%s2220] sm:$0xff]
  %v2222 = vld [vmem:[%s2220 + $0x8] sm:$0xff]
  %v2223 = vld [vmem:[%s2220 + $0x10] sm:$0xff]
  %v2224 = vld [vmem:[%s2220 + $0x18] sm:$0xff]
  %v2225 = vld [vmem:[%s2220 + $0x20] sm:$0xff]
  %v2226 = vld [vmem:[%s2220 + $0x28] sm:$0xff]
  %v2227 = vld [vmem:[%s2220 + $0x30] sm:$0xff]
  %v2229 = vsel %vm1151, %v2212, 0
  %v2232 = vsel %vm1151, %v2217, 0
  %2234 = vmatprep.subr.mxu0 0.0
  %2235 = vmatpush1.msra.mxu0 0.0
  %2236 = vmatprep.subr.mxu0 0.0
  %2237 = vmatpush1.msra.mxu0 0.0
  %2238 = vmatprep.subr.mxu0 0.0
  %2239 = vmatpush1.msra.mxu0 0.0
  %2240 = vmatprep.subr.mxu0 0.0
  %2241 = vmatpush1.msra.mxu0 0.0
  %2242 = vmatprep.subr.mxu0 0.0
  %2243 = vmatpush1.msra.mxu0 0.0
  %2244 = vmatprep.subr.mxu0 0.0
  %2245 = vmatpush1.msra.mxu0 0.0
  %2246 = vmatprep.subr.mxu0 0.0
  %2247 = vmatpush1.msra.mxu0 0.0
  %2248 = vmatprep.subr.mxu0 0.0
  %2249 = vmatpush1.msra.mxu0 0.0
  %2250 = vmatprep.subr.mxu0 0.0
  %2251 = vmatpush1.msra.mxu0 0.0
  %2252 = vmatprep.subr.mxu0 0.0
  %2253 = vmatpush1.msra.mxu0 %v2227
  %2254 = vmatprep.subr.mxu0 0.0
  %2255 = vmatpush1.msra.mxu0 %v2226
  %2256 = vmatprep.subr.mxu0 0.0
  %2257 = vmatpush1.msra.mxu0 %v2225
  %2258 = vmatprep.subr.mxu0 0.0
  %2259 = vmatpush1.msra.mxu0 %v2224
  %2260 = vmatprep.subr.mxu0 0.0
  %2261 = vmatpush1.msra.mxu0 %v2223
  %2262 = vmatprep.subr.mxu0 0.0
  %2263 = vmatpush1.msra.mxu0 %v2222
  %2264 = vmatprep.subr.mxu0 0.0
  %2265 = vmatpush1.msra.mxu0 %v2221
  %2266 = vmatprep.subr.mxu0 0.0
  %2267 = vmatpush2.msra.mxu0 0.0
  %2268 = vmatprep.subr.mxu0 0.0
  %2269 = vmatpush2.msra.mxu0 0.0
  %2270 = vmatprep.subr.mxu0 0.0
  %2271 = vmatpush2.msra.mxu0 0.0
  %2272 = vmatprep.subr.mxu0 0.0
  %2273 = vmatpush2.msra.mxu0 0.0
  %2274 = vmatprep.subr.mxu0 0.0
  %2275 = vmatpush2.msra.mxu0 0.0
  %2276 = vmatprep.subr.mxu0 0.0
  %2277 = vmatpush2.msra.mxu0 0.0
  %2278 = vmatprep.subr.mxu0 0.0
  %2279 = vmatpush2.msra.mxu0 0.0
  %2280 = vmatprep.subr.mxu0 0.0
  %2281 = vmatpush2.msra.mxu0 0.0
  %2282 = vmatprep.subr.mxu0 0.0
  %2283 = vmatpush2.msra.mxu0 0.0
  %2284 = vmatprep.subr.mxu0 0.0
  %2285 = vmatpush2.msra.mxu0 0.0
  %2286 = vmatprep.subr.mxu0 0.0
  %2287 = vmatpush2.msra.mxu0 0.0
  %2288 = vmatprep.subr.mxu0 0.0
  %2289 = vmatpush2.msra.mxu0 0.0
  %2290 = vmatprep.subr.mxu0 0.0
  %2291 = vmatpush2.msra.mxu0 0.0
  %2292 = vmatprep.subr.mxu0 0.0
  %2293 = vmatpush2.msra.mxu0 0.0
  %2294 = vmatprep.subr.mxu0 0.0
  %2295 = vmatpush2.msra.mxu0 0.0
  %2296 = vmatprep.subr.mxu0 0.0
  %2297 = vmatpush2.msra.mxu0 0.0
  %2298 = vmatprep.mubr.f32.mxu0 0.0
  %2299 = vmatmul.mubr.f32.gmra.mxu0 %v2229
  %v2300 = vpop.f32.mrf.mxu0
  %v2301 = vadd.f32 0.0, %v2300
  %v2302 = vpop.f32.mrf.mxu0
  %2303 = vmatprep.mubr.f32.mxu0 0.0
  %2304 = vmatmul.mubr.f32.gmra.mxu0 %v2232
  %v2305 = vpop.f32.mrf.mxu0
  %v2306 = vadd.f32 0.0, %v2305
  %v2307 = vpop.f32.mrf.mxu0
  %2308 = vdwg.mxu0
  %v2309 = vadd.f32 %v2049, %v2301
  %v2310 = vadd.f32 %v2050, %v2306
  %s2311 = scalar_lea.vmem %s11, 168
  %v2312 = vld [vmem:[%s2311] sm:$0xff]
  %v2313 = vld [vmem:[%s2311 + $0x8] sm:$0xff]
  %v2314 = vld [vmem:[%s2311 + $0x10] sm:$0xff]
  %v2315 = vld [vmem:[%s2311 + $0x18] sm:$0xff]
  %v2316 = vld [vmem:[%s2311 + $0x20] sm:$0xff]
  %v2317 = vld [vmem:[%s2311 + $0x28] sm:$0xff]
  %v2318 = vld [vmem:[%s2311 + $0x30] sm:$0xff]
  %2319 = vmatprep.subr.mxu0 0.0
  %2320 = vmatpush1.msra.mxu0 0.0
  %2321 = vmatprep.subr.mxu0 0.0
  %2322 = vmatpush1.msra.mxu0 0.0
  %2323 = vmatprep.subr.mxu0 0.0
  %2324 = vmatpush1.msra.mxu0 0.0
  %2325 = vmatprep.subr.mxu0 0.0
  %2326 = vmatpush1.msra.mxu0 0.0
  %2327 = vmatprep.subr.mxu0 0.0
  %2328 = vmatpush1.msra.mxu0 0.0
  %2329 = vmatprep.subr.mxu0 0.0
  %2330 = vmatpush1.msra.mxu0 0.0
  %2331 = vmatprep.subr.mxu0 0.0
  %2332 = vmatpush1.msra.mxu0 0.0
  %2333 = vmatprep.subr.mxu0 0.0
  %2334 = vmatpush1.msra.mxu0 0.0
  %2335 = vmatprep.subr.mxu0 0.0
  %2336 = vmatpush1.msra.mxu0 0.0
  %2337 = vmatprep.subr.mxu0 0.0
  %2338 = vmatpush1.msra.mxu0 %v2318
  %2339 = vmatprep.subr.mxu0 0.0
  %2340 = vmatpush1.msra.mxu0 %v2317
  %2341 = vmatprep.subr.mxu0 0.0
  %2342 = vmatpush1.msra.mxu0 %v2316
  %2343 = vmatprep.subr.mxu0 0.0
  %2344 = vmatpush1.msra.mxu0 %v2315
  %2345 = vmatprep.subr.mxu0 0.0
  %2346 = vmatpush1.msra.mxu0 %v2314
  %2347 = vmatprep.subr.mxu0 0.0
  %2348 = vmatpush1.msra.mxu0 %v2313
  %2349 = vmatprep.subr.mxu0 0.0
  %2350 = vmatpush1.msra.mxu0 %v2312
  %2351 = vmatprep.subr.mxu0 0.0
  %2352 = vmatpush2.msra.mxu0 0.0
  %2353 = vmatprep.subr.mxu0 0.0
  %2354 = vmatpush2.msra.mxu0 0.0
  %2355 = vmatprep.subr.mxu0 0.0
  %2356 = vmatpush2.msra.mxu0 0.0
  %2357 = vmatprep.subr.mxu0 0.0
  %2358 = vmatpush2.msra.mxu0 0.0
  %2359 = vmatprep.subr.mxu0 0.0
  %2360 = vmatpush2.msra.mxu0 0.0
  %2361 = vmatprep.subr.mxu0 0.0
  %2362 = vmatpush2.msra.mxu0 0.0
  %2363 = vmatprep.subr.mxu0 0.0
  %2364 = vmatpush2.msra.mxu0 0.0
  %2365 = vmatprep.subr.mxu0 0.0
  %2366 = vmatpush2.msra.mxu0 0.0
  %2367 = vmatprep.subr.mxu0 0.0
  %2368 = vmatpush2.msra.mxu0 0.0
  %2369 = vmatprep.subr.mxu0 0.0
  %2370 = vmatpush2.msra.mxu0 0.0
  %2371 = vmatprep.subr.mxu0 0.0
  %2372 = vmatpush2.msra.mxu0 0.0
  %2373 = vmatprep.subr.mxu0 0.0
  %2374 = vmatpush2.msra.mxu0 0.0
  %2375 = vmatprep.subr.mxu0 0.0
  %2376 = vmatpush2.msra.mxu0 0.0
  %2377 = vmatprep.subr.mxu0 0.0
  %2378 = vmatpush2.msra.mxu0 0.0
  %2379 = vmatprep.subr.mxu0 0.0
  %2380 = vmatpush2.msra.mxu0 0.0
  %2381 = vmatprep.subr.mxu0 0.0
  %2382 = vmatpush2.msra.mxu0 0.0
  %2383 = vmatprep.mubr.f32.mxu0 0.0
  %2384 = vmatmul.mubr.f32.gmra.mxu0 %v2229
  %v2385 = vpop.f32.mrf.mxu0
  %v2386 = vadd.f32 0.0, %v2385
  %v2387 = vpop.f32.mrf.mxu0
  %2388 = vmatprep.mubr.f32.mxu0 0.0
  %2389 = vmatmul.mubr.f32.gmra.mxu0 %v2232
  %v2390 = vpop.f32.mrf.mxu0
  %v2391 = vadd.f32 0.0, %v2390
  %v2392 = vpop.f32.mrf.mxu0
  %2393 = vdwg.mxu0
  %v2394 = vadd.f32 %v2134, %v2386
  %v2395 = vadd.f32 %v2135, %v2391
  %v2396 = vmax.f32 %v2309, %v2394
  %v2397 = vmax.f32 %v2310, %v2395
  %v2398 = vld [vmem:[%s12] sm:$0x1]
  %v2400 = vlaneseq
  %v2401 = vshrl.u32 %v2400, 7
  %v2402 = vsub.s32 0, %v2401
  %v2403 = vrot.slane %v2398, %v2402
  %v2405 = vadd.f32 %v2396, %v2403
  %v2406 = vadd.f32 %v2397, %v2403
  %v2407 = vld [vmem:[%s16] sm:$0x1]
  %v2409 = vlaneseq
  %v2410 = vshrl.u32 %v2409, 7
  %v2411 = vsub.s32 0, %v2410
  %v2412 = vrot.slane %v2407, %v2411
  %v2414 = vadd.f32 %v2412, 0.0
  %v2415 = vld [vmem:[%s13] sm:$0x3]
  %vm2416 = vcmask 130048
  %v2418 = vsel %vm2416, %v2415, 0
  %2420 = vmatprep.subr.mxu0 0.0
  %2421 = vmatpush1.msra.mxu0 0.0
  %2422 = vmatprep.subr.mxu0 0.0
  %2423 = vmatpush1.msra.mxu0 0.0
  %2424 = vmatprep.subr.mxu0 0.0
  %2425 = vmatpush1.msra.mxu0 0.0
  %2426 = vmatprep.subr.mxu0 0.0
  %2427 = vmatpush1.msra.mxu0 0.0
  %2428 = vmatprep.subr.mxu0 0.0
  %2429 = vmatpush1.msra.mxu0 0.0
  %2430 = vmatprep.subr.mxu0 0.0
  %2431 = vmatpush1.msra.mxu0 0.0
  %2432 = vmatprep.subr.mxu0 0.0
  %2433 = vmatpush1.msra.mxu0 0.0
  %2434 = vmatprep.subr.mxu0 0.0
  %2435 = vmatpush1.msra.mxu0 0.0
  %2436 = vmatprep.subr.mxu0 0.0
  %2437 = vmatpush1.msra.mxu0 0.0
  %2438 = vmatprep.subr.mxu0 0.0
  %2439 = vmatpush1.msra.mxu0 0.0
  %2440 = vmatprep.subr.mxu0 0.0
  %2441 = vmatpush1.msra.mxu0 0.0
  %2442 = vmatprep.subr.mxu0 0.0
  %2443 = vmatpush1.msra.mxu0 0.0
  %2444 = vmatprep.subr.mxu0 0.0
  %2445 = vmatpush1.msra.mxu0 0.0
  %2446 = vmatprep.subr.mxu0 0.0
  %2447 = vmatpush1.msra.mxu0 0.0
  %2448 = vmatprep.subr.mxu0 0.0
  %2449 = vmatpush1.msra.mxu0 %v2406
  %2450 = vmatprep.subr.mxu0 0.0
  %2451 = vmatpush1.msra.mxu0 %v2405
  %2452 = vmatprep.subr.mxu0 0.0
  %2453 = vmatpush2.msra.mxu0 0.0
  %2454 = vmatprep.subr.mxu0 0.0
  %2455 = vmatpush2.msra.mxu0 0.0
  %2456 = vmatprep.subr.mxu0 0.0
  %2457 = vmatpush2.msra.mxu0 0.0
  %2458 = vmatprep.subr.mxu0 0.0
  %2459 = vmatpush2.msra.mxu0 0.0
  %2460 = vmatprep.subr.mxu0 0.0
  %2461 = vmatpush2.msra.mxu0 0.0
  %2462 = vmatprep.subr.mxu0 0.0
  %2463 = vmatpush2.msra.mxu0 0.0
  %2464 = vmatprep.subr.mxu0 0.0
  %2465 = vmatpush2.msra.mxu0 0.0
  %2466 = vmatprep.subr.mxu0 0.0
  %2467 = vmatpush2.msra.mxu0 0.0
  %2468 = vmatprep.subr.mxu0 0.0
  %2469 = vmatpush2.msra.mxu0 0.0
  %2470 = vmatprep.subr.mxu0 0.0
  %2471 = vmatpush2.msra.mxu0 0.0
  %2472 = vmatprep.subr.mxu0 0.0
  %2473 = vmatpush2.msra.mxu0 0.0
  %2474 = vmatprep.subr.mxu0 0.0
  %2475 = vmatpush2.msra.mxu0 0.0
  %2476 = vmatprep.subr.mxu0 0.0
  %2477 = vmatpush2.msra.mxu0 0.0
  %2478 = vmatprep.subr.mxu0 0.0
  %2479 = vmatpush2.msra.mxu0 0.0
  %2480 = vmatprep.subr.mxu0 0.0
  %2481 = vmatpush2.msra.mxu0 0.0
  %2482 = vmatprep.subr.mxu0 0.0
  %2483 = vmatpush2.msra.mxu0 0.0
  %2484 = vmatprep.mubr.f32.mxu0 0.0
  %2485 = vmatmul.mubr.f32.gmra.mxu0 %v2418
  %v2486 = vpop.f32.mrf.mxu0
  %v2487 = vadd.f32 0.0, %v2486
  %v2488 = vpop.f32.mrf.mxu0
  %2489 = vdwg.mxu0
  %v2490 = vld [vmem:[%s14] sm:$0x3]
  %v2492 = vsel %vm2416, %v2490, 0
  %2494 = vmatprep.subr.mxu0 0.0
  %2495 = vmatpush1.msra.mxu0 0.0
  %2496 = vmatprep.subr.mxu0 0.0
  %2497 = vmatpush1.msra.mxu0 0.0
  %2498 = vmatprep.subr.mxu0 0.0
  %2499 = vmatpush1.msra.mxu0 0.0
  %2500 = vmatprep.subr.mxu0 0.0
  %2501 = vmatpush1.msra.mxu0 0.0
  %2502 = vmatprep.subr.mxu0 0.0
  %2503 = vmatpush1.msra.mxu0 0.0
  %2504 = vmatprep.subr.mxu0 0.0
  %2505 = vmatpush1.msra.mxu0 0.0
  %2506 = vmatprep.subr.mxu0 0.0
  %2507 = vmatpush1.msra.mxu0 0.0
  %2508 = vmatprep.subr.mxu0 0.0
  %2509 = vmatpush1.msra.mxu0 0.0
  %2510 = vmatprep.subr.mxu0 0.0
  %2511 = vmatpush1.msra.mxu0 0.0
  %2512 = vmatprep.subr.mxu0 0.0
  %2513 = vmatpush1.msra.mxu0 0.0
  %2514 = vmatprep.subr.mxu0 0.0
  %2515 = vmatpush1.msra.mxu0 0.0
  %2516 = vmatprep.subr.mxu0 0.0
  %2517 = vmatpush1.msra.mxu0 0.0
  %2518 = vmatprep.subr.mxu0 0.0
  %2519 = vmatpush1.msra.mxu0 0.0
  %2520 = vmatprep.subr.mxu0 0.0
  %2521 = vmatpush1.msra.mxu0 0.0
  %2522 = vmatprep.subr.mxu0 0.0
  %2523 = vmatpush1.msra.mxu0 %v2406
  %2524 = vmatprep.subr.mxu0 0.0
  %2525 = vmatpush1.msra.mxu0 %v2405
  %2526 = vmatprep.subr.mxu0 0.0
  %2527 = vmatpush2.msra.mxu0 0.0
  %2528 = vmatprep.subr.mxu0 0.0
  %2529 = vmatpush2.msra.mxu0 0.0
  %2530 = vmatprep.subr.mxu0 0.0
  %2531 = vmatpush2.msra.mxu0 0.0
  %2532 = vmatprep.subr.mxu0 0.0
  %2533 = vmatpush2.msra.mxu0 0.0
  %2534 = vmatprep.subr.mxu0 0.0
  %2535 = vmatpush2.msra.mxu0 0.0
  %2536 = vmatprep.subr.mxu0 0.0
  %2537 = vmatpush2.msra.mxu0 0.0
  %2538 = vmatprep.subr.mxu0 0.0
  %2539 = vmatpush2.msra.mxu0 0.0
  %2540 = vmatprep.subr.mxu0 0.0
  %2541 = vmatpush2.msra.mxu0 0.0
  %2542 = vmatprep.subr.mxu0 0.0
  %2543 = vmatpush2.msra.mxu0 0.0
  %2544 = vmatprep.subr.mxu0 0.0
  %2545 = vmatpush2.msra.mxu0 0.0
  %2546 = vmatprep.subr.mxu0 0.0
  %2547 = vmatpush2.msra.mxu0 0.0
  %2548 = vmatprep.subr.mxu0 0.0
  %2549 = vmatpush2.msra.mxu0 0.0
  %2550 = vmatprep.subr.mxu0 0.0
  %2551 = vmatpush2.msra.mxu0 0.0
  %2552 = vmatprep.subr.mxu0 0.0
  %2553 = vmatpush2.msra.mxu0 0.0
  %2554 = vmatprep.subr.mxu0 0.0
  %2555 = vmatpush2.msra.mxu0 0.0
  %2556 = vmatprep.subr.mxu0 0.0
  %2557 = vmatpush2.msra.mxu0 0.0
  %2558 = vmatprep.mubr.f32.mxu0 0.0
  %2559 = vmatmul.mubr.f32.gmra.mxu0 %v2492
  %v2560 = vpop.f32.mrf.mxu0
  %v2561 = vadd.f32 0.0, %v2560
  %v2562 = vpop.f32.mrf.mxu0
  %2563 = vdwg.mxu0
  %v2564 = vmax.f32 %v2487, %v2561
  %v2565 = vmax.f32 %v2564, 0.0
  %v2566 = vld [vmem:[%s15] sm:$0xff]
  %v2567 = vld [vmem:[%s15 + $0x8] sm:$0xff]
  %v2568 = vld [vmem:[%s15 + $0x10] sm:$0xff]
  %v2569 = vld [vmem:[%s15 + $0x18] sm:$0xff]
  %v2570 = vld [vmem:[%s15 + $0x20] sm:$0xff]
  %v2571 = vld [vmem:[%s15 + $0x28] sm:$0xff]
  %v2572 = vld [vmem:[%s15 + $0x30] sm:$0xff]
  %v2573 = vld [vmem:[%s15 + $0x38] sm:$0xff]
  %vm2574 = vcmask 523264
  %v2576 = vsel %vm2574, %v2565, 0
  %2578 = vmatprep.subr.mxu0 0.0
  %2579 = vmatpush1.msra.mxu0 0.0
  %2580 = vmatprep.subr.mxu0 0.0
  %2581 = vmatpush1.msra.mxu0 0.0
  %2582 = vmatprep.subr.mxu0 0.0
  %2583 = vmatpush1.msra.mxu0 0.0
  %2584 = vmatprep.subr.mxu0 0.0
  %2585 = vmatpush1.msra.mxu0 0.0
  %2586 = vmatprep.subr.mxu0 0.0
  %2587 = vmatpush1.msra.mxu0 0.0
  %2588 = vmatprep.subr.mxu0 0.0
  %2589 = vmatpush1.msra.mxu0 0.0
  %2590 = vmatprep.subr.mxu0 0.0
  %2591 = vmatpush1.msra.mxu0 0.0
  %2592 = vmatprep.subr.mxu0 0.0
  %2593 = vmatpush1.msra.mxu0 0.0
  %2594 = vmatprep.subr.mxu0 0.0
  %2595 = vmatpush1.msra.mxu0 %v2573
  %2596 = vmatprep.subr.mxu0 0.0
  %2597 = vmatpush1.msra.mxu0 %v2572
  %2598 = vmatprep.subr.mxu0 0.0
  %2599 = vmatpush1.msra.mxu0 %v2571
  %2600 = vmatprep.subr.mxu0 0.0
  %2601 = vmatpush1.msra.mxu0 %v2570
  %2602 = vmatprep.subr.mxu0 0.0
  %2603 = vmatpush1.msra.mxu0 %v2569
  %2604 = vmatprep.subr.mxu0 0.0
  %2605 = vmatpush1.msra.mxu0 %v2568
  %2606 = vmatprep.subr.mxu0 0.0
  %2607 = vmatpush1.msra.mxu0 %v2567
  %2608 = vmatprep.subr.mxu0 0.0
  %2609 = vmatpush1.msra.mxu0 %v2566
  %2610 = vmatprep.subr.mxu0 0.0
  %2611 = vmatpush2.msra.mxu0 0.0
  %2612 = vmatprep.subr.mxu0 0.0
  %2613 = vmatpush2.msra.mxu0 0.0
  %2614 = vmatprep.subr.mxu0 0.0
  %2615 = vmatpush2.msra.mxu0 0.0
  %2616 = vmatprep.subr.mxu0 0.0
  %2617 = vmatpush2.msra.mxu0 0.0
  %2618 = vmatprep.subr.mxu0 0.0
  %2619 = vmatpush2.msra.mxu0 0.0
  %2620 = vmatprep.subr.mxu0 0.0
  %2621 = vmatpush2.msra.mxu0 0.0
  %2622 = vmatprep.subr.mxu0 0.0
  %2623 = vmatpush2.msra.mxu0 0.0
  %2624 = vmatprep.subr.mxu0 0.0
  %2625 = vmatpush2.msra.mxu0 0.0
  %2626 = vmatprep.subr.mxu0 0.0
  %2627 = vmatpush2.msra.mxu0 0.0
  %2628 = vmatprep.subr.mxu0 0.0
  %2629 = vmatpush2.msra.mxu0 0.0
  %2630 = vmatprep.subr.mxu0 0.0
  %2631 = vmatpush2.msra.mxu0 0.0
  %2632 = vmatprep.subr.mxu0 0.0
  %2633 = vmatpush2.msra.mxu0 0.0
  %2634 = vmatprep.subr.mxu0 0.0
  %2635 = vmatpush2.msra.mxu0 0.0
  %2636 = vmatprep.subr.mxu0 0.0
  %2637 = vmatpush2.msra.mxu0 0.0
  %2638 = vmatprep.subr.mxu0 0.0
  %2639 = vmatpush2.msra.mxu0 0.0
  %2640 = vmatprep.subr.mxu0 0.0
  %2641 = vmatpush2.msra.mxu0 0.0
  %2642 = vmatprep.mubr.f32.mxu0 0.0
  %2643 = vmatmul.mubr.f32.gmra.mxu0 %v2576
  %v2644 = vpop.f32.mrf.mxu0
  %v2645 = vadd.f32 0.0, %v2644
  %v2646 = vpop.f32.mrf.mxu0
  %2647 = vdwg.mxu0
  %v2648 = vadd.f32 %v2414, %v2645
  %s2649 = scalar_lea.vmem %s13, 2
  %v2650 = vld [vmem:[%s2649] sm:$0x3]
  %v2652 = vsel %vm2416, %v2650, 0
  %2654 = vmatprep.subr.mxu0 0.0
  %2655 = vmatpush1.msra.mxu0 0.0
  %2656 = vmatprep.subr.mxu0 0.0
  %2657 = vmatpush1.msra.mxu0 0.0
  %2658 = vmatprep.subr.mxu0 0.0
  %2659 = vmatpush1.msra.mxu0 0.0
  %2660 = vmatprep.subr.mxu0 0.0
  %2661 = vmatpush1.msra.mxu0 0.0
  %2662 = vmatprep.subr.mxu0 0.0
  %2663 = vmatpush1.msra.mxu0 0.0
  %2664 = vmatprep.subr.mxu0 0.0
  %2665 = vmatpush1.msra.mxu0 0.0
  %2666 = vmatprep.subr.mxu0 0.0
  %2667 = vmatpush1.msra.mxu0 0.0
  %2668 = vmatprep.subr.mxu0 0.0
  %2669 = vmatpush1.msra.mxu0 0.0
  %2670 = vmatprep.subr.mxu0 0.0
  %2671 = vmatpush1.msra.mxu0 0.0
  %2672 = vmatprep.subr.mxu0 0.0
  %2673 = vmatpush1.msra.mxu0 0.0
  %2674 = vmatprep.subr.mxu0 0.0
  %2675 = vmatpush1.msra.mxu0 0.0
  %2676 = vmatprep.subr.mxu0 0.0
  %2677 = vmatpush1.msra.mxu0 0.0
  %2678 = vmatprep.subr.mxu0 0.0
  %2679 = vmatpush1.msra.mxu0 0.0
  %2680 = vmatprep.subr.mxu0 0.0
  %2681 = vmatpush1.msra.mxu0 0.0
  %2682 = vmatprep.subr.mxu0 0.0
  %2683 = vmatpush1.msra.mxu0 %v2406
  %2684 = vmatprep.subr.mxu0 0.0
  %2685 = vmatpush1.msra.mxu0 %v2405
  %2686 = vmatprep.subr.mxu0 0.0
  %2687 = vmatpush2.msra.mxu0 0.0
  %2688 = vmatprep.subr.mxu0 0.0
  %2689 = vmatpush2.msra.mxu0 0.0
  %2690 = vmatprep.subr.mxu0 0.0
  %2691 = vmatpush2.msra.mxu0 0.0
  %2692 = vmatprep.subr.mxu0 0.0
  %2693 = vmatpush2.msra.mxu0 0.0
  %2694 = vmatprep.subr.mxu0 0.0
  %2695 = vmatpush2.msra.mxu0 0.0
  %2696 = vmatprep.subr.mxu0 0.0
  %2697 = vmatpush2.msra.mxu0 0.0
  %2698 = vmatprep.subr.mxu0 0.0
  %2699 = vmatpush2.msra.mxu0 0.0
  %2700 = vmatprep.subr.mxu0 0.0
  %2701 = vmatpush2.msra.mxu0 0.0
  %2702 = vmatprep.subr.mxu0 0.0
  %2703 = vmatpush2.msra.mxu0 0.0
  %2704 = vmatprep.subr.mxu0 0.0
  %2705 = vmatpush2.msra.mxu0 0.0
  %2706 = vmatprep.subr.mxu0 0.0
  %2707 = vmatpush2.msra.mxu0 0.0
  %2708 = vmatprep.subr.mxu0 0.0
  %2709 = vmatpush2.msra.mxu0 0.0
  %2710 = vmatprep.subr.mxu0 0.0
  %2711 = vmatpush2.msra.mxu0 0.0
  %2712 = vmatprep.subr.mxu0 0.0
  %2713 = vmatpush2.msra.mxu0 0.0
  %2714 = vmatprep.subr.mxu0 0.0
  %2715 = vmatpush2.msra.mxu0 0.0
  %2716 = vmatprep.subr.mxu0 0.0
  %2717 = vmatpush2.msra.mxu0 0.0
  %2718 = vmatprep.mubr.f32.mxu0 0.0
  %2719 = vmatmul.mubr.f32.gmra.mxu0 %v2652
  %v2720 = vpop.f32.mrf.mxu0
  %v2721 = vadd.f32 0.0, %v2720
  %v2722 = vpop.f32.mrf.mxu0
  %2723 = vdwg.mxu0
  %s2724 = scalar_lea.vmem %s14, 2
  %v2725 = vld [vmem:[%s2724] sm:$0x3]
  %v2727 = vsel %vm2416, %v2725, 0
  %2729 = vmatprep.subr.mxu0 0.0
  %2730 = vmatpush1.msra.mxu0 0.0
  %2731 = vmatprep.subr.mxu0 0.0
  %2732 = vmatpush1.msra.mxu0 0.0
  %2733 = vmatprep.subr.mxu0 0.0
  %2734 = vmatpush1.msra.mxu0 0.0
  %2735 = vmatprep.subr.mxu0 0.0
  %2736 = vmatpush1.msra.mxu0 0.0
  %2737 = vmatprep.subr.mxu0 0.0
  %2738 = vmatpush1.msra.mxu0 0.0
  %2739 = vmatprep.subr.mxu0 0.0
  %2740 = vmatpush1.msra.mxu0 0.0
  %2741 = vmatprep.subr.mxu0 0.0
  %2742 = vmatpush1.msra.mxu0 0.0
  %2743 = vmatprep.subr.mxu0 0.0
  %2744 = vmatpush1.msra.mxu0 0.0
  %2745 = vmatprep.subr.mxu0 0.0
  %2746 = vmatpush1.msra.mxu0 0.0
  %2747 = vmatprep.subr.mxu0 0.0
  %2748 = vmatpush1.msra.mxu0 0.0
  %2749 = vmatprep.subr.mxu0 0.0
  %2750 = vmatpush1.msra.mxu0 0.0
  %2751 = vmatprep.subr.mxu0 0.0
  %2752 = vmatpush1.msra.mxu0 0.0
  %2753 = vmatprep.subr.mxu0 0.0
  %2754 = vmatpush1.msra.mxu0 0.0
  %2755 = vmatprep.subr.mxu0 0.0
  %2756 = vmatpush1.msra.mxu0 0.0
  %2757 = vmatprep.subr.mxu0 0.0
  %2758 = vmatpush1.msra.mxu0 %v2406
  %2759 = vmatprep.subr.mxu0 0.0
  %2760 = vmatpush1.msra.mxu0 %v2405
  %2761 = vmatprep.subr.mxu0 0.0
  %2762 = vmatpush2.msra.mxu0 0.0
  %2763 = vmatprep.subr.mxu0 0.0
  %2764 = vmatpush2.msra.mxu0 0.0
  %2765 = vmatprep.subr.mxu0 0.0
  %2766 = vmatpush2.msra.mxu0 0.0
  %2767 = vmatprep.subr.mxu0 0.0
  %2768 = vmatpush2.msra.mxu0 0.0
  %2769 = vmatprep.subr.mxu0 0.0
  %2770 = vmatpush2.msra.mxu0 0.0
  %2771 = vmatprep.subr.mxu0 0.0
  %2772 = vmatpush2.msra.mxu0 0.0
  %2773 = vmatprep.subr.mxu0 0.0
  %2774 = vmatpush2.msra.mxu0 0.0
  %2775 = vmatprep.subr.mxu0 0.0
  %2776 = vmatpush2.msra.mxu0 0.0
  %2777 = vmatprep.subr.mxu0 0.0
  %2778 = vmatpush2.msra.mxu0 0.0
  %2779 = vmatprep.subr.mxu0 0.0
  %2780 = vmatpush2.msra.mxu0 0.0
  %2781 = vmatprep.subr.mxu0 0.0
  %2782 = vmatpush2.msra.mxu0 0.0
  %2783 = vmatprep.subr.mxu0 0.0
  %2784 = vmatpush2.msra.mxu0 0.0
  %2785 = vmatprep.subr.mxu0 0.0
  %2786 = vmatpush2.msra.mxu0 0.0
  %2787 = vmatprep.subr.mxu0 0.0
  %2788 = vmatpush2.msra.mxu0 0.0
  %2789 = vmatprep.subr.mxu0 0.0
  %2790 = vmatpush2.msra.mxu0 0.0
  %2791 = vmatprep.subr.mxu0 0.0
  %2792 = vmatpush2.msra.mxu0 0.0
  %2793 = vmatprep.mubr.f32.mxu0 0.0
  %2794 = vmatmul.mubr.f32.gmra.mxu0 %v2727
  %v2795 = vpop.f32.mrf.mxu0
  %v2796 = vadd.f32 0.0, %v2795
  %v2797 = vpop.f32.mrf.mxu0
  %2798 = vdwg.mxu0
  %v2799 = vmax.f32 %v2721, %v2796
  %v2800 = vmax.f32 %v2799, 0.0
  %s2801 = scalar_lea.vmem %s15, 64
  %v2802 = vld [vmem:[%s2801] sm:$0xff]
  %v2803 = vld [vmem:[%s2801 + $0x8] sm:$0xff]
  %v2804 = vld [vmem:[%s2801 + $0x10] sm:$0xff]
  %v2805 = vld [vmem:[%s2801 + $0x18] sm:$0xff]
  %v2806 = vld [vmem:[%s2801 + $0x20] sm:$0xff]
  %v2807 = vld [vmem:[%s2801 + $0x28] sm:$0xff]
  %v2808 = vld [vmem:[%s2801 + $0x30] sm:$0xff]
  %v2809 = vld [vmem:[%s2801 + $0x38] sm:$0xff]
  %v2811 = vsel %vm2574, %v2800, 0
  %2813 = vmatprep.subr.mxu0 0.0
  %2814 = vmatpush1.msra.mxu0 0.0
  %2815 = vmatprep.subr.mxu0 0.0
  %2816 = vmatpush1.msra.mxu0 0.0
  %2817 = vmatprep.subr.mxu0 0.0
  %2818 = vmatpush1.msra.mxu0 0.0
  %2819 = vmatprep.subr.mxu0 0.0
  %2820 = vmatpush1.msra.mxu0 0.0
  %2821 = vmatprep.subr.mxu0 0.0
  %2822 = vmatpush1.msra.mxu0 0.0
  %2823 = vmatprep.subr.mxu0 0.0
  %2824 = vmatpush1.msra.mxu0 0.0
  %2825 = vmatprep.subr.mxu0 0.0
  %2826 = vmatpush1.msra.mxu0 0.0
  %2827 = vmatprep.subr.mxu0 0.0
  %2828 = vmatpush1.msra.mxu0 0.0
  %2829 = vmatprep.subr.mxu0 0.0
  %2830 = vmatpush1.msra.mxu0 %v2809
  %2831 = vmatprep.subr.mxu0 0.0
  %2832 = vmatpush1.msra.mxu0 %v2808
  %2833 = vmatprep.subr.mxu0 0.0
  %2834 = vmatpush1.msra.mxu0 %v2807
  %2835 = vmatprep.subr.mxu0 0.0
  %2836 = vmatpush1.msra.mxu0 %v2806
  %2837 = vmatprep.subr.mxu0 0.0
  %2838 = vmatpush1.msra.mxu0 %v2805
  %2839 = vmatprep.subr.mxu0 0.0
  %2840 = vmatpush1.msra.mxu0 %v2804
  %2841 = vmatprep.subr.mxu0 0.0
  %2842 = vmatpush1.msra.mxu0 %v2803
  %2843 = vmatprep.subr.mxu0 0.0
  %2844 = vmatpush1.msra.mxu0 %v2802
  %2845 = vmatprep.subr.mxu0 0.0
  %2846 = vmatpush2.msra.mxu0 0.0
  %2847 = vmatprep.subr.mxu0 0.0
  %2848 = vmatpush2.msra.mxu0 0.0
  %2849 = vmatprep.subr.mxu0 0.0
  %2850 = vmatpush2.msra.mxu0 0.0
  %2851 = vmatprep.subr.mxu0 0.0
  %2852 = vmatpush2.msra.mxu0 0.0
  %2853 = vmatprep.subr.mxu0 0.0
  %2854 = vmatpush2.msra.mxu0 0.0
  %2855 = vmatprep.subr.mxu0 0.0
  %2856 = vmatpush2.msra.mxu0 0.0
  %2857 = vmatprep.subr.mxu0 0.0
  %2858 = vmatpush2.msra.mxu0 0.0
  %2859 = vmatprep.subr.mxu0 0.0
  %2860 = vmatpush2.msra.mxu0 0.0
  %2861 = vmatprep.subr.mxu0 0.0
  %2862 = vmatpush2.msra.mxu0 0.0
  %2863 = vmatprep.subr.mxu0 0.0
  %2864 = vmatpush2.msra.mxu0 0.0
  %2865 = vmatprep.subr.mxu0 0.0
  %2866 = vmatpush2.msra.mxu0 0.0
  %2867 = vmatprep.subr.mxu0 0.0
  %2868 = vmatpush2.msra.mxu0 0.0
  %2869 = vmatprep.subr.mxu0 0.0
  %2870 = vmatpush2.msra.mxu0 0.0
  %2871 = vmatprep.subr.mxu0 0.0
  %2872 = vmatpush2.msra.mxu0 0.0
  %2873 = vmatprep.subr.mxu0 0.0
  %2874 = vmatpush2.msra.mxu0 0.0
  %2875 = vmatprep.subr.mxu0 0.0
  %2876 = vmatpush2.msra.mxu0 0.0
  %2877 = vmatprep.mubr.f32.mxu0 0.0
  %2878 = vmatmul.mubr.f32.gmra.mxu0 %v2811
  %v2879 = vpop.f32.mrf.mxu0
  %v2880 = vadd.f32 0.0, %v2879
  %v2881 = vpop.f32.mrf.mxu0
  %2882 = vdwg.mxu0
  %v2883 = vadd.f32 %v2648, %v2880
  %s2884 = scalar_lea.vmem %s13, 4
  %v2885 = vld [vmem:[%s2884] sm:$0x3]
  %v2887 = vsel %vm2416, %v2885, 0
  %2889 = vmatprep.subr.mxu0 0.0
  %2890 = vmatpush1.msra.mxu0 0.0
  %2891 = vmatprep.subr.mxu0 0.0
  %2892 = vmatpush1.msra.mxu0 0.0
  %2893 = vmatprep.subr.mxu0 0.0
  %2894 = vmatpush1.msra.mxu0 0.0
  %2895 = vmatprep.subr.mxu0 0.0
  %2896 = vmatpush1.msra.mxu0 0.0
  %2897 = vmatprep.subr.mxu0 0.0
  %2898 = vmatpush1.msra.mxu0 0.0
  %2899 = vmatprep.subr.mxu0 0.0
  %2900 = vmatpush1.msra.mxu0 0.0
  %2901 = vmatprep.subr.mxu0 0.0
  %2902 = vmatpush1.msra.mxu0 0.0
  %2903 = vmatprep.subr.mxu0 0.0
  %2904 = vmatpush1.msra.mxu0 0.0
  %2905 = vmatprep.subr.mxu0 0.0
  %2906 = vmatpush1.msra.mxu0 0.0
  %2907 = vmatprep.subr.mxu0 0.0
  %2908 = vmatpush1.msra.mxu0 0.0
  %2909 = vmatprep.subr.mxu0 0.0
  %2910 = vmatpush1.msra.mxu0 0.0
  %2911 = vmatprep.subr.mxu0 0.0
  %2912 = vmatpush1.msra.mxu0 0.0
  %2913 = vmatprep.subr.mxu0 0.0
  %2914 = vmatpush1.msra.mxu0 0.0
  %2915 = vmatprep.subr.mxu0 0.0
  %2916 = vmatpush1.msra.mxu0 0.0
  %2917 = vmatprep.subr.mxu0 0.0
  %2918 = vmatpush1.msra.mxu0 %v2406
  %2919 = vmatprep.subr.mxu0 0.0
  %2920 = vmatpush1.msra.mxu0 %v2405
  %2921 = vmatprep.subr.mxu0 0.0
  %2922 = vmatpush2.msra.mxu0 0.0
  %2923 = vmatprep.subr.mxu0 0.0
  %2924 = vmatpush2.msra.mxu0 0.0
  %2925 = vmatprep.subr.mxu0 0.0
  %2926 = vmatpush2.msra.mxu0 0.0
  %2927 = vmatprep.subr.mxu0 0.0
  %2928 = vmatpush2.msra.mxu0 0.0
  %2929 = vmatprep.subr.mxu0 0.0
  %2930 = vmatpush2.msra.mxu0 0.0
  %2931 = vmatprep.subr.mxu0 0.0
  %2932 = vmatpush2.msra.mxu0 0.0
  %2933 = vmatprep.subr.mxu0 0.0
  %2934 = vmatpush2.msra.mxu0 0.0
  %2935 = vmatprep.subr.mxu0 0.0
  %2936 = vmatpush2.msra.mxu0 0.0
  %2937 = vmatprep.subr.mxu0 0.0
  %2938 = vmatpush2.msra.mxu0 0.0
  %2939 = vmatprep.subr.mxu0 0.0
  %2940 = vmatpush2.msra.mxu0 0.0
  %2941 = vmatprep.subr.mxu0 0.0
  %2942 = vmatpush2.msra.mxu0 0.0
  %2943 = vmatprep.subr.mxu0 0.0
  %2944 = vmatpush2.msra.mxu0 0.0
  %2945 = vmatprep.subr.mxu0 0.0
  %2946 = vmatpush2.msra.mxu0 0.0
  %2947 = vmatprep.subr.mxu0 0.0
  %2948 = vmatpush2.msra.mxu0 0.0
  %2949 = vmatprep.subr.mxu0 0.0
  %2950 = vmatpush2.msra.mxu0 0.0
  %2951 = vmatprep.subr.mxu0 0.0
  %2952 = vmatpush2.msra.mxu0 0.0
  %2953 = vmatprep.mubr.f32.mxu0 0.0
  %2954 = vmatmul.mubr.f32.gmra.mxu0 %v2887
  %v2955 = vpop.f32.mrf.mxu0
  %v2956 = vadd.f32 0.0, %v2955
  %v2957 = vpop.f32.mrf.mxu0
  %2958 = vdwg.mxu0
  %s2959 = scalar_lea.vmem %s14, 4
  %v2960 = vld [vmem:[%s2959] sm:$0x3]
  %v2962 = vsel %vm2416, %v2960, 0
  %2964 = vmatprep.subr.mxu0 0.0
  %2965 = vmatpush1.msra.mxu0 0.0
  %2966 = vmatprep.subr.mxu0 0.0
  %2967 = vmatpush1.msra.mxu0 0.0
  %2968 = vmatprep.subr.mxu0 0.0
  %2969 = vmatpush1.msra.mxu0 0.0
  %2970 = vmatprep.subr.mxu0 0.0
  %2971 = vmatpush1.msra.mxu0 0.0
  %2972 = vmatprep.subr.mxu0 0.0
  %2973 = vmatpush1.msra.mxu0 0.0
  %2974 = vmatprep.subr.mxu0 0.0
  %2975 = vmatpush1.msra.mxu0 0.0
  %2976 = vmatprep.subr.mxu0 0.0
  %2977 = vmatpush1.msra.mxu0 0.0
  %2978 = vmatprep.subr.mxu0 0.0
  %2979 = vmatpush1.msra.mxu0 0.0
  %2980 = vmatprep.subr.mxu0 0.0
  %2981 = vmatpush1.msra.mxu0 0.0
  %2982 = vmatprep.subr.mxu0 0.0
  %2983 = vmatpush1.msra.mxu0 0.0
  %2984 = vmatprep.subr.mxu0 0.0
  %2985 = vmatpush1.msra.mxu0 0.0
  %2986 = vmatprep.subr.mxu0 0.0
  %2987 = vmatpush1.msra.mxu0 0.0
  %2988 = vmatprep.subr.mxu0 0.0
  %2989 = vmatpush1.msra.mxu0 0.0
  %2990 = vmatprep.subr.mxu0 0.0
  %2991 = vmatpush1.msra.mxu0 0.0
  %2992 = vmatprep.subr.mxu0 0.0
  %2993 = vmatpush1.msra.mxu0 %v2406
  %2994 = vmatprep.subr.mxu0 0.0
  %2995 = vmatpush1.msra.mxu0 %v2405
  %2996 = vmatprep.subr.mxu0 0.0
  %2997 = vmatpush2.msra.mxu0 0.0
  %2998 = vmatprep.subr.mxu0 0.0
  %2999 = vmatpush2.msra.mxu0 0.0
  %3000 = vmatprep.subr.mxu0 0.0
  %3001 = vmatpush2.msra.mxu0 0.0
  %3002 = vmatprep.subr.mxu0 0.0
  %3003 = vmatpush2.msra.mxu0 0.0
  %3004 = vmatprep.subr.mxu0 0.0
  %3005 = vmatpush2.msra.mxu0 0.0
  %3006 = vmatprep.subr.mxu0 0.0
  %3007 = vmatpush2.msra.mxu0 0.0
  %3008 = vmatprep.subr.mxu0 0.0
  %3009 = vmatpush2.msra.mxu0 0.0
  %3010 = vmatprep.subr.mxu0 0.0
  %3011 = vmatpush2.msra.mxu0 0.0
  %3012 = vmatprep.subr.mxu0 0.0
  %3013 = vmatpush2.msra.mxu0 0.0
  %3014 = vmatprep.subr.mxu0 0.0
  %3015 = vmatpush2.msra.mxu0 0.0
  %3016 = vmatprep.subr.mxu0 0.0
  %3017 = vmatpush2.msra.mxu0 0.0
  %3018 = vmatprep.subr.mxu0 0.0
  %3019 = vmatpush2.msra.mxu0 0.0
  %3020 = vmatprep.subr.mxu0 0.0
  %3021 = vmatpush2.msra.mxu0 0.0
  %3022 = vmatprep.subr.mxu0 0.0
  %3023 = vmatpush2.msra.mxu0 0.0
  %3024 = vmatprep.subr.mxu0 0.0
  %3025 = vmatpush2.msra.mxu0 0.0
  %3026 = vmatprep.subr.mxu0 0.0
  %3027 = vmatpush2.msra.mxu0 0.0
  %3028 = vmatprep.mubr.f32.mxu0 0.0
  %3029 = vmatmul.mubr.f32.gmra.mxu0 %v2962
  %v3030 = vpop.f32.mrf.mxu0
  %v3031 = vadd.f32 0.0, %v3030
  %v3032 = vpop.f32.mrf.mxu0
  %3033 = vdwg.mxu0
  %v3034 = vmax.f32 %v2956, %v3031
  %v3035 = vmax.f32 %v3034, 0.0
  %s3036 = scalar_lea.vmem %s15, 128
  %v3037 = vld [vmem:[%s3036] sm:$0xff]
  %v3038 = vld [vmem:[%s3036 + $0x8] sm:$0xff]
  %v3039 = vld [vmem:[%s3036 + $0x10] sm:$0xff]
  %v3040 = vld [vmem:[%s3036 + $0x18] sm:$0xff]
  %v3041 = vld [vmem:[%s3036 + $0x20] sm:$0xff]
  %v3042 = vld [vmem:[%s3036 + $0x28] sm:$0xff]
  %v3043 = vld [vmem:[%s3036 + $0x30] sm:$0xff]
  %v3044 = vld [vmem:[%s3036 + $0x38] sm:$0xff]
  %v3046 = vsel %vm2574, %v3035, 0
  %3048 = vmatprep.subr.mxu0 0.0
  %3049 = vmatpush1.msra.mxu0 0.0
  %3050 = vmatprep.subr.mxu0 0.0
  %3051 = vmatpush1.msra.mxu0 0.0
  %3052 = vmatprep.subr.mxu0 0.0
  %3053 = vmatpush1.msra.mxu0 0.0
  %3054 = vmatprep.subr.mxu0 0.0
  %3055 = vmatpush1.msra.mxu0 0.0
  %3056 = vmatprep.subr.mxu0 0.0
  %3057 = vmatpush1.msra.mxu0 0.0
  %3058 = vmatprep.subr.mxu0 0.0
  %3059 = vmatpush1.msra.mxu0 0.0
  %3060 = vmatprep.subr.mxu0 0.0
  %3061 = vmatpush1.msra.mxu0 0.0
  %3062 = vmatprep.subr.mxu0 0.0
  %3063 = vmatpush1.msra.mxu0 0.0
  %3064 = vmatprep.subr.mxu0 0.0
  %3065 = vmatpush1.msra.mxu0 %v3044
  %3066 = vmatprep.subr.mxu0 0.0
  %3067 = vmatpush1.msra.mxu0 %v3043
  %3068 = vmatprep.subr.mxu0 0.0
  %3069 = vmatpush1.msra.mxu0 %v3042
  %3070 = vmatprep.subr.mxu0 0.0
  %3071 = vmatpush1.msra.mxu0 %v3041
  %3072 = vmatprep.subr.mxu0 0.0
  %3073 = vmatpush1.msra.mxu0 %v3040
  %3074 = vmatprep.subr.mxu0 0.0
  %3075 = vmatpush1.msra.mxu0 %v3039
  %3076 = vmatprep.subr.mxu0 0.0
  %3077 = vmatpush1.msra.mxu0 %v3038
  %3078 = vmatprep.subr.mxu0 0.0
  %3079 = vmatpush1.msra.mxu0 %v3037
  %3080 = vmatprep.subr.mxu0 0.0
  %3081 = vmatpush2.msra.mxu0 0.0
  %3082 = vmatprep.subr.mxu0 0.0
  %3083 = vmatpush2.msra.mxu0 0.0
  %3084 = vmatprep.subr.mxu0 0.0
  %3085 = vmatpush2.msra.mxu0 0.0
  %3086 = vmatprep.subr.mxu0 0.0
  %3087 = vmatpush2.msra.mxu0 0.0
  %3088 = vmatprep.subr.mxu0 0.0
  %3089 = vmatpush2.msra.mxu0 0.0
  %3090 = vmatprep.subr.mxu0 0.0
  %3091 = vmatpush2.msra.mxu0 0.0
  %3092 = vmatprep.subr.mxu0 0.0
  %3093 = vmatpush2.msra.mxu0 0.0
  %3094 = vmatprep.subr.mxu0 0.0
  %3095 = vmatpush2.msra.mxu0 0.0
  %3096 = vmatprep.subr.mxu0 0.0
  %3097 = vmatpush2.msra.mxu0 0.0
  %3098 = vmatprep.subr.mxu0 0.0
  %3099 = vmatpush2.msra.mxu0 0.0
  %3100 = vmatprep.subr.mxu0 0.0
  %3101 = vmatpush2.msra.mxu0 0.0
  %3102 = vmatprep.subr.mxu0 0.0
  %3103 = vmatpush2.msra.mxu0 0.0
  %3104 = vmatprep.subr.mxu0 0.0
  %3105 = vmatpush2.msra.mxu0 0.0
  %3106 = vmatprep.subr.mxu0 0.0
  %3107 = vmatpush2.msra.mxu0 0.0
  %3108 = vmatprep.subr.mxu0 0.0
  %3109 = vmatpush2.msra.mxu0 0.0
  %3110 = vmatprep.subr.mxu0 0.0
  %3111 = vmatpush2.msra.mxu0 0.0
  %3112 = vmatprep.mubr.f32.mxu0 0.0
  %3113 = vmatmul.mubr.f32.gmra.mxu0 %v3046
  %v3114 = vpop.f32.mrf.mxu0
  %v3115 = vadd.f32 0.0, %v3114
  %v3116 = vpop.f32.mrf.mxu0
  %3117 = vdwg.mxu0
  %v3118 = vadd.f32 %v2883, %v3115
  %s3119 = scalar_lea.vmem %s13, 6
  %v3120 = vld [vmem:[%s3119] sm:$0x3]
  %v3122 = vsel %vm2416, %v3120, 0
  %3124 = vmatprep.subr.mxu0 0.0
  %3125 = vmatpush1.msra.mxu0 0.0
  %3126 = vmatprep.subr.mxu0 0.0
  %3127 = vmatpush1.msra.mxu0 0.0
  %3128 = vmatprep.subr.mxu0 0.0
  %3129 = vmatpush1.msra.mxu0 0.0
  %3130 = vmatprep.subr.mxu0 0.0
  %3131 = vmatpush1.msra.mxu0 0.0
  %3132 = vmatprep.subr.mxu0 0.0
  %3133 = vmatpush1.msra.mxu0 0.0
  %3134 = vmatprep.subr.mxu0 0.0
  %3135 = vmatpush1.msra.mxu0 0.0
  %3136 = vmatprep.subr.mxu0 0.0
  %3137 = vmatpush1.msra.mxu0 0.0
  %3138 = vmatprep.subr.mxu0 0.0
  %3139 = vmatpush1.msra.mxu0 0.0
  %3140 = vmatprep.subr.mxu0 0.0
  %3141 = vmatpush1.msra.mxu0 0.0
  %3142 = vmatprep.subr.mxu0 0.0
  %3143 = vmatpush1.msra.mxu0 0.0
  %3144 = vmatprep.subr.mxu0 0.0
  %3145 = vmatpush1.msra.mxu0 0.0
  %3146 = vmatprep.subr.mxu0 0.0
  %3147 = vmatpush1.msra.mxu0 0.0
  %3148 = vmatprep.subr.mxu0 0.0
  %3149 = vmatpush1.msra.mxu0 0.0
  %3150 = vmatprep.subr.mxu0 0.0
  %3151 = vmatpush1.msra.mxu0 0.0
  %3152 = vmatprep.subr.mxu0 0.0
  %3153 = vmatpush1.msra.mxu0 %v2406
  %3154 = vmatprep.subr.mxu0 0.0
  %3155 = vmatpush1.msra.mxu0 %v2405
  %3156 = vmatprep.subr.mxu0 0.0
  %3157 = vmatpush2.msra.mxu0 0.0
  %3158 = vmatprep.subr.mxu0 0.0
  %3159 = vmatpush2.msra.mxu0 0.0
  %3160 = vmatprep.subr.mxu0 0.0
  %3161 = vmatpush2.msra.mxu0 0.0
  %3162 = vmatprep.subr.mxu0 0.0
  %3163 = vmatpush2.msra.mxu0 0.0
  %3164 = vmatprep.subr.mxu0 0.0
  %3165 = vmatpush2.msra.mxu0 0.0
  %3166 = vmatprep.subr.mxu0 0.0
  %3167 = vmatpush2.msra.mxu0 0.0
  %3168 = vmatprep.subr.mxu0 0.0
  %3169 = vmatpush2.msra.mxu0 0.0
  %3170 = vmatprep.subr.mxu0 0.0
  %3171 = vmatpush2.msra.mxu0 0.0
  %3172 = vmatprep.subr.mxu0 0.0
  %3173 = vmatpush2.msra.mxu0 0.0
  %3174 = vmatprep.subr.mxu0 0.0
  %3175 = vmatpush2.msra.mxu0 0.0
  %3176 = vmatprep.subr.mxu0 0.0
  %3177 = vmatpush2.msra.mxu0 0.0
  %3178 = vmatprep.subr.mxu0 0.0
  %3179 = vmatpush2.msra.mxu0 0.0
  %3180 = vmatprep.subr.mxu0 0.0
  %3181 = vmatpush2.msra.mxu0 0.0
  %3182 = vmatprep.subr.mxu0 0.0
  %3183 = vmatpush2.msra.mxu0 0.0
  %3184 = vmatprep.subr.mxu0 0.0
  %3185 = vmatpush2.msra.mxu0 0.0
  %3186 = vmatprep.subr.mxu0 0.0
  %3187 = vmatpush2.msra.mxu0 0.0
  %3188 = vmatprep.mubr.f32.mxu0 0.0
  %3189 = vmatmul.mubr.f32.gmra.mxu0 %v3122
  %v3190 = vpop.f32.mrf.mxu0
  %v3191 = vadd.f32 0.0, %v3190
  %v3192 = vpop.f32.mrf.mxu0
  %3193 = vdwg.mxu0
  %s3194 = scalar_lea.vmem %s14, 6
  %v3195 = vld [vmem:[%s3194] sm:$0x3]
  %v3197 = vsel %vm2416, %v3195, 0
  %3199 = vmatprep.subr.mxu0 0.0
  %3200 = vmatpush1.msra.mxu0 0.0
  %3201 = vmatprep.subr.mxu0 0.0
  %3202 = vmatpush1.msra.mxu0 0.0
  %3203 = vmatprep.subr.mxu0 0.0
  %3204 = vmatpush1.msra.mxu0 0.0
  %3205 = vmatprep.subr.mxu0 0.0
  %3206 = vmatpush1.msra.mxu0 0.0
  %3207 = vmatprep.subr.mxu0 0.0
  %3208 = vmatpush1.msra.mxu0 0.0
  %3209 = vmatprep.subr.mxu0 0.0
  %3210 = vmatpush1.msra.mxu0 0.0
  %3211 = vmatprep.subr.mxu0 0.0
  %3212 = vmatpush1.msra.mxu0 0.0
  %3213 = vmatprep.subr.mxu0 0.0
  %3214 = vmatpush1.msra.mxu0 0.0
  %3215 = vmatprep.subr.mxu0 0.0
  %3216 = vmatpush1.msra.mxu0 0.0
  %3217 = vmatprep.subr.mxu0 0.0
  %3218 = vmatpush1.msra.mxu0 0.0
  %3219 = vmatprep.subr.mxu0 0.0
  %3220 = vmatpush1.msra.mxu0 0.0
  %3221 = vmatprep.subr.mxu0 0.0
  %3222 = vmatpush1.msra.mxu0 0.0
  %3223 = vmatprep.subr.mxu0 0.0
  %3224 = vmatpush1.msra.mxu0 0.0
  %3225 = vmatprep.subr.mxu0 0.0
  %3226 = vmatpush1.msra.mxu0 0.0
  %3227 = vmatprep.subr.mxu0 0.0
  %3228 = vmatpush1.msra.mxu0 %v2406
  %3229 = vmatprep.subr.mxu0 0.0
  %3230 = vmatpush1.msra.mxu0 %v2405
  %3231 = vmatprep.subr.mxu0 0.0
  %3232 = vmatpush2.msra.mxu0 0.0
  %3233 = vmatprep.subr.mxu0 0.0
  %3234 = vmatpush2.msra.mxu0 0.0
  %3235 = vmatprep.subr.mxu0 0.0
  %3236 = vmatpush2.msra.mxu0 0.0
  %3237 = vmatprep.subr.mxu0 0.0
  %3238 = vmatpush2.msra.mxu0 0.0
  %3239 = vmatprep.subr.mxu0 0.0
  %3240 = vmatpush2.msra.mxu0 0.0
  %3241 = vmatprep.subr.mxu0 0.0
  %3242 = vmatpush2.msra.mxu0 0.0
  %3243 = vmatprep.subr.mxu0 0.0
  %3244 = vmatpush2.msra.mxu0 0.0
  %3245 = vmatprep.subr.mxu0 0.0
  %3246 = vmatpush2.msra.mxu0 0.0
  %3247 = vmatprep.subr.mxu0 0.0
  %3248 = vmatpush2.msra.mxu0 0.0
  %3249 = vmatprep.subr.mxu0 0.0
  %3250 = vmatpush2.msra.mxu0 0.0
  %3251 = vmatprep.subr.mxu0 0.0
  %3252 = vmatpush2.msra.mxu0 0.0
  %3253 = vmatprep.subr.mxu0 0.0
  %3254 = vmatpush2.msra.mxu0 0.0
  %3255 = vmatprep.subr.mxu0 0.0
  %3256 = vmatpush2.msra.mxu0 0.0
  %3257 = vmatprep.subr.mxu0 0.0
  %3258 = vmatpush2.msra.mxu0 0.0
  %3259 = vmatprep.subr.mxu0 0.0
  %3260 = vmatpush2.msra.mxu0 0.0
  %3261 = vmatprep.subr.mxu0 0.0
  %3262 = vmatpush2.msra.mxu0 0.0
  %3263 = vmatprep.mubr.f32.mxu0 0.0
  %3264 = vmatmul.mubr.f32.gmra.mxu0 %v3197
  %v3265 = vpop.f32.mrf.mxu0
  %v3266 = vadd.f32 0.0, %v3265
  %v3267 = vpop.f32.mrf.mxu0
  %3268 = vdwg.mxu0
  %v3269 = vmax.f32 %v3191, %v3266
  %v3270 = vmax.f32 %v3269, 0.0
  %s3271 = scalar_lea.vmem %s15, 192
  %v3272 = vld [vmem:[%s3271] sm:$0xff]
  %v3273 = vld [vmem:[%s3271 + $0x8] sm:$0xff]
  %v3274 = vld [vmem:[%s3271 + $0x10] sm:$0xff]
  %v3275 = vld [vmem:[%s3271 + $0x18] sm:$0xff]
  %v3276 = vld [vmem:[%s3271 + $0x20] sm:$0xff]
  %v3277 = vld [vmem:[%s3271 + $0x28] sm:$0xff]
  %v3278 = vld [vmem:[%s3271 + $0x30] sm:$0xff]
  %v3279 = vld [vmem:[%s3271 + $0x38] sm:$0xff]
  %v3281 = vsel %vm2574, %v3270, 0
  %3283 = vmatprep.subr.mxu0 0.0
  %3284 = vmatpush1.msra.mxu0 0.0
  %3285 = vmatprep.subr.mxu0 0.0
  %3286 = vmatpush1.msra.mxu0 0.0
  %3287 = vmatprep.subr.mxu0 0.0
  %3288 = vmatpush1.msra.mxu0 0.0
  %3289 = vmatprep.subr.mxu0 0.0
  %3290 = vmatpush1.msra.mxu0 0.0
  %3291 = vmatprep.subr.mxu0 0.0
  %3292 = vmatpush1.msra.mxu0 0.0
  %3293 = vmatprep.subr.mxu0 0.0
  %3294 = vmatpush1.msra.mxu0 0.0
  %3295 = vmatprep.subr.mxu0 0.0
  %3296 = vmatpush1.msra.mxu0 0.0
  %3297 = vmatprep.subr.mxu0 0.0
  %3298 = vmatpush1.msra.mxu0 0.0
  %3299 = vmatprep.subr.mxu0 0.0
  %3300 = vmatpush1.msra.mxu0 %v3279
  %3301 = vmatprep.subr.mxu0 0.0
  %3302 = vmatpush1.msra.mxu0 %v3278
  %3303 = vmatprep.subr.mxu0 0.0
  %3304 = vmatpush1.msra.mxu0 %v3277
  %3305 = vmatprep.subr.mxu0 0.0
  %3306 = vmatpush1.msra.mxu0 %v3276
  %3307 = vmatprep.subr.mxu0 0.0
  %3308 = vmatpush1.msra.mxu0 %v3275
  %3309 = vmatprep.subr.mxu0 0.0
  %3310 = vmatpush1.msra.mxu0 %v3274
  %3311 = vmatprep.subr.mxu0 0.0
  %3312 = vmatpush1.msra.mxu0 %v3273
  %3313 = vmatprep.subr.mxu0 0.0
  %3314 = vmatpush1.msra.mxu0 %v3272
  %3315 = vmatprep.subr.mxu0 0.0
  %3316 = vmatpush2.msra.mxu0 0.0
  %3317 = vmatprep.subr.mxu0 0.0
  %3318 = vmatpush2.msra.mxu0 0.0
  %3319 = vmatprep.subr.mxu0 0.0
  %3320 = vmatpush2.msra.mxu0 0.0
  %3321 = vmatprep.subr.mxu0 0.0
  %3322 = vmatpush2.msra.mxu0 0.0
  %3323 = vmatprep.subr.mxu0 0.0
  %3324 = vmatpush2.msra.mxu0 0.0
  %3325 = vmatprep.subr.mxu0 0.0
  %3326 = vmatpush2.msra.mxu0 0.0
  %3327 = vmatprep.subr.mxu0 0.0
  %3328 = vmatpush2.msra.mxu0 0.0
  %3329 = vmatprep.subr.mxu0 0.0
  %3330 = vmatpush2.msra.mxu0 0.0
  %3331 = vmatprep.subr.mxu0 0.0
  %3332 = vmatpush2.msra.mxu0 0.0
  %3333 = vmatprep.subr.mxu0 0.0
  %3334 = vmatpush2.msra.mxu0 0.0
  %3335 = vmatprep.subr.mxu0 0.0
  %3336 = vmatpush2.msra.mxu0 0.0
  %3337 = vmatprep.subr.mxu0 0.0
  %3338 = vmatpush2.msra.mxu0 0.0
  %3339 = vmatprep.subr.mxu0 0.0
  %3340 = vmatpush2.msra.mxu0 0.0
  %3341 = vmatprep.subr.mxu0 0.0
  %3342 = vmatpush2.msra.mxu0 0.0
  %3343 = vmatprep.subr.mxu0 0.0
  %3344 = vmatpush2.msra.mxu0 0.0
  %3345 = vmatprep.subr.mxu0 0.0
  %3346 = vmatpush2.msra.mxu0 0.0
  %3347 = vmatprep.mubr.f32.mxu0 0.0
  %3348 = vmatmul.mubr.f32.gmra.mxu0 %v3281
  %v3349 = vpop.f32.mrf.mxu0
  %v3350 = vadd.f32 0.0, %v3349
  %v3351 = vpop.f32.mrf.mxu0
  %3352 = vdwg.mxu0
  %v3353 = vadd.f32 %v3118, %v3350
  %v3354 = vmax.f32 %v3353, 0.0
  %v3355 = vld [vmem:[%s17] sm:$0xff]
  %v3356 = vld [vmem:[%s17 + $0x8] sm:$0xff]
  %v3357 = vld [vmem:[%s17 + $0x10] sm:$0xff]
  %v3358 = vld [vmem:[%s17 + $0x18] sm:$0xff]
  %v3359 = vld [vmem:[%s18] sm:$0x1]
  %v3361 = vlaneseq
  %v3362 = vshrl.u32 %v3361, 7
  %v3363 = vsub.s32 0, %v3362
  %v3364 = vrot.slane %v3359, %v3363
  %vm3366 = vcmask 261120
  %v3368 = vsel %vm3366, %v3354, 0
  %3370 = vmatprep.subr.mxu0 0.0
  %3371 = vmatpush1.msra.mxu0 0.0
  %3372 = vmatprep.subr.mxu0 0.0
  %3373 = vmatpush1.msra.mxu0 0.0
  %3374 = vmatprep.subr.mxu0 0.0
  %3375 = vmatpush1.msra.mxu0 0.0
  %3376 = vmatprep.subr.mxu0 0.0
  %3377 = vmatpush1.msra.mxu0 0.0
  %3378 = vmatprep.subr.mxu0 0.0
  %3379 = vmatpush1.msra.mxu0 0.0
  %3380 = vmatprep.subr.mxu0 0.0
  %3381 = vmatpush1.msra.mxu0 0.0
  %3382 = vmatprep.subr.mxu0 0.0
  %3383 = vmatpush1.msra.mxu0 0.0
  %3384 = vmatprep.subr.mxu0 0.0
  %3385 = vmatpush1.msra.mxu0 0.0
  %3386 = vmatprep.subr.mxu0 0.0
  %3387 = vmatpush1.msra.mxu0 0.0
  %3388 = vmatprep.subr.mxu0 0.0
  %3389 = vmatpush1.msra.mxu0 0.0
  %3390 = vmatprep.subr.mxu0 0.0
  %3391 = vmatpush1.msra.mxu0 0.0
  %3392 = vmatprep.subr.mxu0 0.0
  %3393 = vmatpush1.msra.mxu0 0.0
  %3394 = vmatprep.subr.mxu0 0.0
  %3395 = vmatpush1.msra.mxu0 %v3358
  %3396 = vmatprep.subr.mxu0 0.0
  %3397 = vmatpush1.msra.mxu0 %v3357
  %3398 = vmatprep.subr.mxu0 0.0
  %3399 = vmatpush1.msra.mxu0 %v3356
  %3400 = vmatprep.subr.mxu0 0.0
  %3401 = vmatpush1.msra.mxu0 %v3355
  %3402 = vmatprep.subr.mxu0 0.0
  %3403 = vmatpush2.msra.mxu0 0.0
  %3404 = vmatprep.subr.mxu0 0.0
  %3405 = vmatpush2.msra.mxu0 0.0
  %3406 = vmatprep.subr.mxu0 0.0
  %3407 = vmatpush2.msra.mxu0 0.0
  %3408 = vmatprep.subr.mxu0 0.0
  %3409 = vmatpush2.msra.mxu0 0.0
  %3410 = vmatprep.subr.mxu0 0.0
  %3411 = vmatpush2.msra.mxu0 0.0
  %3412 = vmatprep.subr.mxu0 0.0
  %3413 = vmatpush2.msra.mxu0 0.0
  %3414 = vmatprep.subr.mxu0 0.0
  %3415 = vmatpush2.msra.mxu0 0.0
  %3416 = vmatprep.subr.mxu0 0.0
  %3417 = vmatpush2.msra.mxu0 0.0
  %3418 = vmatprep.subr.mxu0 0.0
  %3419 = vmatpush2.msra.mxu0 0.0
  %3420 = vmatprep.subr.mxu0 0.0
  %3421 = vmatpush2.msra.mxu0 0.0
  %3422 = vmatprep.subr.mxu0 0.0
  %3423 = vmatpush2.msra.mxu0 0.0
  %3424 = vmatprep.subr.mxu0 0.0
  %3425 = vmatpush2.msra.mxu0 0.0
  %3426 = vmatprep.subr.mxu0 0.0
  %3427 = vmatpush2.msra.mxu0 0.0
  %3428 = vmatprep.subr.mxu0 0.0
  %3429 = vmatpush2.msra.mxu0 0.0
  %3430 = vmatprep.subr.mxu0 0.0
  %3431 = vmatpush2.msra.mxu0 0.0
  %3432 = vmatprep.subr.mxu0 0.0
  %3433 = vmatpush2.msra.mxu0 0.0
  %3434 = vmatprep.mubr.f32.mxu0 0.0
  %3435 = vmatmul.mubr.f32.gmra.mxu0 %v3368
  %v3436 = vpop.f32.mrf.mxu0
  %v3437 = vadd.f32 %v3364, %v3436
  %v3438 = vpop.f32.mrf.mxu0
  %3439 = vdwg.mxu0
  %vm3440 = vcmask 156672
  %3441 = vst.msk [vmem:[%s19] sm:$0x3] %vm3440, %v3437
  // Predicated region
  $region78: #{naive_subnet_forward.1} parent=0 // pred_check
    _
  $region79: #{naive_subnet_forward.1} parent=0 // pred_check_branch
    %3443 = sbr.rel (0) target = $region81
  $region80: #{naive_subnet_forward.1} parent=0 // pred_region
    _
  $region81: #{naive_subnet_forward.1} parent=0 // pred_fallthru
    _
  // Predicated region
  $region82: #{naive_subnet_forward.1} parent=0 // pred_check
    _
  $region83: #{naive_subnet_forward.1} parent=0 // pred_check_branch
    %3445 = sbr.rel (0) target = $region85
  $region84: #{naive_subnet_forward.1} parent=0 // pred_region
    _
  $region85: #{naive_subnet_forward.1} parent=0 // pred_fallthru
    _

</llo_original>
